<compile_context>
chip_gen: v7x
topology: tpu7x:2x2x1
jax: 0.10.0
libtpu: 0.0.40
codegen_flags: <defaults>
</compile_context>

<pallas_src>
import functools
import math

import jax
import jax.numpy as jnp
from jax import lax
from jax.experimental import pallas as pl
from jax.experimental.pallas import tpu as pltpu


_NEG_INF = -3.0e38  # large-negative mask value (avoids inf arithmetic / NaN)


def _vmem_limit_bytes():
    """Generation-aware VMEM limit: ~3/4 of physical, capped at 100 MiB."""
    try:
        cap = int(pltpu.get_tpu_info().vmem_capacity_bytes)
    except Exception:
        cap = 64 * 1024 * 1024  # conservative default (v7x physical VMEM)
    return min(cap * 3 // 4, 100 * 1024 * 1024)


def _largest_divisor_tile(total, target, mult):
    """Largest t <= target with t % mult == 0 and total % t == 0, else total."""
    if total <= target:
        return total
    t = (target // mult) * mult
    while t >= mult:
        if total % t == 0:
            return t
        t -= mult
    return total


# ----------------------------------------------------------------------------
# K/V pyramid: Conv1d(d, p*d, w, stride=w) for K and V fused in one kernel.
# ----------------------------------------------------------------------------
def _pyramid_kernel(xk_ref, xv_ref, wk_ref, wv_ref, bk_ref, bv_ref,
                    yk_ref, yv_ref, acck_ref, accv_ref):
    kk = pl.program_id(2)

    @pl.when(kk == 0)
    def _():
        acck_ref[...] = jnp.zeros_like(acck_ref)
        accv_ref[...] = jnp.zeros_like(accv_ref)

    acck_ref[...] += jnp.dot(xk_ref[...], wk_ref[...],
                             preferred_element_type=jnp.float32)
    accv_ref[...] += jnp.dot(xv_ref[...], wv_ref[...],
                             preferred_element_type=jnp.float32)

    @pl.when(kk == pl.num_programs(2) - 1)
    def _():
        yk_ref[...] = (acck_ref[...] + bk_ref[...]).astype(yk_ref.dtype)
        yv_ref[...] = (accv_ref[...] + bv_ref[...]).astype(yv_ref.dtype)


def conv_downsample_kv(k_bf, v_bf, wk, bk, wv, bv, w, p, vmem_limit):
    """One pyramid level for both K and V (single pallas_call).

    Equivalent to the PyTorch nn.Conv1d(d, p*d, w, stride=w) on x.transpose(1,2)
    followed by the module's view/transpose/reshape to (B, p*(N//w), D)."""
    B, n, d = k_bf.shape
    nb = n // w
    wd, pd = w * d, p * d
    xk = k_bf.reshape(B, nb, wd)          # [.., j*d+c] = k[.., t*w+j, c]
    xv = v_bf.reshape(B, nb, wd)
    wkf = jnp.transpose(wk, (2, 1, 0)).reshape(wd, pd).astype(jnp.bfloat16)
    wvf = jnp.transpose(wv, (2, 1, 0)).reshape(wd, pd).astype(jnp.bfloat16)
    bk2 = bk.reshape(1, pd)
    bv2 = bv.reshape(1, pd)

    tnb = _largest_divisor_tile(nb, 256, 8)     # row tile
    tk = _largest_divisor_tile(wd, 2048, 128)   # contraction tile
    grid = (B, nb // tnb, wd // tk)

    yk, yv = pl.pallas_call(
        _pyramid_kernel,
        out_shape=(jax.ShapeDtypeStruct((B, nb, pd), jnp.float32),
                   jax.ShapeDtypeStruct((B, nb, pd), jnp.float32)),
        grid=grid,
        in_specs=[
            pl.BlockSpec((None, tnb, tk), lambda b, i, kk: (b, i, kk)),
            pl.BlockSpec((None, tnb, tk), lambda b, i, kk: (b, i, kk)),
            pl.BlockSpec((tk, pd), lambda b, i, kk: (kk, 0)),
            pl.BlockSpec((tk, pd), lambda b, i, kk: (kk, 0)),
            pl.BlockSpec((1, pd), lambda b, i, kk: (0, 0)),
            pl.BlockSpec((1, pd), lambda b, i, kk: (0, 0)),
        ],
        out_specs=(
            pl.BlockSpec((None, tnb, pd), lambda b, i, kk: (b, i, 0)),
            pl.BlockSpec((None, tnb, pd), lambda b, i, kk: (b, i, 0)),
        ),
        scratch_shapes=[pltpu.VMEM((tnb, pd), jnp.float32),
                        pltpu.VMEM((tnb, pd), jnp.float32)],
        compiler_params=pltpu.CompilerParams(
            dimension_semantics=("parallel", "parallel", "arbitrary"),
            vmem_limit_bytes=vmem_limit,
        ),
    )(xk, xv, wkf, wvf, bk2, bv2)

    def unpack(y):
        # torch: (B, d*p, nb) -> view (B, d, p, nb) -> transpose(1,3) -> (B, nb*p, d)
        y = y.reshape(B, nb, d, p)
        return jnp.transpose(y, (0, 1, 3, 2)).reshape(B, nb * p, d)

    return unpack(yk), unpack(yv)


# ----------------------------------------------------------------------------
# Fused stage1 + stage2 kernel, grid = (batch, query-tile).
# ----------------------------------------------------------------------------
def _fma_fused_kernel(n, m, d, p, levels, scale_attn, tq, *refs):
    q_ref = refs[0]
    kpad_ref = refs[1]
    vpad_ref = refs[2]
    kl_refs = refs[3:3 + levels]
    vl_refs = refs[3 + levels:3 + 2 * levels]
    o_ref = refs[3 + 2 * levels]

    f32, bf16 = jnp.float32, jnp.bfloat16
    qi = pl.program_id(1)

    # q tile, scaled by 1/sqrt(d); bf16 feeds the MXU, accumulation stays f32.
    q = (q_ref[...].astype(f32) * (1.0 / math.sqrt(d))).astype(bf16)   # (tq, d)

    scores = []       # per level: (tq, W_l) f32, off-band masked to _NEG_INF
    win_starts = []   # padded-row start of each level's K/V window
    win_sizes = []

    # ---- fine level: one wide MXU matmul over the [prev|self|next] halo ------
    w0 = tq + 2 * m
    start0 = pl.multiple_of(qi * tq, tq)
    kwin = kpad_ref[pl.ds(start0, w0), :]                              # bf16
    s0 = jnp.einsum('qd,kd->qk', q, kwin, preferred_element_type=f32)  # (tq, w0)
    row0 = lax.broadcasted_iota(jnp.int32, (tq, w0), 0)
    col0 = lax.broadcasted_iota(jnp.int32, (tq, w0), 1)
    blk0 = (row0 // m) * m
    band0 = (col0 >= blk0) & (col0 < blk0 + 3 * m)
    scores.append(jnp.where(band0, s0, _NEG_INF))
    win_starts.append(start0)
    win_sizes.append(w0)

    # ---- coarse levels: left/right neighbour summary keys, band-masked -------
    for l in range(1, levels + 1):
        sblk = m * (2 ** l)                  # coarse block size in query rows
        ngroups = max(tq // sblk, 1)
        wl = (ngroups + 2) * 2 * p
        if tq >= sblk:
            cb0 = qi * (tq // sblk)
        else:
            cb0 = qi // (sblk // tq)
        startl = pl.multiple_of(cb0 * 2 * p, 2 * p)
        klw = kl_refs[l - 1][pl.ds(startl, wl), :].astype(bf16)
        sl = jnp.einsum('qd,kd->qk', q, klw, preferred_element_type=f32)
        rows = lax.broadcasted_iota(jnp.int32, (tq, wl), 0)
        cols = lax.broadcasted_iota(jnp.int32, (tq, wl), 1)
        grp = (rows // sblk) if tq >= sblk else jnp.zeros_like(rows)
        cblk = cols // (2 * p)
        band = (cblk == grp) | (cblk == grp + 2)
        scores.append(jnp.where(band, sl, _NEG_INF))
        win_starts.append(startl)
        win_sizes.append(wl)

    # ---- cross-level softmax: subtract min of per-level maxima (reference) ---
    min_of_max = scores[0].max(axis=-1, keepdims=True)
    for s in scores[1:]:
        min_of_max = jnp.minimum(min_of_max, s.max(axis=-1, keepdims=True))

    # ---- exp + scale-folded accumulation, single reciprocal at the end -------
    denom = jnp.zeros((tq, 1), f32)
    acc = jnp.zeros((tq, d), f32)

    e0 = jnp.exp(scores[0] - min_of_max)                   # off-band -> 0
    denom = denom + e0.sum(axis=-1, keepdims=True)
    vwin = vpad_ref[pl.ds(win_starts[0], win_sizes[0]), :]
    acc = acc + jnp.dot(e0.astype(bf16), vwin, preferred_element_type=f32)

    for l in range(1, levels + 1):
        scale = float(m * 2 ** (l - 1) // p) if scale_attn else 1.0
        el = jnp.exp(scores[l] - min_of_max)
        denom = denom + scale * el.sum(axis=-1, keepdims=True)
        vlw = vl_refs[l - 1][pl.ds(win_starts[l], win_sizes[l]), :].astype(bf16)
        acc = acc + scale * jnp.dot(el.astype(bf16), vlw,
                                    preferred_element_type=f32)
    # TODO(synk): attention dropout (attn_pdrop) omitted — eval-mode kernel
    # (could be added with pltpu.prng_seed / pltpu.prng_random_bits).

    inv = pl.reciprocal(denom, approx=True)                # EUP slot, ~free
    o_ref[...] = (acc * inv).astype(o_ref.dtype)


# ----------------------------------------------------------------------------
# Module wrapper.
# ----------------------------------------------------------------------------
class FMAPallas:
    """Pallas/TPU port of the PyTorch `fma` module (downsampling='conv').

    The custom CUDA ops (qk_fine / qk_coarse / diagonaled_mm_cv_*) have no
    published source; their semantics are reconstructed from the fast-multipole
    block structure implied by the shapes.
    # TODO(synk): the reference's `c.view((b, n, 4*p))` is inconsistent with
    # `c = zeros((b, n//(m*2**l), m, 4*p))` for l>=1; the only self-consistent
    # per-level score shape, (b, n, 4*p), is used here.
    """

    def __init__(self, n, m, d, p, attn_pdrop=0.0, scale_attn=True,
                 downsampling='conv', key=None):
        assert n % m == 0, 'n must be divisible by m'
        assert (n // m) & (n // m - 1) == 0, 'n/m must be power of 2'
        self.levels = int(math.log2(n // m)) - 1
        assert m * 2 ** (self.levels - 1) == n // 4, 'coarsest grid size is n/4?'
        assert downsampling == 'conv', 'only the "conv" downsampling path is implemented'
        assert attn_pdrop == 0.0, 'dropout is not supported in the kernel'
        self.n, self.m, self.d, self.p = n, m, d, p
        self.scale_attn = scale_attn

        # Query-tile size: multiple of lcm(m, 8), divides n, ~256 rows.
        lcm_m8 = m * 8 // math.gcd(m, 8)
        self.tq = _largest_divisor_tile(n, 256, lcm_m8)

        if key is None:
            key = jax.random.PRNGKey(0)
        # Deterministic parameter init mimicking torch Conv1d default
        # (uniform(-1/sqrt(fan_in), +1/sqrt(fan_in)), fan_in = d * w).
        self.conv_k, self.conv_v = [], []
        keys = jax.random.split(key, 4 * max(self.levels, 1))
        for l in range(self.levels):
            w = m * 2 ** l
            bound = 1.0 / math.sqrt(d * w)
            wk = jax.random.uniform(keys[4 * l + 0], (p * d, d, w), jnp.float32, -bound, bound)
            bk = jax.random.uniform(keys[4 * l + 1], (p * d,), jnp.float32, -bound, bound)
            wv = jax.random.uniform(keys[4 * l + 2], (p * d, d, w), jnp.float32, -bound, bound)
            bv = jax.random.uniform(keys[4 * l + 3], (p * d,), jnp.float32, -bound, bound)
            self.conv_k.append((wk, bk))
            self.conv_v.append((wv, bv))

    def __call__(self, q, k, v):
        B, n, d = q.shape
        assert (n, d) == (self.n, self.d)
        m, p, levels = self.m, self.p, self.levels
        vmem_limit = _vmem_limit_bytes()
        bf16 = jnp.bfloat16

        k_bf = k.astype(bf16)
        v_bf = v.astype(bf16)

        # convolute(): hierarchical key/value pyramid (K and V fused per level).
        kls, vls = [], []
        for l in range(levels):
            w = m * 2 ** l
            wk, bk = self.conv_k[l]
            wv, bv = self.conv_v[l]
            kl, vl = conv_downsample_kv(k_bf, v_bf, wk, bk, wv, bv, w, p, vmem_limit)
            kls.append(kl)
            vls.append(vl)

        # Zero-pad so out-of-bounds neighbour blocks contribute exactly-zero
        # scores (reference semantics) and all halo windows are contiguous.
        kpad = jnp.pad(k_bf, ((0, 0), (m, m), (0, 0)))
        vpad = jnp.pad(v_bf, ((0, 0), (m, m), (0, 0)))
        # Pyramid kept in f32 so the per-level windowed reads stay (8,128)-tile
        # aligned; it is cast to bf16 at the MXU inside the kernel.
        klpads = [jnp.pad(a, ((0, 0), (2 * p, 2 * p), (0, 0))) for a in kls]
        vlpads = [jnp.pad(a, ((0, 0), (2 * p, 2 * p), (0, 0))) for a in vls]

        tq = self.tq
        nq = n // tq
        kernel = functools.partial(_fma_fused_kernel, n, m, d, p, levels,
                                   self.scale_attn, tq)

        def resident_spec(a):
            # Constant block index across the query-tile axis -> stays resident
            # in VMEM across the inner grid loop (re-fetched per batch only).
            return pl.BlockSpec((None,) + tuple(a.shape[1:]),
                                lambda b, qi: (b, 0, 0))

        in_specs = ([pl.BlockSpec((None, tq, d), lambda b, qi: (b, qi, 0)),
                     resident_spec(kpad), resident_spec(vpad)]
                    + [resident_spec(a) for a in klpads]
                    + [resident_spec(a) for a in vlpads])

        out = pl.pallas_call(
            kernel,
            out_shape=jax.ShapeDtypeStruct((B, n, d), jnp.float32),
            grid=(B, nq),
            in_specs=in_specs,
            out_specs=pl.BlockSpec((None, tq, d), lambda b, qi: (b, qi, 0)),
            compiler_params=pltpu.CompilerParams(
                dimension_semantics=("parallel", "parallel"),
                vmem_limit_bytes=vmem_limit,
            ),
        )(q, kpad, vpad, *klpads, *vlpads)
        return out, None


if __name__ == "__main__":
    # Small shapes consistent with the module's constraints:
    # n/m = 16 (power of 2), levels = 3, m * 2**(levels-1) == n // 4.
    B, n, m, d, p = 2, 128, 8, 128, 4
    root = jax.random.PRNGKey(0)
    kq, kk, kv, kparams = jax.random.split(root, 4)
    q = jax.random.normal(kq, (B, n, d), jnp.float32)
    k = jax.random.normal(kk, (B, n, d), jnp.float32)
    v = jax.random.normal(kv, (B, n, d), jnp.float32)

    module = FMAPallas(n=n, m=m, d=d, p=p, attn_pdrop=0.0, scale_attn=True,
                       downsampling='conv', key=kparams)
    result, _ = module(q, k, v)
    result = jax.block_until_ready(result)
    assert result.shape == (B, n, d), result.shape
    assert bool(jnp.all(jnp.isfinite(result)))
    print("KERNEL_OK")
</pallas_src>

<mosaic_0001>
module attributes {stable_mosaic.version = 11 : i64} {
  func.func @_pyramid_kernel(%arg0: i32, %arg1: i32, %arg2: i32, %arg3: memref<1x16x1024xbf16, #tpu.memory_space<vmem>>, %arg4: memref<1x16x1024xbf16, #tpu.memory_space<vmem>>, %arg5: memref<1024x512xbf16, #tpu.memory_space<vmem>>, %arg6: memref<1024x512xbf16, #tpu.memory_space<vmem>>, %arg7: memref<1x512xf32, #tpu.memory_space<vmem>>, %arg8: memref<1x512xf32, #tpu.memory_space<vmem>>, %arg9: memref<1x16x512xf32, #tpu.memory_space<vmem>>, %arg10: memref<1x16x512xf32, #tpu.memory_space<vmem>>, %arg11: memref<16x512xf32, #tpu.memory_space<vmem>>, %arg12: memref<16x512xf32, #tpu.memory_space<vmem>>) attributes {dimension_semantics = [#tpu.dimension_semantics<parallel>, #tpu.dimension_semantics<parallel>, #tpu.dimension_semantics<arbitrary>], iteration_bounds = array<i64: 2, 1, 1>, scalar_prefetch = 0 : i64, scratch_operands = 2 : i64, tpu.core_type = #tpu.core_type<tc>, window_params = [{transform_indices = @transform_0, window_bounds = array<i64: 1, 16, 1024>}, {transform_indices = @transform_1, window_bounds = array<i64: 1, 16, 1024>}, {transform_indices = @transform_2, window_bounds = array<i64: 1024, 512>}, {transform_indices = @transform_3, window_bounds = array<i64: 1024, 512>}, {pipeline_mode = #tpu.pipeline_mode<synchronous>, transform_indices = @transform_4, window_bounds = array<i64: 1, 512>}, {pipeline_mode = #tpu.pipeline_mode<synchronous>, transform_indices = @transform_5, window_bounds = array<i64: 1, 512>}, {transform_indices = @transform_6, window_bounds = array<i64: 1, 16, 512>}, {transform_indices = @transform_7, window_bounds = array<i64: 1, 16, 512>}]} {
    %c0_i32 = arith.constant 0 : i32
    %0 = arith.cmpi eq, %arg2, %c0_i32 : i32
    %1 = arith.extui %0 : i1 to i32
    %c0_i32_0 = arith.constant 0 : i32
    %2 = arith.cmpi ne, %1, %c0_i32_0 : i32
    scf.if %2 {
      %cst_21 = arith.constant 0.000000e+00 : f32
      %20 = vector.broadcast %cst_21 : f32 to vector<16x512xf32>
      %c0_22 = arith.constant 0 : index
      %c0_23 = arith.constant 0 : index
      %21 = vector.load %arg11[%c0_22, %c0_23] : memref<16x512xf32, #tpu.memory_space<vmem>>, vector<16x512xf32>
      tpu.vector_store %arg11[%c0_22, %c0_23], %20 {strides = array<i32>} : memref<16x512xf32, #tpu.memory_space<vmem>>, vector<16x512xf32>,
      %cst_24 = arith.constant 0.000000e+00 : f32
      %22 = vector.broadcast %cst_24 : f32 to vector<16x512xf32>
      %c0_25 = arith.constant 0 : index
      %c0_26 = arith.constant 0 : index
      %23 = vector.load %arg12[%c0_25, %c0_26] : memref<16x512xf32, #tpu.memory_space<vmem>>, vector<16x512xf32>
      tpu.vector_store %arg12[%c0_25, %c0_26], %22 {strides = array<i32>} : memref<16x512xf32, #tpu.memory_space<vmem>>, vector<16x512xf32>,
    } else {
    }
    %c0 = arith.constant 0 : index
    %c0_1 = arith.constant 0 : index
    %3 = vector.load %arg11[%c0, %c0_1] : memref<16x512xf32, #tpu.memory_space<vmem>>, vector<16x512xf32>
    %c0_2 = arith.constant 0 : index
    %c0_3 = arith.constant 0 : index
    %c0_4 = arith.constant 0 : index
    %4 = vector.load %arg3[%c0_2, %c0_3, %c0_4] : memref<1x16x1024xbf16, #tpu.memory_space<vmem>>, vector<1x16x1024xbf16>
    %5 = vector.shape_cast %4 : vector<1x16x1024xbf16> to vector<16x1024xbf16>
    %c0_5 = arith.constant 0 : index
    %c0_6 = arith.constant 0 : index
    %6 = vector.load %arg5[%c0_5, %c0_6] : memref<1024x512xbf16, #tpu.memory_space<vmem>>, vector<1024x512xbf16>
    %cst = arith.constant dense<0.000000e+00> : vector<16x512xf32>
    %7 = tpu.matmul %5, %6, %cst {dimension_numbers = #tpu.dot_dimension_numbers<[1], [0], [0], [1], [0, 0, 1, 1], [], []>} : vector<16x1024xbf16>, vector<1024x512xbf16>, vector<16x512xf32> -> vector<16x512xf32>
    %8 = arith.addf %3, %7 : vector<16x512xf32>
    %c0_7 = arith.constant 0 : index
    %c0_8 = arith.constant 0 : index
    %9 = vector.load %arg11[%c0_7, %c0_8] : memref<16x512xf32, #tpu.memory_space<vmem>>, vector<16x512xf32>
    tpu.vector_store %arg11[%c0_7, %c0_8], %8 {strides = array<i32>} : memref<16x512xf32, #tpu.memory_space<vmem>>, vector<16x512xf32>,
    %c0_9 = arith.constant 0 : index
    %c0_10 = arith.constant 0 : index
    %10 = vector.load %arg12[%c0_9, %c0_10] : memref<16x512xf32, #tpu.memory_space<vmem>>, vector<16x512xf32>
    %c0_11 = arith.constant 0 : index
    %c0_12 = arith.constant 0 : index
    %c0_13 = arith.constant 0 : index
    %11 = vector.load %arg4[%c0_11, %c0_12, %c0_13] : memref<1x16x1024xbf16, #tpu.memory_space<vmem>>, vector<1x16x1024xbf16>
    %12 = vector.shape_cast %11 : vector<1x16x1024xbf16> to vector<16x1024xbf16>
    %c0_14 = arith.constant 0 : index
    %c0_15 = arith.constant 0 : index
    %13 = vector.load %arg6[%c0_14, %c0_15] : memref<1024x512xbf16, #tpu.memory_space<vmem>>, vector<1024x512xbf16>
    %cst_16 = arith.constant dense<0.000000e+00> : vector<16x512xf32>
    %14 = tpu.matmul %12, %13, %cst_16 {dimension_numbers = #tpu.dot_dimension_numbers<[1], [0], [0], [1], [0, 0, 1, 1], [], []>} : vector<16x1024xbf16>, vector<1024x512xbf16>, vector<16x512xf32> -> vector<16x512xf32>
    %15 = arith.addf %10, %14 : vector<16x512xf32>
    %c0_17 = arith.constant 0 : index
    %c0_18 = arith.constant 0 : index
    %16 = vector.load %arg12[%c0_17, %c0_18] : memref<16x512xf32, #tpu.memory_space<vmem>>, vector<16x512xf32>
    tpu.vector_store %arg12[%c0_17, %c0_18], %15 {strides = array<i32>} : memref<16x512xf32, #tpu.memory_space<vmem>>, vector<16x512xf32>,
    %c0_i32_19 = arith.constant 0 : i32
    %17 = arith.cmpi eq, %arg2, %c0_i32_19 : i32
    %18 = arith.extui %17 : i1 to i32
    %c0_i32_20 = arith.constant 0 : i32
    %19 = arith.cmpi ne, %18, %c0_i32_20 : i32
    scf.if %19 {
      %c0_21 = arith.constant 0 : index
      %c0_22 = arith.constant 0 : index
      %20 = vector.load %arg11[%c0_21, %c0_22] : memref<16x512xf32, #tpu.memory_space<vmem>>, vector<16x512xf32>
      %c0_23 = arith.constant 0 : index
      %c0_24 = arith.constant 0 : index
      %21 = vector.load %arg7[%c0_23, %c0_24] : memref<1x512xf32, #tpu.memory_space<vmem>>, vector<1x512xf32>
      %22 = vector.broadcast %21 : vector<1x512xf32> to vector<16x512xf32>
      %23 = arith.addf %20, %22 : vector<16x512xf32>
      %c0_25 = arith.constant 0 : index
      %c0_26 = arith.constant 0 : index
      %c0_27 = arith.constant 0 : index
      %24 = vector.load %arg9[%c0_25, %c0_26, %c0_27] : memref<1x16x512xf32, #tpu.memory_space<vmem>>, vector<1x16x512xf32>
      %25 = vector.shape_cast %24 : vector<1x16x512xf32> to vector<16x512xf32>
      %26 = vector.shape_cast %23 : vector<16x512xf32> to vector<1x16x512xf32>
      tpu.vector_store %arg9[%c0_25, %c0_26, %c0_27], %26 {strides = array<i32>} : memref<1x16x512xf32, #tpu.memory_space<vmem>>, vector<1x16x512xf32>,
      %c0_28 = arith.constant 0 : index
      %c0_29 = arith.constant 0 : index
      %27 = vector.load %arg12[%c0_28, %c0_29] : memref<16x512xf32, #tpu.memory_space<vmem>>, vector<16x512xf32>
      %c0_30 = arith.constant 0 : index
      %c0_31 = arith.constant 0 : index
      %28 = vector.load %arg8[%c0_30, %c0_31] : memref<1x512xf32, #tpu.memory_space<vmem>>, vector<1x512xf32>
      %29 = vector.broadcast %28 : vector<1x512xf32> to vector<16x512xf32>
      %30 = arith.addf %27, %29 : vector<16x512xf32>
      %c0_32 = arith.constant 0 : index
      %c0_33 = arith.constant 0 : index
      %c0_34 = arith.constant 0 : index
      %31 = vector.load %arg10[%c0_32, %c0_33, %c0_34] : memref<1x16x512xf32, #tpu.memory_space<vmem>>, vector<1x16x512xf32>
      %32 = vector.shape_cast %31 : vector<1x16x512xf32> to vector<16x512xf32>
      %33 = vector.shape_cast %30 : vector<16x512xf32> to vector<1x16x512xf32>
      tpu.vector_store %arg10[%c0_32, %c0_33, %c0_34], %33 {strides = array<i32>} : memref<1x16x512xf32, #tpu.memory_space<vmem>>, vector<1x16x512xf32>,
    } else {
    }
    return
  }
  func.func @transform_0(%arg0: i32, %arg1: i32, %arg2: i32) -> (i32, i32, i32) {
    %c0_i32 = arith.constant 0 : i32
    return %arg0, %arg1, %arg2 : i32, i32, i32
  }
  func.func @transform_1(%arg0: i32, %arg1: i32, %arg2: i32) -> (i32, i32, i32) {
    %c0_i32 = arith.constant 0 : i32
    return %arg0, %arg1, %arg2 : i32, i32, i32
  }
  func.func @transform_2(%arg0: i32, %arg1: i32, %arg2: i32) -> (i32, i32) {
    %c0_i32 = arith.constant 0 : i32
    %c0_i32_0 = arith.constant 0 : i32
    return %arg2, %c0_i32 : i32, i32
  }
  func.func @transform_3(%arg0: i32, %arg1: i32, %arg2: i32) -> (i32, i32) {
    %c0_i32 = arith.constant 0 : i32
    %c0_i32_0 = arith.constant 0 : i32
    return %arg2, %c0_i32 : i32, i32
  }
  func.func @transform_4(%arg0: i32, %arg1: i32, %arg2: i32) -> (i32, i32) {
    %c0_i32 = arith.constant 0 : i32
    %c0_i32_0 = arith.constant 0 : i32
    %c0_i32_1 = arith.constant 0 : i32
    return %c0_i32, %c0_i32_0 : i32, i32
  }
  func.func @transform_5(%arg0: i32, %arg1: i32, %arg2: i32) -> (i32, i32) {
    %c0_i32 = arith.constant 0 : i32
    %c0_i32_0 = arith.constant 0 : i32
    %c0_i32_1 = arith.constant 0 : i32
    return %c0_i32, %c0_i32_0 : i32, i32
  }
  func.func @transform_6(%arg0: i32, %arg1: i32, %arg2: i32) -> (i32, i32, i32) {
    %c0_i32 = arith.constant 0 : i32
    %c0_i32_0 = arith.constant 0 : i32
    return %arg0, %arg1, %c0_i32 : i32, i32, i32
  }
  func.func @transform_7(%arg0: i32, %arg1: i32, %arg2: i32) -> (i32, i32, i32) {
    %c0_i32 = arith.constant 0 : i32
    %c0_i32_0 = arith.constant 0 : i32
    return %arg0, %arg1, %c0_i32 : i32, i32, i32
  }
}

</mosaic_0001>

<llo_original>
// kernel: tpu_custom_call.1
$region0: #{tpu_custom_call.1}
  #allocation0 [shape = 'u32[]', space=smem, size = 0x4, offset = 0x4, fixed_abs, tag = 'smem constant byte address 0x4 - core index']
  #allocation1 [shape = 'u32[144,128]{1,0:T(1,128)}', space=vmem, size = 0x12000, scoped, tag = 'internal scratch']
  #allocation2 [shape = 'f32[16,512]{1,0:T(8,128)}', space=vmem, size = 0x8000, scoped, tag = 'scratch operand']
  #allocation3 [shape = 'f32[16,512]{1,0:T(8,128)}', space=vmem, size = 0x8000, scoped, tag = 'scratch operand']
  %s0 = inlined_call_operand.hbm [shape: bf16[2,16,1024], index: 0, kind: input, shape index: {}]
  %s1 = inlined_call_operand.hbm [shape: bf16[2,16,1024], index: 1, kind: input, shape index: {}]
  %s2 = inlined_call_operand.hbm [shape: bf16[1024,512], index: 2, kind: input, shape index: {}]
  %s3 = inlined_call_operand.hbm [shape: bf16[1024,512], index: 3, kind: input, shape index: {}]
  %s4 = inlined_call_operand.vmem [shape: f32[1,512], index: 4, kind: input, shape index: {}]
  %s5 = inlined_call_operand.vmem [shape: f32[1,512], index: 5, kind: input, shape index: {}]
  %s6 = inlined_call_operand.hbm [shape: f32[2,16,512], index: 6, kind: output, shape index: {0}]
  %s7 = inlined_call_operand.hbm [shape: f32[2,16,512], index: 7, kind: output, shape index: {1}]
  %8 = xla_tuple %s6, %s7
  %s9 = sld [smem:[#allocation0]]
  $region89: #{tpu_custom_call.1} parent=0
    _
  %s11 = ssub.s32 1, %s9
  %s12 = scalar_select 0, %s11, %s9
  $region1: #{tpu_custom_call.1} parent=0
    #allocation4 [shape = 'u8[65536]{0}', space=vmem, size = 0x10000, scoped, tag = 'input window, operand 0']
    #allocation5 [shape = 's32[2]{0}', space=sflag, size = 0x8, scoped, tag = 'scoped memory for tpu_custom_call.1']
    #allocation6 [shape = 's32[2]{0}', space=sflag, size = 0x8, scoped, tag = 'scoped memory for tpu_custom_call.1']
    #allocation7 [shape = 'u8[65536]{0}', space=vmem, size = 0x10000, scoped, tag = 'input window, operand 1']
    #allocation8 [shape = 's32[2]{0}', space=sflag, size = 0x8, scoped, tag = 'scoped memory for tpu_custom_call.1']
    #allocation9 [shape = 'u8[1048576]{0}', space=vmem, size = 0x100000, scoped, tag = 'input window, operand 2, single buffered']
    #allocation10 [shape = 'u8[1048576]{0}', space=vmem, size = 0x100000, scoped, tag = 'input window, operand 3, single buffered']
    #allocation11 [shape = 's32[1]{0}', space=sflag, size = 0x4, scoped, tag = 'scoped memory for tpu_custom_call.1']
    #allocation12 [shape = 'u8[65536]{0}', space=vmem, size = 0x10000, scoped, tag = 'output window, operand 0']
    #allocation13 [shape = 'u8[65536]{0}', space=vmem, size = 0x10000, scoped, tag = 'output window, operand 1']
    #allocation14 [shape = 's32[2]{0}', space=sflag, size = 0x8, scoped, tag = 'scoped memory for tpu_custom_call.1']
    %13 = vsyncpa [#allocation5], 0
    %s14 = scalar_lea.sflag [#allocation5], 1
    %15 = vsyncpa %s14, 0
    %16 = vsyncpa [#allocation8], 0
    %s17 = scalar_lea.sflag [#allocation8], 1
    %18 = vsyncpa %s17, 0
    %19 = vsyncpa [#allocation11], 0
    %20 = vsyncpa [#allocation6], 0
    %s21 = scalar_lea.sflag [#allocation6], 1
    %22 = vsyncpa %s21, 0
    %23 = vsyncpa [#allocation14], 0
    %s24 = scalar_lea.sflag [#allocation14], 1
    %25 = vsyncpa %s24, 0
    loop: start=0, step=1, limit=4
    $region2: #{tpu_custom_call.1} parent=1 // loop_pre_header
      _
    $region3: #{tpu_custom_call.1} parent=1 // loop_header
      %s27 = sphi 0, %s31
      %p28 = scmp.ge.s32.totalorder %s27, 4
      %s34 = sphi 0, %s53
      %s35 = sphi 0, %s49
      %s36 = sphi 0, %s45
      %s37 = sphi 0, %s34
      %s38 = sphi 0, %s35
      %s39 = sphi 0, %s36
      %s40 = sphi 0, %s37
      %s41 = sphi 0, %s38
      %s42 = sphi 0, %s39
      %s60 = sphi 0, %s62
      %s63 = sphi 0, %s60
      %s64 = sphi 0, %s63
      %s80 = sphi 0, %s64
      %s90 = sphi 0, %s92
      %s93 = sphi 0, %s90
      %s94 = sphi 0, %s93
      %s110 = sphi 0, %s94
      %s116 = sphi 0, %s118
      %s119 = sphi 0, %s116
      %s120 = sphi 0, %s119
      %s136 = sphi 0, %s120
      %s142 = sphi 0, %s144
      %s145 = sphi 0, %s142
      %s146 = sphi 0, %s145
      %s162 = sphi 0, %s146
      %s166 = sphi 0, %s166
      %s168 = sphi 0, %s166
      %s169 = sphi 0, %s168
      %s183 = sphi 0, %s169
      %s187 = sphi 0, %s187
      %s189 = sphi 0, %s187
      %s190 = sphi 0, %s189
      %s204 = sphi 0, %s190
      %s212 = sphi 0, %s214
      %s215 = sphi 0, %s212
      %s216 = sphi 0, %s215
      %s232 = sphi 0, %s216
      %s240 = sphi 0, %s242
      %s243 = sphi 0, %s240
      %s244 = sphi 0, %s243
      %s260 = sphi 0, %s244
    $region4: #{tpu_custom_call.1} parent=1 // loop_header_branch
      %30 = sbr.rel (%p28) target = $region8
    $region5: #{tpu_custom_call.1} parent=1 // loop_body
      %s32 = ssub.s32 %s27, 1
      %s33 = ssub.s32 %s27, 2
      %s43 = sadd.s32 1, %s36
      %p44 = scmp.ge.s32.totalorder %s43, 1
      %s45 = scalar_select %p44, 0, %s43
      %s46 = sadd.s32 1, %s35
      %s47 = scalar_select %p44, %s46, %s35
      %p48 = scmp.ge.s32.totalorder %s47, 1
      %s49 = scalar_select %p48, 0, %s47
      %s50 = sadd.s32 1, %s34
      %s51 = scalar_select %p48, %s50, %s34
      %p52 = scmp.ge.s32.totalorder %s51, 2
      %s53 = scalar_select %p52, 0, %s51
      %s54 = ssub.s32 %s34, %s53
      %s55 = ssub.s32 %s35, %s49
      %s56 = sor.u32 %s54, %s55
      %s57 = ssub.s32 %s36, %s45
      %s58 = sor.u32 %s56, %s57
      %p59 = scmp.eq.s32.totalorder %s58, 0
      %s61 = sadd.s32 %s60, 1
      %s62 = scalar_select %p59, %s60, %s61
      %p65 = pneg %p59
      %p66 = scmp.eq.s32.totalorder %s27, 1
      %p67 = por %p65, %p66
      %p68 = scmp.ne.s32.totalorder %s60, %s63
      %p69 = scmp.eq.s32.totalorder %s27, 0
      %p70 = por %p68, %p69
      %p71 = scmp.ne.s32.totalorder %s60, %s63
      %p72 = scmp.eq.s32.totalorder %s32, 1
      %p73 = por %p71, %p72
      %p74 = scmp.ne.s32.totalorder %s63, %s64
      %p75 = scmp.eq.s32.totalorder %s32, 0
      %p76 = por %p74, %p75
      %p77 = scmp.ne.s32.totalorder %s63, %s64
      %p78 = scmp.eq.s32.totalorder %s33, 1
      %p79 = por %p77, %p78
      %p81 = scmp.ne.s32.totalorder %s64, %s80
      %p82 = scmp.eq.s32.totalorder %s33, 0
      %p83 = por %p81, %p82
      %s84 = ssub.s32 %s34, %s53
      %s85 = ssub.s32 %s35, %s49
      %s86 = sor.u32 %s84, %s85
      %s87 = ssub.s32 %s36, %s45
      %s88 = sor.u32 %s86, %s87
      %p89 = scmp.eq.s32.totalorder %s88, 0
      %s91 = sadd.s32 %s90, 1
      %s92 = scalar_select %p89, %s90, %s91
      %p95 = pneg %p89
      %p96 = scmp.eq.s32.totalorder %s27, 1
      %p97 = por %p95, %p96
      %p98 = scmp.ne.s32.totalorder %s90, %s93
      %p99 = scmp.eq.s32.totalorder %s27, 0
      %p100 = por %p98, %p99
      %p101 = scmp.ne.s32.totalorder %s90, %s93
      %p102 = scmp.eq.s32.totalorder %s32, 1
      %p103 = por %p101, %p102
      %p104 = scmp.ne.s32.totalorder %s93, %s94
      %p105 = scmp.eq.s32.totalorder %s32, 0
      %p106 = por %p104, %p105
      %p107 = scmp.ne.s32.totalorder %s93, %s94
      %p108 = scmp.eq.s32.totalorder %s33, 1
      %p109 = por %p107, %p108
      %p111 = scmp.ne.s32.totalorder %s94, %s110
      %p112 = scmp.eq.s32.totalorder %s33, 0
      %p113 = por %p111, %p112
      %s114 = ssub.s32 %s36, %s45
      %p115 = scmp.eq.s32.totalorder %s114, 0
      %s117 = sadd.s32 %s116, 1
      %s118 = scalar_select %p115, %s116, %s117
      %p121 = pneg %p115
      %p122 = scmp.eq.s32.totalorder %s27, 1
      %p123 = por %p121, %p122
      %p124 = scmp.ne.s32.totalorder %s116, %s119
      %p125 = scmp.eq.s32.totalorder %s27, 0
      %p126 = por %p124, %p125
      %p127 = scmp.ne.s32.totalorder %s116, %s119
      %p128 = scmp.eq.s32.totalorder %s32, 1
      %p129 = por %p127, %p128
      %p130 = scmp.ne.s32.totalorder %s119, %s120
      %p131 = scmp.eq.s32.totalorder %s32, 0
      %p132 = por %p130, %p131
      %p133 = scmp.ne.s32.totalorder %s119, %s120
      %p134 = scmp.eq.s32.totalorder %s33, 1
      %p135 = por %p133, %p134
      %p137 = scmp.ne.s32.totalorder %s120, %s136
      %p138 = scmp.eq.s32.totalorder %s33, 0
      %p139 = por %p137, %p138
      %s140 = ssub.s32 %s36, %s45
      %p141 = scmp.eq.s32.totalorder %s140, 0
      %s143 = sadd.s32 %s142, 1
      %s144 = scalar_select %p141, %s142, %s143
      %p147 = pneg %p141
      %p148 = scmp.eq.s32.totalorder %s27, 1
      %p149 = por %p147, %p148
      %p150 = scmp.ne.s32.totalorder %s142, %s145
      %p151 = scmp.eq.s32.totalorder %s27, 0
      %p152 = por %p150, %p151
      %p153 = scmp.ne.s32.totalorder %s142, %s145
      %p154 = scmp.eq.s32.totalorder %s32, 1
      %p155 = por %p153, %p154
      %p156 = scmp.ne.s32.totalorder %s145, %s146
      %p157 = scmp.eq.s32.totalorder %s32, 0
      %p158 = por %p156, %p157
      %p159 = scmp.ne.s32.totalorder %s145, %s146
      %p160 = scmp.eq.s32.totalorder %s33, 1
      %p161 = por %p159, %p160
      %p163 = scmp.ne.s32.totalorder %s146, %s162
      %p164 = scmp.eq.s32.totalorder %s33, 0
      %p165 = por %p163, %p164
      %s167 = sadd.s32 %s166, 1
      %p170 = scmp.eq.s32.totalorder %s27, 1
      %p171 = scmp.ne.s32.totalorder %s166, %s168
      %p172 = scmp.eq.s32.totalorder %s27, 0
      %p173 = por %p171, %p172
      %p174 = scmp.ne.s32.totalorder %s166, %s168
      %p175 = scmp.eq.s32.totalorder %s32, 1
      %p176 = por %p174, %p175
      %p177 = scmp.ne.s32.totalorder %s168, %s169
      %p178 = scmp.eq.s32.totalorder %s32, 0
      %p179 = por %p177, %p178
      %p180 = scmp.ne.s32.totalorder %s168, %s169
      %p181 = scmp.eq.s32.totalorder %s33, 1
      %p182 = por %p180, %p181
      %p184 = scmp.ne.s32.totalorder %s169, %s183
      %p185 = scmp.eq.s32.totalorder %s33, 0
      %p186 = por %p184, %p185
      %s188 = sadd.s32 %s187, 1
      %p191 = scmp.eq.s32.totalorder %s27, 1
      %p192 = scmp.ne.s32.totalorder %s187, %s189
      %p193 = scmp.eq.s32.totalorder %s27, 0
      %p194 = por %p192, %p193
      %p195 = scmp.ne.s32.totalorder %s187, %s189
      %p196 = scmp.eq.s32.totalorder %s32, 1
      %p197 = por %p195, %p196
      %p198 = scmp.ne.s32.totalorder %s189, %s190
      %p199 = scmp.eq.s32.totalorder %s32, 0
      %p200 = por %p198, %p199
      %p201 = scmp.ne.s32.totalorder %s189, %s190
      %p202 = scmp.eq.s32.totalorder %s33, 1
      %p203 = por %p201, %p202
      %p205 = scmp.ne.s32.totalorder %s190, %s204
      %p206 = scmp.eq.s32.totalorder %s33, 0
      %p207 = por %p205, %p206
      %s208 = ssub.s32 %s34, %s53
      %s209 = ssub.s32 %s35, %s49
      %s210 = sor.u32 %s208, %s209
      %p211 = scmp.eq.s32.totalorder %s210, 0
      %s213 = sadd.s32 %s212, 1
      %s214 = scalar_select %p211, %s212, %s213
      %p217 = pneg %p211
      %p218 = scmp.eq.s32.totalorder %s27, 1
      %p219 = por %p217, %p218
      %p220 = scmp.ne.s32.totalorder %s212, %s215
      %p221 = scmp.eq.s32.totalorder %s27, 0
      %p222 = por %p220, %p221
      %p223 = scmp.ne.s32.totalorder %s212, %s215
      %p224 = scmp.eq.s32.totalorder %s32, 1
      %p225 = por %p223, %p224
      %p226 = scmp.ne.s32.totalorder %s215, %s216
      %p227 = scmp.eq.s32.totalorder %s32, 0
      %p228 = por %p226, %p227
      %p229 = scmp.ne.s32.totalorder %s215, %s216
      %p230 = scmp.eq.s32.totalorder %s33, 1
      %p231 = por %p229, %p230
      %p233 = scmp.ne.s32.totalorder %s216, %s232
      %p234 = scmp.eq.s32.totalorder %s33, 0
      %p235 = por %p233, %p234
      %s236 = ssub.s32 %s34, %s53
      %s237 = ssub.s32 %s35, %s49
      %s238 = sor.u32 %s236, %s237
      %p239 = scmp.eq.s32.totalorder %s238, 0
      %s241 = sadd.s32 %s240, 1
      %s242 = scalar_select %p239, %s240, %s241
      %p245 = pneg %p239
      %p246 = scmp.eq.s32.totalorder %s27, 1
      %p247 = por %p245, %p246
      %p248 = scmp.ne.s32.totalorder %s240, %s243
      %p249 = scmp.eq.s32.totalorder %s27, 0
      %p250 = por %p248, %p249
      %p251 = scmp.ne.s32.totalorder %s240, %s243
      %p252 = scmp.eq.s32.totalorder %s32, 1
      %p253 = por %p251, %p252
      %p254 = scmp.ne.s32.totalorder %s243, %s244
      %p255 = scmp.eq.s32.totalorder %s32, 0
      %p256 = por %p254, %p255
      %p257 = scmp.ne.s32.totalorder %s243, %s244
      %p258 = scmp.eq.s32.totalorder %s33, 1
      %p259 = por %p257, %p258
      %p261 = scmp.ne.s32.totalorder %s244, %s260
      %p262 = scmp.eq.s32.totalorder %s33, 0
      %p263 = por %p261, %p262
      %p264 = scmp.le.s32.totalorder 1, %s27
      %p265 = scmp.lt.s32.totalorder %s27, 3
      %p266 = pnand %p264, %p265
      %p267 = pneg %p266
      // Predicated region
      $region9: #{tpu_custom_call.1} parent=5 // pred_check
        _
      $region10: #{tpu_custom_call.1} parent=5 // pred_check_branch
        %269 = sbr.rel (%p266) target = $region12
      $region11: #{tpu_custom_call.1} parent=5 // pred_region
        %s270 = ssub.s32 %s27, 1
        // Predicated region
        $region13: #{tpu_custom_call.1} parent=11 // pred_check
          %p271 = pneg %p132
        $region14: #{tpu_custom_call.1} parent=11 // pred_check_branch
          %273 = sbr.rel (%p271) target = $region16
        $region15: #{tpu_custom_call.1} parent=11 // pred_region
          %s274 = smul.u32 128, %s39
          %s276 = ssub.s32 32768, 32768
          %277 = vsyncadd [#allocation8], %s276
          %s278 = smul.addr %s274, 4
          %s279 = smul.addr %s278, 64
          %s280 = scalar_lea.hbm %s2, %s279
          %s281 = sshll.u32 [#allocation9], 4
          %s282 = int_to_ptr.vmem [resolvable:$true] %s281
          %287 = dma.hbm_to_vmem [thread:$0]  %s280, 32768, %s282, [#allocation8], 256, 256, 16
        $region16: #{tpu_custom_call.1} parent=11 // pred_fallthru
          _
        // Predicated region
        $region17: #{tpu_custom_call.1} parent=11 // pred_check
          %p288 = pneg %p158
        $region18: #{tpu_custom_call.1} parent=11 // pred_check_branch
          %290 = sbr.rel (%p288) target = $region20
        $region19: #{tpu_custom_call.1} parent=11 // pred_region
          %s291 = smul.u32 128, %s39
          %s293 = ssub.s32 32768, 32768
          %294 = vsyncadd [#allocation11], %s293
          %s295 = smul.addr %s291, 4
          %s296 = smul.addr %s295, 64
          %s297 = scalar_lea.hbm %s3, %s296
          %s298 = sshll.u32 [#allocation10], 4
          %s299 = int_to_ptr.vmem [resolvable:$true] %s298
          %304 = dma.hbm_to_vmem [thread:$0]  %s297, 32768, %s299, [#allocation11], 256, 256, 16
        $region20: #{tpu_custom_call.1} parent=11 // pred_fallthru
          _
        // Predicated region
        $region21: #{tpu_custom_call.1} parent=11 // pred_check
          %p305 = pneg %p179
        $region22: #{tpu_custom_call.1} parent=11 // pred_check_branch
          %307 = sbr.rel (%p305) target = $region24
        $region23: #{tpu_custom_call.1} parent=11 // pred_region
          _
        $region24: #{tpu_custom_call.1} parent=11 // pred_fallthru
          _
        // Predicated region
        $region25: #{tpu_custom_call.1} parent=11 // pred_check
          %p308 = pneg %p200
        $region26: #{tpu_custom_call.1} parent=11 // pred_check_branch
          %310 = sbr.rel (%p308) target = $region28
        $region27: #{tpu_custom_call.1} parent=11 // pred_region
          _
        $region28: #{tpu_custom_call.1} parent=11 // pred_fallthru
          _
      $region12: #{tpu_custom_call.1} parent=5 // pred_fallthru
        _
      %p311 = scmp.lt.s32.totalorder %s27, 2
      // Predicated region
      $region29: #{tpu_custom_call.1} parent=5 // pred_check
        %p312 = pneg %p311
      $region30: #{tpu_custom_call.1} parent=5 // pred_check_branch
        %314 = sbr.rel (%p312) target = $region32
      $region31: #{tpu_custom_call.1} parent=5 // pred_region
        // Predicated region
        $region33: #{tpu_custom_call.1} parent=31 // pred_check
          %p315 = pneg %p70
        $region34: #{tpu_custom_call.1} parent=31 // pred_check_branch
          %317 = sbr.rel (%p315) target = $region36
        $region35: #{tpu_custom_call.1} parent=31 // pred_region
          %s318 = sand.u32 %s60, 1
          %s319 = scalar_lea.sflag [#allocation5], %s318
          %s320 = sand.u32 %s60, 1
          %s321 = smul.addr %s320, 64
          %s322 = scalar_lea.vmem [#allocation4], %s321
          %s323 = smul.u32 2, %s35
          %s324 = smul.u32 8, %s36
          %s326 = ssub.s32 1024, 1024
          %327 = vsyncadd %s319, %s326
          %s328 = smul.addr %s323, 8
          %s329 = sadd.s32 %s324, %s328
          %s330 = smul.addr %s34, 16
          %s331 = sadd.s32 %s329, %s330
          %s332 = smul.addr %s331, 64
          %s333 = scalar_lea.hbm %s0, %s332
          %s334 = sshll.u32 %s322, 4
          %s335 = int_to_ptr.vmem [resolvable:$true] %s334
          %340 = dma.hbm_to_vmem [thread:$0]  %s333, 1024, %s335, %s319, 512, 512, 32
        $region36: #{tpu_custom_call.1} parent=31 // pred_fallthru
          _
        // Predicated region
        $region37: #{tpu_custom_call.1} parent=31 // pred_check
          %p341 = pneg %p100
        $region38: #{tpu_custom_call.1} parent=31 // pred_check_branch
          %343 = sbr.rel (%p341) target = $region40
        $region39: #{tpu_custom_call.1} parent=31 // pred_region
          %s344 = sand.u32 %s27, 1
          %s345 = scalar_lea.sflag [#allocation8], %s344
          %s346 = sand.u32 %s90, 1
          %s347 = smul.addr %s346, 64
          %s348 = scalar_lea.vmem [#allocation7], %s347
          %s349 = smul.u32 2, %s35
          %s350 = smul.u32 8, %s36
          %s352 = ssub.s32 1024, 1024
          %353 = vsyncadd %s345, %s352
          %s354 = smul.addr %s349, 8
          %s355 = sadd.s32 %s350, %s354
          %s356 = smul.addr %s34, 16
          %s357 = sadd.s32 %s355, %s356
          %s358 = smul.addr %s357, 64
          %s359 = scalar_lea.hbm %s1, %s358
          %s360 = sshll.u32 %s348, 4
          %s361 = int_to_ptr.vmem [resolvable:$true] %s360
          %366 = dma.hbm_to_vmem [thread:$0]  %s359, 1024, %s361, %s345, 512, 512, 32
        $region40: #{tpu_custom_call.1} parent=31 // pred_fallthru
          _
      $region32: #{tpu_custom_call.1} parent=5 // pred_fallthru
        _
      %p367 = scmp.le.s32.totalorder 1, %s27
      %p368 = scmp.lt.s32.totalorder %s27, 3
      %p369 = pnand %p367, %p368
      %p370 = pneg %p369
      // Predicated region
      $region41: #{tpu_custom_call.1} parent=5 // pred_check
        _
      $region42: #{tpu_custom_call.1} parent=5 // pred_check_branch
        %372 = sbr.rel (%p369) target = $region44
      $region43: #{tpu_custom_call.1} parent=5 // pred_region
        %s373 = ssub.s32 %s27, 1
        %s374 = sand.u32 %s63, 1
        %s375 = scalar_lea.sflag [#allocation5], %s374
        %s376 = sand.u32 %s63, 1
        %s377 = smul.addr %s376, 64
        %s378 = scalar_lea.vmem [#allocation4], %s377
        // Predicated region
        $region45: #{tpu_custom_call.1} parent=43 // pred_check
          %p379 = pneg %p76
        $region46: #{tpu_custom_call.1} parent=43 // pred_check_branch
          %381 = sbr.rel (%p379) target = $region48
        $region47: #{tpu_custom_call.1} parent=43 // pred_region
          %382 = dma.done %s375, 1024
        $region48: #{tpu_custom_call.1} parent=43 // pred_fallthru
          _
        %s383 = sand.u32 %s32, 1
        %s384 = scalar_lea.sflag [#allocation8], %s383
        %s385 = sand.u32 %s93, 1
        %s386 = smul.addr %s385, 64
        %s387 = scalar_lea.vmem [#allocation7], %s386
        // Predicated region
        $region49: #{tpu_custom_call.1} parent=43 // pred_check
          %p388 = pneg %p106
        $region50: #{tpu_custom_call.1} parent=43 // pred_check_branch
          %390 = sbr.rel (%p388) target = $region52
        $region51: #{tpu_custom_call.1} parent=43 // pred_region
          %391 = dma.done %s384, 1024
        $region52: #{tpu_custom_call.1} parent=43 // pred_fallthru
          _
        // Predicated region
        $region53: #{tpu_custom_call.1} parent=43 // pred_check
          %p392 = pneg %p132
        $region54: #{tpu_custom_call.1} parent=43 // pred_check_branch
          %394 = sbr.rel (%p392) target = $region56
        $region55: #{tpu_custom_call.1} parent=43 // pred_region
          %395 = dma.done [#allocation8], 32768
        $region56: #{tpu_custom_call.1} parent=43 // pred_fallthru
          _
        // Predicated region
        $region57: #{tpu_custom_call.1} parent=43 // pred_check
          %p396 = pneg %p158
        $region58: #{tpu_custom_call.1} parent=43 // pred_check_branch
          %398 = sbr.rel (%p396) target = $region60
        $region59: #{tpu_custom_call.1} parent=43 // pred_region
          %399 = dma.done [#allocation11], 32768
        $region60: #{tpu_custom_call.1} parent=43 // pred_fallthru
          _
        %s400 = sand.u32 %s63, 1
        %s401 = scalar_lea.sflag [#allocation5], %s400
        %s402 = sand.u32 %s63, 1
        %s403 = smul.addr %s402, 64
        %s404 = scalar_lea.vmem [#allocation4], %s403
        %p405 = pneg %p76
        %p406 = pneg %p73
        %s407 = sand.u32 %s32, 1
        %s408 = scalar_lea.sflag [#allocation8], %s407
        %s409 = sand.u32 %s93, 1
        %s410 = smul.addr %s409, 64
        %s411 = scalar_lea.vmem [#allocation7], %s410
        %p412 = pneg %p106
        %p413 = pneg %p103
        %p414 = pneg %p132
        %p415 = pneg %p129
        %p416 = pneg %p158
        %p417 = pneg %p155
        %p418 = pneg %p179
        %p419 = pneg %p176
        %p420 = pneg %p200
        %p421 = pneg %p197
        %p422 = pneg %p228
        %p423 = pneg %p225
        %s424 = sand.u32 %s215, 1
        %s425 = scalar_lea.sflag [#allocation6], %s424
        %s426 = sand.u32 %s215, 1
        %s427 = smul.addr %s426, 64
        %s428 = scalar_lea.vmem [#allocation12], %s427
        %p429 = pneg %p256
        %p430 = pneg %p253
        %s431 = sand.u32 %s243, 1
        %s432 = scalar_lea.sflag [#allocation14], %s431
        %s433 = sand.u32 %s243, 1
        %s434 = smul.addr %s433, 64
        %s435 = scalar_lea.vmem [#allocation13], %s434
        %s436 = smul.u32 2, %s38
        %s437 = smul.u32 8, %s39
        %s438 = smul.u32 2, %s38
        %s439 = smul.u32 8, %s39
        %s440 = smul.u32 128, %s39
        %s441 = smul.u32 128, %s39
        %s442 = smul.u32 2, %s38
        %s443 = smul.u32 2, %s38
        %p444 = scmp.eq.s32.totalorder %s39, 0
        // Predicated region
        $region61: #{tpu_custom_call.1} parent=43 // pred_check
          %p445 = pneg %p444
        $region62: #{tpu_custom_call.1} parent=43 // pred_check_branch
          %447 = sbr.rel (%p445) target = $region64
        $region63: #{tpu_custom_call.1} parent=43 // pred_region
          %448 = vst [vmem:[#allocation2] sm:$0xff] 0.0
          %449 = vst [vmem:[#allocation2 + $0x8] sm:$0xff] 0.0
          %450 = vst [vmem:[#allocation2 + $0x10] sm:$0xff] 0.0
          %451 = vst [vmem:[#allocation2 + $0x18] sm:$0xff] 0.0
          %452 = vst [vmem:[#allocation2 + $0x20] sm:$0xff] 0.0
          %453 = vst [vmem:[#allocation2 + $0x28] sm:$0xff] 0.0
          %454 = vst [vmem:[#allocation2 + $0x30] sm:$0xff] 0.0
          %455 = vst [vmem:[#allocation2 + $0x38] sm:$0xff] 0.0
          %456 = vst [vmem:[#allocation3] sm:$0xff] 0.0
          %457 = vst [vmem:[#allocation3 + $0x8] sm:$0xff] 0.0
          %458 = vst [vmem:[#allocation3 + $0x10] sm:$0xff] 0.0
          %459 = vst [vmem:[#allocation3 + $0x18] sm:$0xff] 0.0
          %460 = vst [vmem:[#allocation3 + $0x20] sm:$0xff] 0.0
          %461 = vst [vmem:[#allocation3 + $0x28] sm:$0xff] 0.0
          %462 = vst [vmem:[#allocation3 + $0x30] sm:$0xff] 0.0
          %463 = vst [vmem:[#allocation3 + $0x38] sm:$0xff] 0.0
        $region64: #{tpu_custom_call.1} parent=43 // pred_fallthru
          _
        %v464 = vld [vmem:[#allocation2] sm:$0xff]
        %v465 = vld [vmem:[#allocation2 + $0x8] sm:$0xff]
        %v466 = vld [vmem:[#allocation2 + $0x10] sm:$0xff]
        %v467 = vld [vmem:[#allocation2 + $0x18] sm:$0xff]
        %v468 = vld [vmem:[#allocation2 + $0x20] sm:$0xff]
        %v469 = vld [vmem:[#allocation2 + $0x28] sm:$0xff]
        %v470 = vld [vmem:[#allocation2 + $0x30] sm:$0xff]
        %v471 = vld [vmem:[#allocation2 + $0x38] sm:$0xff]
        %v472 = vld [vmem:[%s378] sm:$0xff]
        %v473 = vld [vmem:[%s378 + $0x8] sm:$0xff]
        %v474 = vld [vmem:[%s378 + $0x10] sm:$0xff]
        %v475 = vld [vmem:[%s378 + $0x18] sm:$0xff]
        %v476 = vld [vmem:[%s378 + $0x20] sm:$0xff]
        %v477 = vld [vmem:[%s378 + $0x28] sm:$0xff]
        %v478 = vld [vmem:[%s378 + $0x30] sm:$0xff]
        %v479 = vld [vmem:[%s378 + $0x38] sm:$0xff]
        %v480 = vld [vmem:[#allocation9] sm:$0xff]
        %v481 = vld [vmem:[#allocation9 + $0x8] sm:$0xff]
        %v482 = vld [vmem:[#allocation9 + $0x10] sm:$0xff]
        %v483 = vld [vmem:[#allocation9 + $0x18] sm:$0xff]
        %v484 = vld [vmem:[#allocation9 + $0x20] sm:$0xff]
        %v485 = vld [vmem:[#allocation9 + $0x28] sm:$0xff]
        %v486 = vld [vmem:[#allocation9 + $0x30] sm:$0xff]
        %v487 = vld [vmem:[#allocation9 + $0x38] sm:$0xff]
        %v488 = vld [vmem:[#allocation9 + $0x40] sm:$0xff]
        %v489 = vld [vmem:[#allocation9 + $0x48] sm:$0xff]
        %v490 = vld [vmem:[#allocation9 + $0x50] sm:$0xff]
        %v491 = vld [vmem:[#allocation9 + $0x58] sm:$0xff]
        %v492 = vld [vmem:[#allocation9 + $0x60] sm:$0xff]
        %v493 = vld [vmem:[#allocation9 + $0x68] sm:$0xff]
        %v494 = vld [vmem:[#allocation9 + $0x70] sm:$0xff]
        %v495 = vld [vmem:[#allocation9 + $0x78] sm:$0xff]
        %v496 = vld [vmem:[#allocation9 + $0x80] sm:$0xff]
        %v497 = vld [vmem:[#allocation9 + $0x88] sm:$0xff]
        %v498 = vld [vmem:[#allocation9 + $0x90] sm:$0xff]
        %v499 = vld [vmem:[#allocation9 + $0x98] sm:$0xff]
        %v500 = vld [vmem:[#allocation9 + $0xa0] sm:$0xff]
        %v501 = vld [vmem:[#allocation9 + $0xa8] sm:$0xff]
        %v502 = vld [vmem:[#allocation9 + $0xb0] sm:$0xff]
        %v503 = vld [vmem:[#allocation9 + $0xb8] sm:$0xff]
        %v504 = vld [vmem:[#allocation9 + $0xc0] sm:$0xff]
        %v505 = vld [vmem:[#allocation9 + $0xc8] sm:$0xff]
        %v506 = vld [vmem:[#allocation9 + $0xd0] sm:$0xff]
        %v507 = vld [vmem:[#allocation9 + $0xd8] sm:$0xff]
        %v508 = vld [vmem:[#allocation9 + $0xe0] sm:$0xff]
        %v509 = vld [vmem:[#allocation9 + $0xe8] sm:$0xff]
        %v510 = vld [vmem:[#allocation9 + $0xf0] sm:$0xff]
        %v511 = vld [vmem:[#allocation9 + $0xf8] sm:$0xff]
        %v512 = vld [vmem:[#allocation9 + $0x100] sm:$0xff]
        %v513 = vld [vmem:[#allocation9 + $0x108] sm:$0xff]
        %v514 = vld [vmem:[#allocation9 + $0x110] sm:$0xff]
        %v515 = vld [vmem:[#allocation9 + $0x118] sm:$0xff]
        %v516 = vld [vmem:[#allocation9 + $0x120] sm:$0xff]
        %v517 = vld [vmem:[#allocation9 + $0x128] sm:$0xff]
        %v518 = vld [vmem:[#allocation9 + $0x130] sm:$0xff]
        %v519 = vld [vmem:[#allocation9 + $0x138] sm:$0xff]
        %v520 = vld [vmem:[#allocation9 + $0x140] sm:$0xff]
        %v521 = vld [vmem:[#allocation9 + $0x148] sm:$0xff]
        %v522 = vld [vmem:[#allocation9 + $0x150] sm:$0xff]
        %v523 = vld [vmem:[#allocation9 + $0x158] sm:$0xff]
        %v524 = vld [vmem:[#allocation9 + $0x160] sm:$0xff]
        %v525 = vld [vmem:[#allocation9 + $0x168] sm:$0xff]
        %v526 = vld [vmem:[#allocation9 + $0x170] sm:$0xff]
        %v527 = vld [vmem:[#allocation9 + $0x178] sm:$0xff]
        %v528 = vld [vmem:[#allocation9 + $0x180] sm:$0xff]
        %v529 = vld [vmem:[#allocation9 + $0x188] sm:$0xff]
        %v530 = vld [vmem:[#allocation9 + $0x190] sm:$0xff]
        %v531 = vld [vmem:[#allocation9 + $0x198] sm:$0xff]
        %v532 = vld [vmem:[#allocation9 + $0x1a0] sm:$0xff]
        %v533 = vld [vmem:[#allocation9 + $0x1a8] sm:$0xff]
        %v534 = vld [vmem:[#allocation9 + $0x1b0] sm:$0xff]
        %v535 = vld [vmem:[#allocation9 + $0x1b8] sm:$0xff]
        %v536 = vld [vmem:[#allocation9 + $0x1c0] sm:$0xff]
        %v537 = vld [vmem:[#allocation9 + $0x1c8] sm:$0xff]
        %v538 = vld [vmem:[#allocation9 + $0x1d0] sm:$0xff]
        %v539 = vld [vmem:[#allocation9 + $0x1d8] sm:$0xff]
        %v540 = vld [vmem:[#allocation9 + $0x1e0] sm:$0xff]
        %v541 = vld [vmem:[#allocation9 + $0x1e8] sm:$0xff]
        %v542 = vld [vmem:[#allocation9 + $0x1f0] sm:$0xff]
        %v543 = vld [vmem:[#allocation9 + $0x1f8] sm:$0xff]
        %v544 = vld [vmem:[#allocation9 + $0x200] sm:$0xff]
        %v545 = vld [vmem:[#allocation9 + $0x208] sm:$0xff]
        %v546 = vld [vmem:[#allocation9 + $0x210] sm:$0xff]
        %v547 = vld [vmem:[#allocation9 + $0x218] sm:$0xff]
        %v548 = vld [vmem:[#allocation9 + $0x220] sm:$0xff]
        %v549 = vld [vmem:[#allocation9 + $0x228] sm:$0xff]
        %v550 = vld [vmem:[#allocation9 + $0x230] sm:$0xff]
        %v551 = vld [vmem:[#allocation9 + $0x238] sm:$0xff]
        %v552 = vld [vmem:[#allocation9 + $0x240] sm:$0xff]
        %v553 = vld [vmem:[#allocation9 + $0x248] sm:$0xff]
        %v554 = vld [vmem:[#allocation9 + $0x250] sm:$0xff]
        %v555 = vld [vmem:[#allocation9 + $0x258] sm:$0xff]
        %v556 = vld [vmem:[#allocation9 + $0x260] sm:$0xff]
        %v557 = vld [vmem:[#allocation9 + $0x268] sm:$0xff]
        %v558 = vld [vmem:[#allocation9 + $0x270] sm:$0xff]
        %v559 = vld [vmem:[#allocation9 + $0x278] sm:$0xff]
        %v560 = vld [vmem:[#allocation9 + $0x280] sm:$0xff]
        %v561 = vld [vmem:[#allocation9 + $0x288] sm:$0xff]
        %v562 = vld [vmem:[#allocation9 + $0x290] sm:$0xff]
        %v563 = vld [vmem:[#allocation9 + $0x298] sm:$0xff]
        %v564 = vld [vmem:[#allocation9 + $0x2a0] sm:$0xff]
        %v565 = vld [vmem:[#allocation9 + $0x2a8] sm:$0xff]
        %v566 = vld [vmem:[#allocation9 + $0x2b0] sm:$0xff]
        %v567 = vld [vmem:[#allocation9 + $0x2b8] sm:$0xff]
        %v568 = vld [vmem:[#allocation9 + $0x2c0] sm:$0xff]
        %v569 = vld [vmem:[#allocation9 + $0x2c8] sm:$0xff]
        %v570 = vld [vmem:[#allocation9 + $0x2d0] sm:$0xff]
        %v571 = vld [vmem:[#allocation9 + $0x2d8] sm:$0xff]
        %v572 = vld [vmem:[#allocation9 + $0x2e0] sm:$0xff]
        %v573 = vld [vmem:[#allocation9 + $0x2e8] sm:$0xff]
        %v574 = vld [vmem:[#allocation9 + $0x2f0] sm:$0xff]
        %v575 = vld [vmem:[#allocation9 + $0x2f8] sm:$0xff]
        %v576 = vld [vmem:[#allocation9 + $0x300] sm:$0xff]
        %v577 = vld [vmem:[#allocation9 + $0x308] sm:$0xff]
        %v578 = vld [vmem:[#allocation9 + $0x310] sm:$0xff]
        %v579 = vld [vmem:[#allocation9 + $0x318] sm:$0xff]
        %v580 = vld [vmem:[#allocation9 + $0x320] sm:$0xff]
        %v581 = vld [vmem:[#allocation9 + $0x328] sm:$0xff]
        %v582 = vld [vmem:[#allocation9 + $0x330] sm:$0xff]
        %v583 = vld [vmem:[#allocation9 + $0x338] sm:$0xff]
        %v584 = vld [vmem:[#allocation9 + $0x340] sm:$0xff]
        %v585 = vld [vmem:[#allocation9 + $0x348] sm:$0xff]
        %v586 = vld [vmem:[#allocation9 + $0x350] sm:$0xff]
        %v587 = vld [vmem:[#allocation9 + $0x358] sm:$0xff]
        %v588 = vld [vmem:[#allocation9 + $0x360] sm:$0xff]
        %v589 = vld [vmem:[#allocation9 + $0x368] sm:$0xff]
        %v590 = vld [vmem:[#allocation9 + $0x370] sm:$0xff]
        %v591 = vld [vmem:[#allocation9 + $0x378] sm:$0xff]
        %v592 = vld [vmem:[#allocation9 + $0x380] sm:$0xff]
        %v593 = vld [vmem:[#allocation9 + $0x388] sm:$0xff]
        %v594 = vld [vmem:[#allocation9 + $0x390] sm:$0xff]
        %v595 = vld [vmem:[#allocation9 + $0x398] sm:$0xff]
        %v596 = vld [vmem:[#allocation9 + $0x3a0] sm:$0xff]
        %v597 = vld [vmem:[#allocation9 + $0x3a8] sm:$0xff]
        %v598 = vld [vmem:[#allocation9 + $0x3b0] sm:$0xff]
        %v599 = vld [vmem:[#allocation9 + $0x3b8] sm:$0xff]
        %v600 = vld [vmem:[#allocation9 + $0x3c0] sm:$0xff]
        %v601 = vld [vmem:[#allocation9 + $0x3c8] sm:$0xff]
        %v602 = vld [vmem:[#allocation9 + $0x3d0] sm:$0xff]
        %v603 = vld [vmem:[#allocation9 + $0x3d8] sm:$0xff]
        %v604 = vld [vmem:[#allocation9 + $0x3e0] sm:$0xff]
        %v605 = vld [vmem:[#allocation9 + $0x3e8] sm:$0xff]
        %v606 = vld [vmem:[#allocation9 + $0x3f0] sm:$0xff]
        %v607 = vld [vmem:[#allocation9 + $0x3f8] sm:$0xff]
        %v608 = vld [vmem:[#allocation9 + $0x400] sm:$0xff]
        %v609 = vld [vmem:[#allocation9 + $0x408] sm:$0xff]
        %v610 = vld [vmem:[#allocation9 + $0x410] sm:$0xff]
        %v611 = vld [vmem:[#allocation9 + $0x418] sm:$0xff]
        %v612 = vld [vmem:[#allocation9 + $0x420] sm:$0xff]
        %v613 = vld [vmem:[#allocation9 + $0x428] sm:$0xff]
        %v614 = vld [vmem:[#allocation9 + $0x430] sm:$0xff]
        %v615 = vld [vmem:[#allocation9 + $0x438] sm:$0xff]
        %v616 = vld [vmem:[#allocation9 + $0x440] sm:$0xff]
        %v617 = vld [vmem:[#allocation9 + $0x448] sm:$0xff]
        %v618 = vld [vmem:[#allocation9 + $0x450] sm:$0xff]
        %v619 = vld [vmem:[#allocation9 + $0x458] sm:$0xff]
        %v620 = vld [vmem:[#allocation9 + $0x460] sm:$0xff]
        %v621 = vld [vmem:[#allocation9 + $0x468] sm:$0xff]
        %v622 = vld [vmem:[#allocation9 + $0x470] sm:$0xff]
        %v623 = vld [vmem:[#allocation9 + $0x478] sm:$0xff]
        %v624 = vld [vmem:[#allocation9 + $0x480] sm:$0xff]
        %v625 = vld [vmem:[#allocation9 + $0x488] sm:$0xff]
        %v626 = vld [vmem:[#allocation9 + $0x490] sm:$0xff]
        %v627 = vld [vmem:[#allocation9 + $0x498] sm:$0xff]
        %v628 = vld [vmem:[#allocation9 + $0x4a0] sm:$0xff]
        %v629 = vld [vmem:[#allocation9 + $0x4a8] sm:$0xff]
        %v630 = vld [vmem:[#allocation9 + $0x4b0] sm:$0xff]
        %v631 = vld [vmem:[#allocation9 + $0x4b8] sm:$0xff]
        %v632 = vld [vmem:[#allocation9 + $0x4c0] sm:$0xff]
        %v633 = vld [vmem:[#allocation9 + $0x4c8] sm:$0xff]
        %v634 = vld [vmem:[#allocation9 + $0x4d0] sm:$0xff]
        %v635 = vld [vmem:[#allocation9 + $0x4d8] sm:$0xff]
        %v636 = vld [vmem:[#allocation9 + $0x4e0] sm:$0xff]
        %v637 = vld [vmem:[#allocation9 + $0x4e8] sm:$0xff]
        %v638 = vld [vmem:[#allocation9 + $0x4f0] sm:$0xff]
        %v639 = vld [vmem:[#allocation9 + $0x4f8] sm:$0xff]
        %v640 = vld [vmem:[#allocation9 + $0x500] sm:$0xff]
        %v641 = vld [vmem:[#allocation9 + $0x508] sm:$0xff]
        %v642 = vld [vmem:[#allocation9 + $0x510] sm:$0xff]
        %v643 = vld [vmem:[#allocation9 + $0x518] sm:$0xff]
        %v644 = vld [vmem:[#allocation9 + $0x520] sm:$0xff]
        %v645 = vld [vmem:[#allocation9 + $0x528] sm:$0xff]
        %v646 = vld [vmem:[#allocation9 + $0x530] sm:$0xff]
        %v647 = vld [vmem:[#allocation9 + $0x538] sm:$0xff]
        %v648 = vld [vmem:[#allocation9 + $0x540] sm:$0xff]
        %v649 = vld [vmem:[#allocation9 + $0x548] sm:$0xff]
        %v650 = vld [vmem:[#allocation9 + $0x550] sm:$0xff]
        %v651 = vld [vmem:[#allocation9 + $0x558] sm:$0xff]
        %v652 = vld [vmem:[#allocation9 + $0x560] sm:$0xff]
        %v653 = vld [vmem:[#allocation9 + $0x568] sm:$0xff]
        %v654 = vld [vmem:[#allocation9 + $0x570] sm:$0xff]
        %v655 = vld [vmem:[#allocation9 + $0x578] sm:$0xff]
        %v656 = vld [vmem:[#allocation9 + $0x580] sm:$0xff]
        %v657 = vld [vmem:[#allocation9 + $0x588] sm:$0xff]
        %v658 = vld [vmem:[#allocation9 + $0x590] sm:$0xff]
        %v659 = vld [vmem:[#allocation9 + $0x598] sm:$0xff]
        %v660 = vld [vmem:[#allocation9 + $0x5a0] sm:$0xff]
        %v661 = vld [vmem:[#allocation9 + $0x5a8] sm:$0xff]
        %v662 = vld [vmem:[#allocation9 + $0x5b0] sm:$0xff]
        %v663 = vld [vmem:[#allocation9 + $0x5b8] sm:$0xff]
        %v664 = vld [vmem:[#allocation9 + $0x5c0] sm:$0xff]
        %v665 = vld [vmem:[#allocation9 + $0x5c8] sm:$0xff]
        %v666 = vld [vmem:[#allocation9 + $0x5d0] sm:$0xff]
        %v667 = vld [vmem:[#allocation9 + $0x5d8] sm:$0xff]
        %v668 = vld [vmem:[#allocation9 + $0x5e0] sm:$0xff]
        %v669 = vld [vmem:[#allocation9 + $0x5e8] sm:$0xff]
        %v670 = vld [vmem:[#allocation9 + $0x5f0] sm:$0xff]
        %v671 = vld [vmem:[#allocation9 + $0x5f8] sm:$0xff]
        %v672 = vld [vmem:[#allocation9 + $0x600] sm:$0xff]
        %v673 = vld [vmem:[#allocation9 + $0x608] sm:$0xff]
        %v674 = vld [vmem:[#allocation9 + $0x610] sm:$0xff]
        %v675 = vld [vmem:[#allocation9 + $0x618] sm:$0xff]
        %v676 = vld [vmem:[#allocation9 + $0x620] sm:$0xff]
        %v677 = vld [vmem:[#allocation9 + $0x628] sm:$0xff]
        %v678 = vld [vmem:[#allocation9 + $0x630] sm:$0xff]
        %v679 = vld [vmem:[#allocation9 + $0x638] sm:$0xff]
        %v680 = vld [vmem:[#allocation9 + $0x640] sm:$0xff]
        %v681 = vld [vmem:[#allocation9 + $0x648] sm:$0xff]
        %v682 = vld [vmem:[#allocation9 + $0x650] sm:$0xff]
        %v683 = vld [vmem:[#allocation9 + $0x658] sm:$0xff]
        %v684 = vld [vmem:[#allocation9 + $0x660] sm:$0xff]
        %v685 = vld [vmem:[#allocation9 + $0x668] sm:$0xff]
        %v686 = vld [vmem:[#allocation9 + $0x670] sm:$0xff]
        %v687 = vld [vmem:[#allocation9 + $0x678] sm:$0xff]
        %v688 = vld [vmem:[#allocation9 + $0x680] sm:$0xff]
        %v689 = vld [vmem:[#allocation9 + $0x688] sm:$0xff]
        %v690 = vld [vmem:[#allocation9 + $0x690] sm:$0xff]
        %v691 = vld [vmem:[#allocation9 + $0x698] sm:$0xff]
        %v692 = vld [vmem:[#allocation9 + $0x6a0] sm:$0xff]
        %v693 = vld [vmem:[#allocation9 + $0x6a8] sm:$0xff]
        %v694 = vld [vmem:[#allocation9 + $0x6b0] sm:$0xff]
        %v695 = vld [vmem:[#allocation9 + $0x6b8] sm:$0xff]
        %v696 = vld [vmem:[#allocation9 + $0x6c0] sm:$0xff]
        %v697 = vld [vmem:[#allocation9 + $0x6c8] sm:$0xff]
        %v698 = vld [vmem:[#allocation9 + $0x6d0] sm:$0xff]
        %v699 = vld [vmem:[#allocation9 + $0x6d8] sm:$0xff]
        %v700 = vld [vmem:[#allocation9 + $0x6e0] sm:$0xff]
        %v701 = vld [vmem:[#allocation9 + $0x6e8] sm:$0xff]
        %v702 = vld [vmem:[#allocation9 + $0x6f0] sm:$0xff]
        %v703 = vld [vmem:[#allocation9 + $0x6f8] sm:$0xff]
        %v704 = vld [vmem:[#allocation9 + $0x700] sm:$0xff]
        %v705 = vld [vmem:[#allocation9 + $0x708] sm:$0xff]
        %v706 = vld [vmem:[#allocation9 + $0x710] sm:$0xff]
        %v707 = vld [vmem:[#allocation9 + $0x718] sm:$0xff]
        %v708 = vld [vmem:[#allocation9 + $0x720] sm:$0xff]
        %v709 = vld [vmem:[#allocation9 + $0x728] sm:$0xff]
        %v710 = vld [vmem:[#allocation9 + $0x730] sm:$0xff]
        %v711 = vld [vmem:[#allocation9 + $0x738] sm:$0xff]
        %v712 = vld [vmem:[#allocation9 + $0x740] sm:$0xff]
        %v713 = vld [vmem:[#allocation9 + $0x748] sm:$0xff]
        %v714 = vld [vmem:[#allocation9 + $0x750] sm:$0xff]
        %v715 = vld [vmem:[#allocation9 + $0x758] sm:$0xff]
        %v716 = vld [vmem:[#allocation9 + $0x760] sm:$0xff]
        %v717 = vld [vmem:[#allocation9 + $0x768] sm:$0xff]
        %v718 = vld [vmem:[#allocation9 + $0x770] sm:$0xff]
        %v719 = vld [vmem:[#allocation9 + $0x778] sm:$0xff]
        %v720 = vld [vmem:[#allocation9 + $0x780] sm:$0xff]
        %v721 = vld [vmem:[#allocation9 + $0x788] sm:$0xff]
        %v722 = vld [vmem:[#allocation9 + $0x790] sm:$0xff]
        %v723 = vld [vmem:[#allocation9 + $0x798] sm:$0xff]
        %v724 = vld [vmem:[#allocation9 + $0x7a0] sm:$0xff]
        %v725 = vld [vmem:[#allocation9 + $0x7a8] sm:$0xff]
        %v726 = vld [vmem:[#allocation9 + $0x7b0] sm:$0xff]
        %v727 = vld [vmem:[#allocation9 + $0x7b8] sm:$0xff]
        %v728 = vld [vmem:[#allocation9 + $0x7c0] sm:$0xff]
        %v729 = vld [vmem:[#allocation9 + $0x7c8] sm:$0xff]
        %v730 = vld [vmem:[#allocation9 + $0x7d0] sm:$0xff]
        %v731 = vld [vmem:[#allocation9 + $0x7d8] sm:$0xff]
        %v732 = vld [vmem:[#allocation9 + $0x7e0] sm:$0xff]
        %v733 = vld [vmem:[#allocation9 + $0x7e8] sm:$0xff]
        %v734 = vld [vmem:[#allocation9 + $0x7f0] sm:$0xff]
        %v735 = vld [vmem:[#allocation9 + $0x7f8] sm:$0xff]
        %v744 = vunpack.c.l.b16 %v472
        %v745 = vunpack.c.h.b16 %v472
        %v746 = vunpack.c.l.b16 %v473
        %v747 = vunpack.c.h.b16 %v473
        %v748 = vunpack.c.l.b16 %v474
        %v749 = vunpack.c.h.b16 %v474
        %v750 = vunpack.c.l.b16 %v475
        %v751 = vunpack.c.h.b16 %v475
        %v752 = vunpack.c.l.b16 %v476
        %v753 = vunpack.c.h.b16 %v476
        %v754 = vunpack.c.l.b16 %v477
        %v755 = vunpack.c.h.b16 %v477
        %v756 = vunpack.c.l.b16 %v478
        %v757 = vunpack.c.h.b16 %v478
        %v758 = vunpack.c.l.b16 %v479
        %v759 = vunpack.c.h.b16 %v479
        %v760 = vpack.c.b16 %v752, %v744
        %v761 = vpack.c.b16 %v753, %v745
        %v762 = vpack.c.b16 %v754, %v746
        %v763 = vpack.c.b16 %v755, %v747
        %v764 = vpack.c.b16 %v756, %v748
        %v765 = vpack.c.b16 %v757, %v749
        %v766 = vpack.c.b16 %v758, %v750
        %v767 = vpack.c.b16 %v759, %v751
        %v1032 = vunpack.c.l.b16 %v480
        %v1033 = vunpack.c.h.b16 %v480
        %v1034 = vunpack.c.l.b16 %v481
        %v1035 = vunpack.c.h.b16 %v481
        %v1036 = vunpack.c.l.b16 %v482
        %v1037 = vunpack.c.h.b16 %v482
        %v1038 = vunpack.c.l.b16 %v483
        %v1039 = vunpack.c.h.b16 %v483
        %v1040 = vunpack.c.l.b16 %v484
        %v1041 = vunpack.c.h.b16 %v484
        %v1042 = vunpack.c.l.b16 %v485
        %v1043 = vunpack.c.h.b16 %v485
        %v1044 = vunpack.c.l.b16 %v486
        %v1045 = vunpack.c.h.b16 %v486
        %v1046 = vunpack.c.l.b16 %v487
        %v1047 = vunpack.c.h.b16 %v487
        %v1048 = vunpack.c.l.b16 %v488
        %v1049 = vunpack.c.h.b16 %v488
        %v1050 = vunpack.c.l.b16 %v489
        %v1051 = vunpack.c.h.b16 %v489
        %v1052 = vunpack.c.l.b16 %v490
        %v1053 = vunpack.c.h.b16 %v490
        %v1054 = vunpack.c.l.b16 %v491
        %v1055 = vunpack.c.h.b16 %v491
        %v1056 = vunpack.c.l.b16 %v492
        %v1057 = vunpack.c.h.b16 %v492
        %v1058 = vunpack.c.l.b16 %v493
        %v1059 = vunpack.c.h.b16 %v493
        %v1060 = vunpack.c.l.b16 %v494
        %v1061 = vunpack.c.h.b16 %v494
        %v1062 = vunpack.c.l.b16 %v495
        %v1063 = vunpack.c.h.b16 %v495
        %v1064 = vunpack.c.l.b16 %v496
        %v1065 = vunpack.c.h.b16 %v496
        %v1066 = vunpack.c.l.b16 %v497
        %v1067 = vunpack.c.h.b16 %v497
        %v1068 = vunpack.c.l.b16 %v498
        %v1069 = vunpack.c.h.b16 %v498
        %v1070 = vunpack.c.l.b16 %v499
        %v1071 = vunpack.c.h.b16 %v499
        %v1072 = vunpack.c.l.b16 %v500
        %v1073 = vunpack.c.h.b16 %v500
        %v1074 = vunpack.c.l.b16 %v501
        %v1075 = vunpack.c.h.b16 %v501
        %v1076 = vunpack.c.l.b16 %v502
        %v1077 = vunpack.c.h.b16 %v502
        %v1078 = vunpack.c.l.b16 %v503
        %v1079 = vunpack.c.h.b16 %v503
        %v1080 = vunpack.c.l.b16 %v504
        %v1081 = vunpack.c.h.b16 %v504
        %v1082 = vunpack.c.l.b16 %v505
        %v1083 = vunpack.c.h.b16 %v505
        %v1084 = vunpack.c.l.b16 %v506
        %v1085 = vunpack.c.h.b16 %v506
        %v1086 = vunpack.c.l.b16 %v507
        %v1087 = vunpack.c.h.b16 %v507
        %v1088 = vunpack.c.l.b16 %v508
        %v1089 = vunpack.c.h.b16 %v508
        %v1090 = vunpack.c.l.b16 %v509
        %v1091 = vunpack.c.h.b16 %v509
        %v1092 = vunpack.c.l.b16 %v510
        %v1093 = vunpack.c.h.b16 %v510
        %v1094 = vunpack.c.l.b16 %v511
        %v1095 = vunpack.c.h.b16 %v511
        %v1096 = vunpack.c.l.b16 %v512
        %v1097 = vunpack.c.h.b16 %v512
        %v1098 = vunpack.c.l.b16 %v513
        %v1099 = vunpack.c.h.b16 %v513
        %v1100 = vunpack.c.l.b16 %v514
        %v1101 = vunpack.c.h.b16 %v514
        %v1102 = vunpack.c.l.b16 %v515
        %v1103 = vunpack.c.h.b16 %v515
        %v1104 = vunpack.c.l.b16 %v516
        %v1105 = vunpack.c.h.b16 %v516
        %v1106 = vunpack.c.l.b16 %v517
        %v1107 = vunpack.c.h.b16 %v517
        %v1108 = vunpack.c.l.b16 %v518
        %v1109 = vunpack.c.h.b16 %v518
        %v1110 = vunpack.c.l.b16 %v519
        %v1111 = vunpack.c.h.b16 %v519
        %v1112 = vunpack.c.l.b16 %v520
        %v1113 = vunpack.c.h.b16 %v520
        %v1114 = vunpack.c.l.b16 %v521
        %v1115 = vunpack.c.h.b16 %v521
        %v1116 = vunpack.c.l.b16 %v522
        %v1117 = vunpack.c.h.b16 %v522
        %v1118 = vunpack.c.l.b16 %v523
        %v1119 = vunpack.c.h.b16 %v523
        %v1120 = vunpack.c.l.b16 %v524
        %v1121 = vunpack.c.h.b16 %v524
        %v1122 = vunpack.c.l.b16 %v525
        %v1123 = vunpack.c.h.b16 %v525
        %v1124 = vunpack.c.l.b16 %v526
        %v1125 = vunpack.c.h.b16 %v526
        %v1126 = vunpack.c.l.b16 %v527
        %v1127 = vunpack.c.h.b16 %v527
        %v1128 = vunpack.c.l.b16 %v528
        %v1129 = vunpack.c.h.b16 %v528
        %v1130 = vunpack.c.l.b16 %v529
        %v1131 = vunpack.c.h.b16 %v529
        %v1132 = vunpack.c.l.b16 %v530
        %v1133 = vunpack.c.h.b16 %v530
        %v1134 = vunpack.c.l.b16 %v531
        %v1135 = vunpack.c.h.b16 %v531
        %v1136 = vunpack.c.l.b16 %v532
        %v1137 = vunpack.c.h.b16 %v532
        %v1138 = vunpack.c.l.b16 %v533
        %v1139 = vunpack.c.h.b16 %v533
        %v1140 = vunpack.c.l.b16 %v534
        %v1141 = vunpack.c.h.b16 %v534
        %v1142 = vunpack.c.l.b16 %v535
        %v1143 = vunpack.c.h.b16 %v535
        %v1144 = vunpack.c.l.b16 %v536
        %v1145 = vunpack.c.h.b16 %v536
        %v1146 = vunpack.c.l.b16 %v537
        %v1147 = vunpack.c.h.b16 %v537
        %v1148 = vunpack.c.l.b16 %v538
        %v1149 = vunpack.c.h.b16 %v538
        %v1150 = vunpack.c.l.b16 %v539
        %v1151 = vunpack.c.h.b16 %v539
        %v1152 = vunpack.c.l.b16 %v540
        %v1153 = vunpack.c.h.b16 %v540
        %v1154 = vunpack.c.l.b16 %v541
        %v1155 = vunpack.c.h.b16 %v541
        %v1156 = vunpack.c.l.b16 %v542
        %v1157 = vunpack.c.h.b16 %v542
        %v1158 = vunpack.c.l.b16 %v543
        %v1159 = vunpack.c.h.b16 %v543
        %v1160 = vunpack.c.l.b16 %v544
        %v1161 = vunpack.c.h.b16 %v544
        %v1162 = vunpack.c.l.b16 %v545
        %v1163 = vunpack.c.h.b16 %v545
        %v1164 = vunpack.c.l.b16 %v546
        %v1165 = vunpack.c.h.b16 %v546
        %v1166 = vunpack.c.l.b16 %v547
        %v1167 = vunpack.c.h.b16 %v547
        %v1168 = vunpack.c.l.b16 %v548
        %v1169 = vunpack.c.h.b16 %v548
        %v1170 = vunpack.c.l.b16 %v549
        %v1171 = vunpack.c.h.b16 %v549
        %v1172 = vunpack.c.l.b16 %v550
        %v1173 = vunpack.c.h.b16 %v550
        %v1174 = vunpack.c.l.b16 %v551
        %v1175 = vunpack.c.h.b16 %v551
        %v1176 = vunpack.c.l.b16 %v552
        %v1177 = vunpack.c.h.b16 %v552
        %v1178 = vunpack.c.l.b16 %v553
        %v1179 = vunpack.c.h.b16 %v553
        %v1180 = vunpack.c.l.b16 %v554
        %v1181 = vunpack.c.h.b16 %v554
        %v1182 = vunpack.c.l.b16 %v555
        %v1183 = vunpack.c.h.b16 %v555
        %v1184 = vunpack.c.l.b16 %v556
        %v1185 = vunpack.c.h.b16 %v556
        %v1186 = vunpack.c.l.b16 %v557
        %v1187 = vunpack.c.h.b16 %v557
        %v1188 = vunpack.c.l.b16 %v558
        %v1189 = vunpack.c.h.b16 %v558
        %v1190 = vunpack.c.l.b16 %v559
        %v1191 = vunpack.c.h.b16 %v559
        %v1192 = vunpack.c.l.b16 %v560
        %v1193 = vunpack.c.h.b16 %v560
        %v1194 = vunpack.c.l.b16 %v561
        %v1195 = vunpack.c.h.b16 %v561
        %v1196 = vunpack.c.l.b16 %v562
        %v1197 = vunpack.c.h.b16 %v562
        %v1198 = vunpack.c.l.b16 %v563
        %v1199 = vunpack.c.h.b16 %v563
        %v1200 = vunpack.c.l.b16 %v564
        %v1201 = vunpack.c.h.b16 %v564
        %v1202 = vunpack.c.l.b16 %v565
        %v1203 = vunpack.c.h.b16 %v565
        %v1204 = vunpack.c.l.b16 %v566
        %v1205 = vunpack.c.h.b16 %v566
        %v1206 = vunpack.c.l.b16 %v567
        %v1207 = vunpack.c.h.b16 %v567
        %v1208 = vunpack.c.l.b16 %v568
        %v1209 = vunpack.c.h.b16 %v568
        %v1210 = vunpack.c.l.b16 %v569
        %v1211 = vunpack.c.h.b16 %v569
        %v1212 = vunpack.c.l.b16 %v570
        %v1213 = vunpack.c.h.b16 %v570
        %v1214 = vunpack.c.l.b16 %v571
        %v1215 = vunpack.c.h.b16 %v571
        %v1216 = vunpack.c.l.b16 %v572
        %v1217 = vunpack.c.h.b16 %v572
        %v1218 = vunpack.c.l.b16 %v573
        %v1219 = vunpack.c.h.b16 %v573
        %v1220 = vunpack.c.l.b16 %v574
        %v1221 = vunpack.c.h.b16 %v574
        %v1222 = vunpack.c.l.b16 %v575
        %v1223 = vunpack.c.h.b16 %v575
        %v1224 = vunpack.c.l.b16 %v576
        %v1225 = vunpack.c.h.b16 %v576
        %v1226 = vunpack.c.l.b16 %v577
        %v1227 = vunpack.c.h.b16 %v577
        %v1228 = vunpack.c.l.b16 %v578
        %v1229 = vunpack.c.h.b16 %v578
        %v1230 = vunpack.c.l.b16 %v579
        %v1231 = vunpack.c.h.b16 %v579
        %v1232 = vunpack.c.l.b16 %v580
        %v1233 = vunpack.c.h.b16 %v580
        %v1234 = vunpack.c.l.b16 %v581
        %v1235 = vunpack.c.h.b16 %v581
        %v1236 = vunpack.c.l.b16 %v582
        %v1237 = vunpack.c.h.b16 %v582
        %v1238 = vunpack.c.l.b16 %v583
        %v1239 = vunpack.c.h.b16 %v583
        %v1240 = vunpack.c.l.b16 %v584
        %v1241 = vunpack.c.h.b16 %v584
        %v1242 = vunpack.c.l.b16 %v585
        %v1243 = vunpack.c.h.b16 %v585
        %v1244 = vunpack.c.l.b16 %v586
        %v1245 = vunpack.c.h.b16 %v586
        %v1246 = vunpack.c.l.b16 %v587
        %v1247 = vunpack.c.h.b16 %v587
        %v1248 = vunpack.c.l.b16 %v588
        %v1249 = vunpack.c.h.b16 %v588
        %v1250 = vunpack.c.l.b16 %v589
        %v1251 = vunpack.c.h.b16 %v589
        %v1252 = vunpack.c.l.b16 %v590
        %v1253 = vunpack.c.h.b16 %v590
        %v1254 = vunpack.c.l.b16 %v591
        %v1255 = vunpack.c.h.b16 %v591
        %v1256 = vunpack.c.l.b16 %v592
        %v1257 = vunpack.c.h.b16 %v592
        %v1258 = vunpack.c.l.b16 %v593
        %v1259 = vunpack.c.h.b16 %v593
        %v1260 = vunpack.c.l.b16 %v594
        %v1261 = vunpack.c.h.b16 %v594
        %v1262 = vunpack.c.l.b16 %v595
        %v1263 = vunpack.c.h.b16 %v595
        %v1264 = vunpack.c.l.b16 %v596
        %v1265 = vunpack.c.h.b16 %v596
        %v1266 = vunpack.c.l.b16 %v597
        %v1267 = vunpack.c.h.b16 %v597
        %v1268 = vunpack.c.l.b16 %v598
        %v1269 = vunpack.c.h.b16 %v598
        %v1270 = vunpack.c.l.b16 %v599
        %v1271 = vunpack.c.h.b16 %v599
        %v1272 = vunpack.c.l.b16 %v600
        %v1273 = vunpack.c.h.b16 %v600
        %v1274 = vunpack.c.l.b16 %v601
        %v1275 = vunpack.c.h.b16 %v601
        %v1276 = vunpack.c.l.b16 %v602
        %v1277 = vunpack.c.h.b16 %v602
        %v1278 = vunpack.c.l.b16 %v603
        %v1279 = vunpack.c.h.b16 %v603
        %v1280 = vunpack.c.l.b16 %v604
        %v1281 = vunpack.c.h.b16 %v604
        %v1282 = vunpack.c.l.b16 %v605
        %v1283 = vunpack.c.h.b16 %v605
        %v1284 = vunpack.c.l.b16 %v606
        %v1285 = vunpack.c.h.b16 %v606
        %v1286 = vunpack.c.l.b16 %v607
        %v1287 = vunpack.c.h.b16 %v607
        %v1288 = vunpack.c.l.b16 %v608
        %v1289 = vunpack.c.h.b16 %v608
        %v1290 = vunpack.c.l.b16 %v609
        %v1291 = vunpack.c.h.b16 %v609
        %v1292 = vunpack.c.l.b16 %v610
        %v1293 = vunpack.c.h.b16 %v610
        %v1294 = vunpack.c.l.b16 %v611
        %v1295 = vunpack.c.h.b16 %v611
        %v1296 = vunpack.c.l.b16 %v612
        %v1297 = vunpack.c.h.b16 %v612
        %v1298 = vunpack.c.l.b16 %v613
        %v1299 = vunpack.c.h.b16 %v613
        %v1300 = vunpack.c.l.b16 %v614
        %v1301 = vunpack.c.h.b16 %v614
        %v1302 = vunpack.c.l.b16 %v615
        %v1303 = vunpack.c.h.b16 %v615
        %v1304 = vunpack.c.l.b16 %v616
        %v1305 = vunpack.c.h.b16 %v616
        %v1306 = vunpack.c.l.b16 %v617
        %v1307 = vunpack.c.h.b16 %v617
        %v1308 = vunpack.c.l.b16 %v618
        %v1309 = vunpack.c.h.b16 %v618
        %v1310 = vunpack.c.l.b16 %v619
        %v1311 = vunpack.c.h.b16 %v619
        %v1312 = vunpack.c.l.b16 %v620
        %v1313 = vunpack.c.h.b16 %v620
        %v1314 = vunpack.c.l.b16 %v621
        %v1315 = vunpack.c.h.b16 %v621
        %v1316 = vunpack.c.l.b16 %v622
        %v1317 = vunpack.c.h.b16 %v622
        %v1318 = vunpack.c.l.b16 %v623
        %v1319 = vunpack.c.h.b16 %v623
        %v1320 = vunpack.c.l.b16 %v624
        %v1321 = vunpack.c.h.b16 %v624
        %v1322 = vunpack.c.l.b16 %v625
        %v1323 = vunpack.c.h.b16 %v625
        %v1324 = vunpack.c.l.b16 %v626
        %v1325 = vunpack.c.h.b16 %v626
        %v1326 = vunpack.c.l.b16 %v627
        %v1327 = vunpack.c.h.b16 %v627
        %v1328 = vunpack.c.l.b16 %v628
        %v1329 = vunpack.c.h.b16 %v628
        %v1330 = vunpack.c.l.b16 %v629
        %v1331 = vunpack.c.h.b16 %v629
        %v1332 = vunpack.c.l.b16 %v630
        %v1333 = vunpack.c.h.b16 %v630
        %v1334 = vunpack.c.l.b16 %v631
        %v1335 = vunpack.c.h.b16 %v631
        %v1336 = vunpack.c.l.b16 %v632
        %v1337 = vunpack.c.h.b16 %v632
        %v1338 = vunpack.c.l.b16 %v633
        %v1339 = vunpack.c.h.b16 %v633
        %v1340 = vunpack.c.l.b16 %v634
        %v1341 = vunpack.c.h.b16 %v634
        %v1342 = vunpack.c.l.b16 %v635
        %v1343 = vunpack.c.h.b16 %v635
        %v1344 = vunpack.c.l.b16 %v636
        %v1345 = vunpack.c.h.b16 %v636
        %v1346 = vunpack.c.l.b16 %v637
        %v1347 = vunpack.c.h.b16 %v637
        %v1348 = vunpack.c.l.b16 %v638
        %v1349 = vunpack.c.h.b16 %v638
        %v1350 = vunpack.c.l.b16 %v639
        %v1351 = vunpack.c.h.b16 %v639
        %v1352 = vunpack.c.l.b16 %v640
        %v1353 = vunpack.c.h.b16 %v640
        %v1354 = vunpack.c.l.b16 %v641
        %v1355 = vunpack.c.h.b16 %v641
        %v1356 = vunpack.c.l.b16 %v642
        %v1357 = vunpack.c.h.b16 %v642
        %v1358 = vunpack.c.l.b16 %v643
        %v1359 = vunpack.c.h.b16 %v643
        %v1360 = vunpack.c.l.b16 %v644
        %v1361 = vunpack.c.h.b16 %v644
        %v1362 = vunpack.c.l.b16 %v645
        %v1363 = vunpack.c.h.b16 %v645
        %v1364 = vunpack.c.l.b16 %v646
        %v1365 = vunpack.c.h.b16 %v646
        %v1366 = vunpack.c.l.b16 %v647
        %v1367 = vunpack.c.h.b16 %v647
        %v1368 = vunpack.c.l.b16 %v648
        %v1369 = vunpack.c.h.b16 %v648
        %v1370 = vunpack.c.l.b16 %v649
        %v1371 = vunpack.c.h.b16 %v649
        %v1372 = vunpack.c.l.b16 %v650
        %v1373 = vunpack.c.h.b16 %v650
        %v1374 = vunpack.c.l.b16 %v651
        %v1375 = vunpack.c.h.b16 %v651
        %v1376 = vunpack.c.l.b16 %v652
        %v1377 = vunpack.c.h.b16 %v652
        %v1378 = vunpack.c.l.b16 %v653
        %v1379 = vunpack.c.h.b16 %v653
        %v1380 = vunpack.c.l.b16 %v654
        %v1381 = vunpack.c.h.b16 %v654
        %v1382 = vunpack.c.l.b16 %v655
        %v1383 = vunpack.c.h.b16 %v655
        %v1384 = vunpack.c.l.b16 %v656
        %v1385 = vunpack.c.h.b16 %v656
        %v1386 = vunpack.c.l.b16 %v657
        %v1387 = vunpack.c.h.b16 %v657
        %v1388 = vunpack.c.l.b16 %v658
        %v1389 = vunpack.c.h.b16 %v658
        %v1390 = vunpack.c.l.b16 %v659
        %v1391 = vunpack.c.h.b16 %v659
        %v1392 = vunpack.c.l.b16 %v660
        %v1393 = vunpack.c.h.b16 %v660
        %v1394 = vunpack.c.l.b16 %v661
        %v1395 = vunpack.c.h.b16 %v661
        %v1396 = vunpack.c.l.b16 %v662
        %v1397 = vunpack.c.h.b16 %v662
        %v1398 = vunpack.c.l.b16 %v663
        %v1399 = vunpack.c.h.b16 %v663
        %v1400 = vunpack.c.l.b16 %v664
        %v1401 = vunpack.c.h.b16 %v664
        %v1402 = vunpack.c.l.b16 %v665
        %v1403 = vunpack.c.h.b16 %v665
        %v1404 = vunpack.c.l.b16 %v666
        %v1405 = vunpack.c.h.b16 %v666
        %v1406 = vunpack.c.l.b16 %v667
        %v1407 = vunpack.c.h.b16 %v667
        %v1408 = vunpack.c.l.b16 %v668
        %v1409 = vunpack.c.h.b16 %v668
        %v1410 = vunpack.c.l.b16 %v669
        %v1411 = vunpack.c.h.b16 %v669
        %v1412 = vunpack.c.l.b16 %v670
        %v1413 = vunpack.c.h.b16 %v670
        %v1414 = vunpack.c.l.b16 %v671
        %v1415 = vunpack.c.h.b16 %v671
        %v1416 = vunpack.c.l.b16 %v672
        %v1417 = vunpack.c.h.b16 %v672
        %v1418 = vunpack.c.l.b16 %v673
        %v1419 = vunpack.c.h.b16 %v673
        %v1420 = vunpack.c.l.b16 %v674
        %v1421 = vunpack.c.h.b16 %v674
        %v1422 = vunpack.c.l.b16 %v675
        %v1423 = vunpack.c.h.b16 %v675
        %v1424 = vunpack.c.l.b16 %v676
        %v1425 = vunpack.c.h.b16 %v676
        %v1426 = vunpack.c.l.b16 %v677
        %v1427 = vunpack.c.h.b16 %v677
        %v1428 = vunpack.c.l.b16 %v678
        %v1429 = vunpack.c.h.b16 %v678
        %v1430 = vunpack.c.l.b16 %v679
        %v1431 = vunpack.c.h.b16 %v679
        %v1432 = vunpack.c.l.b16 %v680
        %v1433 = vunpack.c.h.b16 %v680
        %v1434 = vunpack.c.l.b16 %v681
        %v1435 = vunpack.c.h.b16 %v681
        %v1436 = vunpack.c.l.b16 %v682
        %v1437 = vunpack.c.h.b16 %v682
        %v1438 = vunpack.c.l.b16 %v683
        %v1439 = vunpack.c.h.b16 %v683
        %v1440 = vunpack.c.l.b16 %v684
        %v1441 = vunpack.c.h.b16 %v684
        %v1442 = vunpack.c.l.b16 %v685
        %v1443 = vunpack.c.h.b16 %v685
        %v1444 = vunpack.c.l.b16 %v686
        %v1445 = vunpack.c.h.b16 %v686
        %v1446 = vunpack.c.l.b16 %v687
        %v1447 = vunpack.c.h.b16 %v687
        %v1448 = vunpack.c.l.b16 %v688
        %v1449 = vunpack.c.h.b16 %v688
        %v1450 = vunpack.c.l.b16 %v689
        %v1451 = vunpack.c.h.b16 %v689
        %v1452 = vunpack.c.l.b16 %v690
        %v1453 = vunpack.c.h.b16 %v690
        %v1454 = vunpack.c.l.b16 %v691
        %v1455 = vunpack.c.h.b16 %v691
        %v1456 = vunpack.c.l.b16 %v692
        %v1457 = vunpack.c.h.b16 %v692
        %v1458 = vunpack.c.l.b16 %v693
        %v1459 = vunpack.c.h.b16 %v693
        %v1460 = vunpack.c.l.b16 %v694
        %v1461 = vunpack.c.h.b16 %v694
        %v1462 = vunpack.c.l.b16 %v695
        %v1463 = vunpack.c.h.b16 %v695
        %v1464 = vunpack.c.l.b16 %v696
        %v1465 = vunpack.c.h.b16 %v696
        %v1466 = vunpack.c.l.b16 %v697
        %v1467 = vunpack.c.h.b16 %v697
        %v1468 = vunpack.c.l.b16 %v698
        %v1469 = vunpack.c.h.b16 %v698
        %v1470 = vunpack.c.l.b16 %v699
        %v1471 = vunpack.c.h.b16 %v699
        %v1472 = vunpack.c.l.b16 %v700
        %v1473 = vunpack.c.h.b16 %v700
        %v1474 = vunpack.c.l.b16 %v701
        %v1475 = vunpack.c.h.b16 %v701
        %v1476 = vunpack.c.l.b16 %v702
        %v1477 = vunpack.c.h.b16 %v702
        %v1478 = vunpack.c.l.b16 %v703
        %v1479 = vunpack.c.h.b16 %v703
        %v1480 = vunpack.c.l.b16 %v704
        %v1481 = vunpack.c.h.b16 %v704
        %v1482 = vunpack.c.l.b16 %v705
        %v1483 = vunpack.c.h.b16 %v705
        %v1484 = vunpack.c.l.b16 %v706
        %v1485 = vunpack.c.h.b16 %v706
        %v1486 = vunpack.c.l.b16 %v707
        %v1487 = vunpack.c.h.b16 %v707
        %v1488 = vunpack.c.l.b16 %v708
        %v1489 = vunpack.c.h.b16 %v708
        %v1490 = vunpack.c.l.b16 %v709
        %v1491 = vunpack.c.h.b16 %v709
        %v1492 = vunpack.c.l.b16 %v710
        %v1493 = vunpack.c.h.b16 %v710
        %v1494 = vunpack.c.l.b16 %v711
        %v1495 = vunpack.c.h.b16 %v711
        %v1496 = vunpack.c.l.b16 %v712
        %v1497 = vunpack.c.h.b16 %v712
        %v1498 = vunpack.c.l.b16 %v713
        %v1499 = vunpack.c.h.b16 %v713
        %v1500 = vunpack.c.l.b16 %v714
        %v1501 = vunpack.c.h.b16 %v714
        %v1502 = vunpack.c.l.b16 %v715
        %v1503 = vunpack.c.h.b16 %v715
        %v1504 = vunpack.c.l.b16 %v716
        %v1505 = vunpack.c.h.b16 %v716
        %v1506 = vunpack.c.l.b16 %v717
        %v1507 = vunpack.c.h.b16 %v717
        %v1508 = vunpack.c.l.b16 %v718
        %v1509 = vunpack.c.h.b16 %v718
        %v1510 = vunpack.c.l.b16 %v719
        %v1511 = vunpack.c.h.b16 %v719
        %v1512 = vunpack.c.l.b16 %v720
        %v1513 = vunpack.c.h.b16 %v720
        %v1514 = vunpack.c.l.b16 %v721
        %v1515 = vunpack.c.h.b16 %v721
        %v1516 = vunpack.c.l.b16 %v722
        %v1517 = vunpack.c.h.b16 %v722
        %v1518 = vunpack.c.l.b16 %v723
        %v1519 = vunpack.c.h.b16 %v723
        %v1520 = vunpack.c.l.b16 %v724
        %v1521 = vunpack.c.h.b16 %v724
        %v1522 = vunpack.c.l.b16 %v725
        %v1523 = vunpack.c.h.b16 %v725
        %v1524 = vunpack.c.l.b16 %v726
        %v1525 = vunpack.c.h.b16 %v726
        %v1526 = vunpack.c.l.b16 %v727
        %v1527 = vunpack.c.h.b16 %v727
        %v1528 = vunpack.c.l.b16 %v728
        %v1529 = vunpack.c.h.b16 %v728
        %v1530 = vunpack.c.l.b16 %v729
        %v1531 = vunpack.c.h.b16 %v729
        %v1532 = vunpack.c.l.b16 %v730
        %v1533 = vunpack.c.h.b16 %v730
        %v1534 = vunpack.c.l.b16 %v731
        %v1535 = vunpack.c.h.b16 %v731
        %v1536 = vunpack.c.l.b16 %v732
        %v1537 = vunpack.c.h.b16 %v732
        %v1538 = vunpack.c.l.b16 %v733
        %v1539 = vunpack.c.h.b16 %v733
        %v1540 = vunpack.c.l.b16 %v734
        %v1541 = vunpack.c.h.b16 %v734
        %v1542 = vunpack.c.l.b16 %v735
        %v1543 = vunpack.c.h.b16 %v735
        %v1544 = vpack.c.b16 %v1036, %v1032
        %v1545 = vpack.c.b16 %v1037, %v1033
        %v1546 = vpack.c.b16 %v1038, %v1034
        %v1547 = vpack.c.b16 %v1039, %v1035
        %v1548 = vpack.c.b16 %v1044, %v1040
        %v1549 = vpack.c.b16 %v1045, %v1041
        %v1550 = vpack.c.b16 %v1046, %v1042
        %v1551 = vpack.c.b16 %v1047, %v1043
        %v1552 = vpack.c.b16 %v1052, %v1048
        %v1553 = vpack.c.b16 %v1053, %v1049
        %v1554 = vpack.c.b16 %v1054, %v1050
        %v1555 = vpack.c.b16 %v1055, %v1051
        %v1556 = vpack.c.b16 %v1060, %v1056
        %v1557 = vpack.c.b16 %v1061, %v1057
        %v1558 = vpack.c.b16 %v1062, %v1058
        %v1559 = vpack.c.b16 %v1063, %v1059
        %v1560 = vpack.c.b16 %v1068, %v1064
        %v1561 = vpack.c.b16 %v1069, %v1065
        %v1562 = vpack.c.b16 %v1070, %v1066
        %v1563 = vpack.c.b16 %v1071, %v1067
        %v1564 = vpack.c.b16 %v1076, %v1072
        %v1565 = vpack.c.b16 %v1077, %v1073
        %v1566 = vpack.c.b16 %v1078, %v1074
        %v1567 = vpack.c.b16 %v1079, %v1075
        %v1568 = vpack.c.b16 %v1084, %v1080
        %v1569 = vpack.c.b16 %v1085, %v1081
        %v1570 = vpack.c.b16 %v1086, %v1082
        %v1571 = vpack.c.b16 %v1087, %v1083
        %v1572 = vpack.c.b16 %v1092, %v1088
        %v1573 = vpack.c.b16 %v1093, %v1089
        %v1574 = vpack.c.b16 %v1094, %v1090
        %v1575 = vpack.c.b16 %v1095, %v1091
        %v1576 = vpack.c.b16 %v1100, %v1096
        %v1577 = vpack.c.b16 %v1101, %v1097
        %v1578 = vpack.c.b16 %v1102, %v1098
        %v1579 = vpack.c.b16 %v1103, %v1099
        %v1580 = vpack.c.b16 %v1108, %v1104
        %v1581 = vpack.c.b16 %v1109, %v1105
        %v1582 = vpack.c.b16 %v1110, %v1106
        %v1583 = vpack.c.b16 %v1111, %v1107
        %v1584 = vpack.c.b16 %v1116, %v1112
        %v1585 = vpack.c.b16 %v1117, %v1113
        %v1586 = vpack.c.b16 %v1118, %v1114
        %v1587 = vpack.c.b16 %v1119, %v1115
        %v1588 = vpack.c.b16 %v1124, %v1120
        %v1589 = vpack.c.b16 %v1125, %v1121
        %v1590 = vpack.c.b16 %v1126, %v1122
        %v1591 = vpack.c.b16 %v1127, %v1123
        %v1592 = vpack.c.b16 %v1132, %v1128
        %v1593 = vpack.c.b16 %v1133, %v1129
        %v1594 = vpack.c.b16 %v1134, %v1130
        %v1595 = vpack.c.b16 %v1135, %v1131
        %v1596 = vpack.c.b16 %v1140, %v1136
        %v1597 = vpack.c.b16 %v1141, %v1137
        %v1598 = vpack.c.b16 %v1142, %v1138
        %v1599 = vpack.c.b16 %v1143, %v1139
        %v1600 = vpack.c.b16 %v1148, %v1144
        %v1601 = vpack.c.b16 %v1149, %v1145
        %v1602 = vpack.c.b16 %v1150, %v1146
        %v1603 = vpack.c.b16 %v1151, %v1147
        %v1604 = vpack.c.b16 %v1156, %v1152
        %v1605 = vpack.c.b16 %v1157, %v1153
        %v1606 = vpack.c.b16 %v1158, %v1154
        %v1607 = vpack.c.b16 %v1159, %v1155
        %v1608 = vpack.c.b16 %v1164, %v1160
        %v1609 = vpack.c.b16 %v1165, %v1161
        %v1610 = vpack.c.b16 %v1166, %v1162
        %v1611 = vpack.c.b16 %v1167, %v1163
        %v1612 = vpack.c.b16 %v1172, %v1168
        %v1613 = vpack.c.b16 %v1173, %v1169
        %v1614 = vpack.c.b16 %v1174, %v1170
        %v1615 = vpack.c.b16 %v1175, %v1171
        %v1616 = vpack.c.b16 %v1180, %v1176
        %v1617 = vpack.c.b16 %v1181, %v1177
        %v1618 = vpack.c.b16 %v1182, %v1178
        %v1619 = vpack.c.b16 %v1183, %v1179
        %v1620 = vpack.c.b16 %v1188, %v1184
        %v1621 = vpack.c.b16 %v1189, %v1185
        %v1622 = vpack.c.b16 %v1190, %v1186
        %v1623 = vpack.c.b16 %v1191, %v1187
        %v1624 = vpack.c.b16 %v1196, %v1192
        %v1625 = vpack.c.b16 %v1197, %v1193
        %v1626 = vpack.c.b16 %v1198, %v1194
        %v1627 = vpack.c.b16 %v1199, %v1195
        %v1628 = vpack.c.b16 %v1204, %v1200
        %v1629 = vpack.c.b16 %v1205, %v1201
        %v1630 = vpack.c.b16 %v1206, %v1202
        %v1631 = vpack.c.b16 %v1207, %v1203
        %v1632 = vpack.c.b16 %v1212, %v1208
        %v1633 = vpack.c.b16 %v1213, %v1209
        %v1634 = vpack.c.b16 %v1214, %v1210
        %v1635 = vpack.c.b16 %v1215, %v1211
        %v1636 = vpack.c.b16 %v1220, %v1216
        %v1637 = vpack.c.b16 %v1221, %v1217
        %v1638 = vpack.c.b16 %v1222, %v1218
        %v1639 = vpack.c.b16 %v1223, %v1219
        %v1640 = vpack.c.b16 %v1228, %v1224
        %v1641 = vpack.c.b16 %v1229, %v1225
        %v1642 = vpack.c.b16 %v1230, %v1226
        %v1643 = vpack.c.b16 %v1231, %v1227
        %v1644 = vpack.c.b16 %v1236, %v1232
        %v1645 = vpack.c.b16 %v1237, %v1233
        %v1646 = vpack.c.b16 %v1238, %v1234
        %v1647 = vpack.c.b16 %v1239, %v1235
        %v1648 = vpack.c.b16 %v1244, %v1240
        %v1649 = vpack.c.b16 %v1245, %v1241
        %v1650 = vpack.c.b16 %v1246, %v1242
        %v1651 = vpack.c.b16 %v1247, %v1243
        %v1652 = vpack.c.b16 %v1252, %v1248
        %v1653 = vpack.c.b16 %v1253, %v1249
        %v1654 = vpack.c.b16 %v1254, %v1250
        %v1655 = vpack.c.b16 %v1255, %v1251
        %v1656 = vpack.c.b16 %v1260, %v1256
        %v1657 = vpack.c.b16 %v1261, %v1257
        %v1658 = vpack.c.b16 %v1262, %v1258
        %v1659 = vpack.c.b16 %v1263, %v1259
        %v1660 = vpack.c.b16 %v1268, %v1264
        %v1661 = vpack.c.b16 %v1269, %v1265
        %v1662 = vpack.c.b16 %v1270, %v1266
        %v1663 = vpack.c.b16 %v1271, %v1267
        %v1664 = vpack.c.b16 %v1276, %v1272
        %v1665 = vpack.c.b16 %v1277, %v1273
        %v1666 = vpack.c.b16 %v1278, %v1274
        %v1667 = vpack.c.b16 %v1279, %v1275
        %v1668 = vpack.c.b16 %v1284, %v1280
        %v1669 = vpack.c.b16 %v1285, %v1281
        %v1670 = vpack.c.b16 %v1286, %v1282
        %v1671 = vpack.c.b16 %v1287, %v1283
        %v1672 = vpack.c.b16 %v1292, %v1288
        %v1673 = vpack.c.b16 %v1293, %v1289
        %v1674 = vpack.c.b16 %v1294, %v1290
        %v1675 = vpack.c.b16 %v1295, %v1291
        %v1676 = vpack.c.b16 %v1300, %v1296
        %v1677 = vpack.c.b16 %v1301, %v1297
        %v1678 = vpack.c.b16 %v1302, %v1298
        %v1679 = vpack.c.b16 %v1303, %v1299
        %v1680 = vpack.c.b16 %v1308, %v1304
        %v1681 = vpack.c.b16 %v1309, %v1305
        %v1682 = vpack.c.b16 %v1310, %v1306
        %v1683 = vpack.c.b16 %v1311, %v1307
        %v1684 = vpack.c.b16 %v1316, %v1312
        %v1685 = vpack.c.b16 %v1317, %v1313
        %v1686 = vpack.c.b16 %v1318, %v1314
        %v1687 = vpack.c.b16 %v1319, %v1315
        %v1688 = vpack.c.b16 %v1324, %v1320
        %v1689 = vpack.c.b16 %v1325, %v1321
        %v1690 = vpack.c.b16 %v1326, %v1322
        %v1691 = vpack.c.b16 %v1327, %v1323
        %v1692 = vpack.c.b16 %v1332, %v1328
        %v1693 = vpack.c.b16 %v1333, %v1329
        %v1694 = vpack.c.b16 %v1334, %v1330
        %v1695 = vpack.c.b16 %v1335, %v1331
        %v1696 = vpack.c.b16 %v1340, %v1336
        %v1697 = vpack.c.b16 %v1341, %v1337
        %v1698 = vpack.c.b16 %v1342, %v1338
        %v1699 = vpack.c.b16 %v1343, %v1339
        %v1700 = vpack.c.b16 %v1348, %v1344
        %v1701 = vpack.c.b16 %v1349, %v1345
        %v1702 = vpack.c.b16 %v1350, %v1346
        %v1703 = vpack.c.b16 %v1351, %v1347
        %v1704 = vpack.c.b16 %v1356, %v1352
        %v1705 = vpack.c.b16 %v1357, %v1353
        %v1706 = vpack.c.b16 %v1358, %v1354
        %v1707 = vpack.c.b16 %v1359, %v1355
        %v1708 = vpack.c.b16 %v1364, %v1360
        %v1709 = vpack.c.b16 %v1365, %v1361
        %v1710 = vpack.c.b16 %v1366, %v1362
        %v1711 = vpack.c.b16 %v1367, %v1363
        %v1712 = vpack.c.b16 %v1372, %v1368
        %v1713 = vpack.c.b16 %v1373, %v1369
        %v1714 = vpack.c.b16 %v1374, %v1370
        %v1715 = vpack.c.b16 %v1375, %v1371
        %v1716 = vpack.c.b16 %v1380, %v1376
        %v1717 = vpack.c.b16 %v1381, %v1377
        %v1718 = vpack.c.b16 %v1382, %v1378
        %v1719 = vpack.c.b16 %v1383, %v1379
        %v1720 = vpack.c.b16 %v1388, %v1384
        %v1721 = vpack.c.b16 %v1389, %v1385
        %v1722 = vpack.c.b16 %v1390, %v1386
        %v1723 = vpack.c.b16 %v1391, %v1387
        %v1724 = vpack.c.b16 %v1396, %v1392
        %v1725 = vpack.c.b16 %v1397, %v1393
        %v1726 = vpack.c.b16 %v1398, %v1394
        %v1727 = vpack.c.b16 %v1399, %v1395
        %v1728 = vpack.c.b16 %v1404, %v1400
        %v1729 = vpack.c.b16 %v1405, %v1401
        %v1730 = vpack.c.b16 %v1406, %v1402
        %v1731 = vpack.c.b16 %v1407, %v1403
        %v1732 = vpack.c.b16 %v1412, %v1408
        %v1733 = vpack.c.b16 %v1413, %v1409
        %v1734 = vpack.c.b16 %v1414, %v1410
        %v1735 = vpack.c.b16 %v1415, %v1411
        %v1736 = vpack.c.b16 %v1420, %v1416
        %v1737 = vpack.c.b16 %v1421, %v1417
        %v1738 = vpack.c.b16 %v1422, %v1418
        %v1739 = vpack.c.b16 %v1423, %v1419
        %v1740 = vpack.c.b16 %v1428, %v1424
        %v1741 = vpack.c.b16 %v1429, %v1425
        %v1742 = vpack.c.b16 %v1430, %v1426
        %v1743 = vpack.c.b16 %v1431, %v1427
        %v1744 = vpack.c.b16 %v1436, %v1432
        %v1745 = vpack.c.b16 %v1437, %v1433
        %v1746 = vpack.c.b16 %v1438, %v1434
        %v1747 = vpack.c.b16 %v1439, %v1435
        %v1748 = vpack.c.b16 %v1444, %v1440
        %v1749 = vpack.c.b16 %v1445, %v1441
        %v1750 = vpack.c.b16 %v1446, %v1442
        %v1751 = vpack.c.b16 %v1447, %v1443
        %v1752 = vpack.c.b16 %v1452, %v1448
        %v1753 = vpack.c.b16 %v1453, %v1449
        %v1754 = vpack.c.b16 %v1454, %v1450
        %v1755 = vpack.c.b16 %v1455, %v1451
        %v1756 = vpack.c.b16 %v1460, %v1456
        %v1757 = vpack.c.b16 %v1461, %v1457
        %v1758 = vpack.c.b16 %v1462, %v1458
        %v1759 = vpack.c.b16 %v1463, %v1459
        %v1760 = vpack.c.b16 %v1468, %v1464
        %v1761 = vpack.c.b16 %v1469, %v1465
        %v1762 = vpack.c.b16 %v1470, %v1466
        %v1763 = vpack.c.b16 %v1471, %v1467
        %v1764 = vpack.c.b16 %v1476, %v1472
        %v1765 = vpack.c.b16 %v1477, %v1473
        %v1766 = vpack.c.b16 %v1478, %v1474
        %v1767 = vpack.c.b16 %v1479, %v1475
        %v1768 = vpack.c.b16 %v1484, %v1480
        %v1769 = vpack.c.b16 %v1485, %v1481
        %v1770 = vpack.c.b16 %v1486, %v1482
        %v1771 = vpack.c.b16 %v1487, %v1483
        %v1772 = vpack.c.b16 %v1492, %v1488
        %v1773 = vpack.c.b16 %v1493, %v1489
        %v1774 = vpack.c.b16 %v1494, %v1490
        %v1775 = vpack.c.b16 %v1495, %v1491
        %v1776 = vpack.c.b16 %v1500, %v1496
        %v1777 = vpack.c.b16 %v1501, %v1497
        %v1778 = vpack.c.b16 %v1502, %v1498
        %v1779 = vpack.c.b16 %v1503, %v1499
        %v1780 = vpack.c.b16 %v1508, %v1504
        %v1781 = vpack.c.b16 %v1509, %v1505
        %v1782 = vpack.c.b16 %v1510, %v1506
        %v1783 = vpack.c.b16 %v1511, %v1507
        %v1784 = vpack.c.b16 %v1516, %v1512
        %v1785 = vpack.c.b16 %v1517, %v1513
        %v1786 = vpack.c.b16 %v1518, %v1514
        %v1787 = vpack.c.b16 %v1519, %v1515
        %v1788 = vpack.c.b16 %v1524, %v1520
        %v1789 = vpack.c.b16 %v1525, %v1521
        %v1790 = vpack.c.b16 %v1526, %v1522
        %v1791 = vpack.c.b16 %v1527, %v1523
        %v1792 = vpack.c.b16 %v1532, %v1528
        %v1793 = vpack.c.b16 %v1533, %v1529
        %v1794 = vpack.c.b16 %v1534, %v1530
        %v1795 = vpack.c.b16 %v1535, %v1531
        %v1796 = vpack.c.b16 %v1540, %v1536
        %v1797 = vpack.c.b16 %v1541, %v1537
        %v1798 = vpack.c.b16 %v1542, %v1538
        %v1799 = vpack.c.b16 %v1543, %v1539
        %2056 = vmatprep.subr.bf16.mxu0 %v1545
        %2057 = vmatpush1.bf16.msra.mxu0 %v1544
        %2058 = vmatprep.subr.bf16.mxu0 %v1549
        %2059 = vmatpush1.bf16.msra.mxu0 %v1548
        %2060 = vmatprep.subr.bf16.mxu0 %v1553
        %2061 = vmatpush1.bf16.msra.mxu0 %v1552
        %2062 = vmatprep.subr.bf16.mxu0 %v1557
        %2063 = vmatpush1.bf16.msra.mxu0 %v1556
        %2064 = vmatprep.subr.bf16.mxu0 %v1561
        %2065 = vmatpush1.bf16.msra.mxu0 %v1560
        %2066 = vmatprep.subr.bf16.mxu0 %v1565
        %2067 = vmatpush1.bf16.msra.mxu0 %v1564
        %2068 = vmatprep.subr.bf16.mxu0 %v1569
        %2069 = vmatpush1.bf16.msra.mxu0 %v1568
        %2070 = vmatprep.subr.bf16.mxu0 %v1573
        %2071 = vmatpush1.bf16.msra.mxu0 %v1572
        %2072 = vmatprep.subr.bf16.mxu0 %v1577
        %2073 = vmatpush1.bf16.msra.mxu0 %v1576
        %2074 = vmatprep.subr.bf16.mxu0 %v1581
        %2075 = vmatpush1.bf16.msra.mxu0 %v1580
        %2076 = vmatprep.subr.bf16.mxu0 %v1585
        %2077 = vmatpush1.bf16.msra.mxu0 %v1584
        %2078 = vmatprep.subr.bf16.mxu0 %v1589
        %2079 = vmatpush1.bf16.msra.mxu0 %v1588
        %2080 = vmatprep.subr.bf16.mxu0 %v1593
        %2081 = vmatpush1.bf16.msra.mxu0 %v1592
        %2082 = vmatprep.subr.bf16.mxu0 %v1597
        %2083 = vmatpush1.bf16.msra.mxu0 %v1596
        %2084 = vmatprep.subr.bf16.mxu0 %v1601
        %2085 = vmatpush1.bf16.msra.mxu0 %v1600
        %2086 = vmatprep.subr.bf16.mxu0 %v1605
        %2087 = vmatpush1.bf16.msra.mxu0 %v1604
        %2088 = vmatprep.mubr.bf16.mxu0 %v761
        %2089 = vmatmul.mubr.bf16.gmra.mrb[0].mxu0 %v760
        %v2090 = vpop.f32.mrb[0].mxu0
        %v2091 = vadd.f32 0.0, %v2090
        %v2092 = vpop.f32.mrb[0].mxu0
        %v2093 = vadd.f32 0.0, %v2092
        %v2094 = vpop.f32.mrb[0].mxu0
        %v2095 = vadd.f32 0.0, %v2094
        %v2096 = vpop.f32.mrb[0].mxu0
        %v2097 = vadd.f32 0.0, %v2096
        %2098 = vdwg.mxu0
        %2099 = vmatprep.subr.bf16.mxu0 %v1609
        %2100 = vmatpush1.bf16.msra.mxu0 %v1608
        %2101 = vmatprep.subr.bf16.mxu0 %v1613
        %2102 = vmatpush1.bf16.msra.mxu0 %v1612
        %2103 = vmatprep.subr.bf16.mxu0 %v1617
        %2104 = vmatpush1.bf16.msra.mxu0 %v1616
        %2105 = vmatprep.subr.bf16.mxu0 %v1621
        %2106 = vmatpush1.bf16.msra.mxu0 %v1620
        %2107 = vmatprep.subr.bf16.mxu0 %v1625
        %2108 = vmatpush1.bf16.msra.mxu0 %v1624
        %2109 = vmatprep.subr.bf16.mxu0 %v1629
        %2110 = vmatpush1.bf16.msra.mxu0 %v1628
        %2111 = vmatprep.subr.bf16.mxu0 %v1633
        %2112 = vmatpush1.bf16.msra.mxu0 %v1632
        %2113 = vmatprep.subr.bf16.mxu0 %v1637
        %2114 = vmatpush1.bf16.msra.mxu0 %v1636
        %2115 = vmatprep.subr.bf16.mxu0 %v1641
        %2116 = vmatpush1.bf16.msra.mxu0 %v1640
        %2117 = vmatprep.subr.bf16.mxu0 %v1645
        %2118 = vmatpush1.bf16.msra.mxu0 %v1644
        %2119 = vmatprep.subr.bf16.mxu0 %v1649
        %2120 = vmatpush1.bf16.msra.mxu0 %v1648
        %2121 = vmatprep.subr.bf16.mxu0 %v1653
        %2122 = vmatpush1.bf16.msra.mxu0 %v1652
        %2123 = vmatprep.subr.bf16.mxu0 %v1657
        %2124 = vmatpush1.bf16.msra.mxu0 %v1656
        %2125 = vmatprep.subr.bf16.mxu0 %v1661
        %2126 = vmatpush1.bf16.msra.mxu0 %v1660
        %2127 = vmatprep.subr.bf16.mxu0 %v1665
        %2128 = vmatpush1.bf16.msra.mxu0 %v1664
        %2129 = vmatprep.subr.bf16.mxu0 %v1669
        %2130 = vmatpush1.bf16.msra.mxu0 %v1668
        %2131 = vmatprep.mubr.bf16.mxu0 %v763
        %2132 = vmatmul.mubr.bf16.gmra.mrb[0].mxu0 %v762
        %v2133 = vpop.f32.mrb[0].mxu0
        %v2134 = vadd.f32 %v2091, %v2133
        %v2135 = vpop.f32.mrb[0].mxu0
        %v2136 = vadd.f32 %v2093, %v2135
        %v2137 = vpop.f32.mrb[0].mxu0
        %v2138 = vadd.f32 %v2095, %v2137
        %v2139 = vpop.f32.mrb[0].mxu0
        %v2140 = vadd.f32 %v2097, %v2139
        %2141 = vdwg.mxu0
        %2142 = vmatprep.subr.bf16.mxu0 %v1673
        %2143 = vmatpush1.bf16.msra.mxu0 %v1672
        %2144 = vmatprep.subr.bf16.mxu0 %v1677
        %2145 = vmatpush1.bf16.msra.mxu0 %v1676
        %2146 = vmatprep.subr.bf16.mxu0 %v1681
        %2147 = vmatpush1.bf16.msra.mxu0 %v1680
        %2148 = vmatprep.subr.bf16.mxu0 %v1685
        %2149 = vmatpush1.bf16.msra.mxu0 %v1684
        %2150 = vmatprep.subr.bf16.mxu0 %v1689
        %2151 = vmatpush1.bf16.msra.mxu0 %v1688
        %2152 = vmatprep.subr.bf16.mxu0 %v1693
        %2153 = vmatpush1.bf16.msra.mxu0 %v1692
        %2154 = vmatprep.subr.bf16.mxu0 %v1697
        %2155 = vmatpush1.bf16.msra.mxu0 %v1696
        %2156 = vmatprep.subr.bf16.mxu0 %v1701
        %2157 = vmatpush1.bf16.msra.mxu0 %v1700
        %2158 = vmatprep.subr.bf16.mxu0 %v1705
        %2159 = vmatpush1.bf16.msra.mxu0 %v1704
        %2160 = vmatprep.subr.bf16.mxu0 %v1709
        %2161 = vmatpush1.bf16.msra.mxu0 %v1708
        %2162 = vmatprep.subr.bf16.mxu0 %v1713
        %2163 = vmatpush1.bf16.msra.mxu0 %v1712
        %2164 = vmatprep.subr.bf16.mxu0 %v1717
        %2165 = vmatpush1.bf16.msra.mxu0 %v1716
        %2166 = vmatprep.subr.bf16.mxu0 %v1721
        %2167 = vmatpush1.bf16.msra.mxu0 %v1720
        %2168 = vmatprep.subr.bf16.mxu0 %v1725
        %2169 = vmatpush1.bf16.msra.mxu0 %v1724
        %2170 = vmatprep.subr.bf16.mxu0 %v1729
        %2171 = vmatpush1.bf16.msra.mxu0 %v1728
        %2172 = vmatprep.subr.bf16.mxu0 %v1733
        %2173 = vmatpush1.bf16.msra.mxu0 %v1732
        %2174 = vmatprep.mubr.bf16.mxu0 %v765
        %2175 = vmatmul.mubr.bf16.gmra.mrb[0].mxu0 %v764
        %v2176 = vpop.f32.mrb[0].mxu0
        %v2177 = vadd.f32 %v2134, %v2176
        %v2178 = vpop.f32.mrb[0].mxu0
        %v2179 = vadd.f32 %v2136, %v2178
        %v2180 = vpop.f32.mrb[0].mxu0
        %v2181 = vadd.f32 %v2138, %v2180
        %v2182 = vpop.f32.mrb[0].mxu0
        %v2183 = vadd.f32 %v2140, %v2182
        %2184 = vdwg.mxu0
        %2185 = vmatprep.subr.bf16.mxu0 %v1737
        %2186 = vmatpush1.bf16.msra.mxu0 %v1736
        %2187 = vmatprep.subr.bf16.mxu0 %v1741
        %2188 = vmatpush1.bf16.msra.mxu0 %v1740
        %2189 = vmatprep.subr.bf16.mxu0 %v1745
        %2190 = vmatpush1.bf16.msra.mxu0 %v1744
        %2191 = vmatprep.subr.bf16.mxu0 %v1749
        %2192 = vmatpush1.bf16.msra.mxu0 %v1748
        %2193 = vmatprep.subr.bf16.mxu0 %v1753
        %2194 = vmatpush1.bf16.msra.mxu0 %v1752
        %2195 = vmatprep.subr.bf16.mxu0 %v1757
        %2196 = vmatpush1.bf16.msra.mxu0 %v1756
        %2197 = vmatprep.subr.bf16.mxu0 %v1761
        %2198 = vmatpush1.bf16.msra.mxu0 %v1760
        %2199 = vmatprep.subr.bf16.mxu0 %v1765
        %2200 = vmatpush1.bf16.msra.mxu0 %v1764
        %2201 = vmatprep.subr.bf16.mxu0 %v1769
        %2202 = vmatpush1.bf16.msra.mxu0 %v1768
        %2203 = vmatprep.subr.bf16.mxu0 %v1773
        %2204 = vmatpush1.bf16.msra.mxu0 %v1772
        %2205 = vmatprep.subr.bf16.mxu0 %v1777
        %2206 = vmatpush1.bf16.msra.mxu0 %v1776
        %2207 = vmatprep.subr.bf16.mxu0 %v1781
        %2208 = vmatpush1.bf16.msra.mxu0 %v1780
        %2209 = vmatprep.subr.bf16.mxu0 %v1785
        %2210 = vmatpush1.bf16.msra.mxu0 %v1784
        %2211 = vmatprep.subr.bf16.mxu0 %v1789
        %2212 = vmatpush1.bf16.msra.mxu0 %v1788
        %2213 = vmatprep.subr.bf16.mxu0 %v1793
        %2214 = vmatpush1.bf16.msra.mxu0 %v1792
        %2215 = vmatprep.subr.bf16.mxu0 %v1797
        %2216 = vmatpush1.bf16.msra.mxu0 %v1796
        %2217 = vmatprep.mubr.bf16.mxu0 %v767
        %2218 = vmatmul.mubr.bf16.gmra.mrb[0].mxu0 %v766
        %v2219 = vpop.f32.mrb[0].mxu0
        %v2220 = vadd.f32 %v2177, %v2219
        %v2221 = vpop.f32.mrb[0].mxu0
        %v2222 = vadd.f32 %v2179, %v2221
        %v2223 = vpop.f32.mrb[0].mxu0
        %v2224 = vadd.f32 %v2181, %v2223
        %v2225 = vpop.f32.mrb[0].mxu0
        %v2226 = vadd.f32 %v2183, %v2225
        %2227 = vdwg.mxu0
        %2228 = vmatprep.subr.bf16.mxu0 %v1547
        %2229 = vmatpush1.bf16.msra.mxu0 %v1546
        %2230 = vmatprep.subr.bf16.mxu0 %v1551
        %2231 = vmatpush1.bf16.msra.mxu0 %v1550
        %2232 = vmatprep.subr.bf16.mxu0 %v1555
        %2233 = vmatpush1.bf16.msra.mxu0 %v1554
        %2234 = vmatprep.subr.bf16.mxu0 %v1559
        %2235 = vmatpush1.bf16.msra.mxu0 %v1558
        %2236 = vmatprep.subr.bf16.mxu0 %v1563
        %2237 = vmatpush1.bf16.msra.mxu0 %v1562
        %2238 = vmatprep.subr.bf16.mxu0 %v1567
        %2239 = vmatpush1.bf16.msra.mxu0 %v1566
        %2240 = vmatprep.subr.bf16.mxu0 %v1571
        %2241 = vmatpush1.bf16.msra.mxu0 %v1570
        %2242 = vmatprep.subr.bf16.mxu0 %v1575
        %2243 = vmatpush1.bf16.msra.mxu0 %v1574
        %2244 = vmatprep.subr.bf16.mxu0 %v1579
        %2245 = vmatpush1.bf16.msra.mxu0 %v1578
        %2246 = vmatprep.subr.bf16.mxu0 %v1583
        %2247 = vmatpush1.bf16.msra.mxu0 %v1582
        %2248 = vmatprep.subr.bf16.mxu0 %v1587
        %2249 = vmatpush1.bf16.msra.mxu0 %v1586
        %2250 = vmatprep.subr.bf16.mxu0 %v1591
        %2251 = vmatpush1.bf16.msra.mxu0 %v1590
        %2252 = vmatprep.subr.bf16.mxu0 %v1595
        %2253 = vmatpush1.bf16.msra.mxu0 %v1594
        %2254 = vmatprep.subr.bf16.mxu0 %v1599
        %2255 = vmatpush1.bf16.msra.mxu0 %v1598
        %2256 = vmatprep.subr.bf16.mxu0 %v1603
        %2257 = vmatpush1.bf16.msra.mxu0 %v1602
        %2258 = vmatprep.subr.bf16.mxu0 %v1607
        %2259 = vmatpush1.bf16.msra.mxu0 %v1606
        %2260 = vmatprep.mubr.bf16.mxu0 %v761
        %2261 = vmatmul.mubr.bf16.gmra.mrb[0].mxu0 %v760
        %v2262 = vpop.f32.mrb[0].mxu0
        %v2263 = vadd.f32 0.0, %v2262
        %v2264 = vpop.f32.mrb[0].mxu0
        %v2265 = vadd.f32 0.0, %v2264
        %v2266 = vpop.f32.mrb[0].mxu0
        %v2267 = vadd.f32 0.0, %v2266
        %v2268 = vpop.f32.mrb[0].mxu0
        %v2269 = vadd.f32 0.0, %v2268
        %2270 = vdwg.mxu0
        %2271 = vmatprep.subr.bf16.mxu0 %v1611
        %2272 = vmatpush1.bf16.msra.mxu0 %v1610
        %2273 = vmatprep.subr.bf16.mxu0 %v1615
        %2274 = vmatpush1.bf16.msra.mxu0 %v1614
        %2275 = vmatprep.subr.bf16.mxu0 %v1619
        %2276 = vmatpush1.bf16.msra.mxu0 %v1618
        %2277 = vmatprep.subr.bf16.mxu0 %v1623
        %2278 = vmatpush1.bf16.msra.mxu0 %v1622
        %2279 = vmatprep.subr.bf16.mxu0 %v1627
        %2280 = vmatpush1.bf16.msra.mxu0 %v1626
        %2281 = vmatprep.subr.bf16.mxu0 %v1631
        %2282 = vmatpush1.bf16.msra.mxu0 %v1630
        %2283 = vmatprep.subr.bf16.mxu0 %v1635
        %2284 = vmatpush1.bf16.msra.mxu0 %v1634
        %2285 = vmatprep.subr.bf16.mxu0 %v1639
        %2286 = vmatpush1.bf16.msra.mxu0 %v1638
        %2287 = vmatprep.subr.bf16.mxu0 %v1643
        %2288 = vmatpush1.bf16.msra.mxu0 %v1642
        %2289 = vmatprep.subr.bf16.mxu0 %v1647
        %2290 = vmatpush1.bf16.msra.mxu0 %v1646
        %2291 = vmatprep.subr.bf16.mxu0 %v1651
        %2292 = vmatpush1.bf16.msra.mxu0 %v1650
        %2293 = vmatprep.subr.bf16.mxu0 %v1655
        %2294 = vmatpush1.bf16.msra.mxu0 %v1654
        %2295 = vmatprep.subr.bf16.mxu0 %v1659
        %2296 = vmatpush1.bf16.msra.mxu0 %v1658
        %2297 = vmatprep.subr.bf16.mxu0 %v1663
        %2298 = vmatpush1.bf16.msra.mxu0 %v1662
        %2299 = vmatprep.subr.bf16.mxu0 %v1667
        %2300 = vmatpush1.bf16.msra.mxu0 %v1666
        %2301 = vmatprep.subr.bf16.mxu0 %v1671
        %2302 = vmatpush1.bf16.msra.mxu0 %v1670
        %2303 = vmatprep.mubr.bf16.mxu0 %v763
        %2304 = vmatmul.mubr.bf16.gmra.mrb[0].mxu0 %v762
        %v2305 = vpop.f32.mrb[0].mxu0
        %v2306 = vadd.f32 %v2263, %v2305
        %v2307 = vpop.f32.mrb[0].mxu0
        %v2308 = vadd.f32 %v2265, %v2307
        %v2309 = vpop.f32.mrb[0].mxu0
        %v2310 = vadd.f32 %v2267, %v2309
        %v2311 = vpop.f32.mrb[0].mxu0
        %v2312 = vadd.f32 %v2269, %v2311
        %2313 = vdwg.mxu0
        %2314 = vmatprep.subr.bf16.mxu0 %v1675
        %2315 = vmatpush1.bf16.msra.mxu0 %v1674
        %2316 = vmatprep.subr.bf16.mxu0 %v1679
        %2317 = vmatpush1.bf16.msra.mxu0 %v1678
        %2318 = vmatprep.subr.bf16.mxu0 %v1683
        %2319 = vmatpush1.bf16.msra.mxu0 %v1682
        %2320 = vmatprep.subr.bf16.mxu0 %v1687
        %2321 = vmatpush1.bf16.msra.mxu0 %v1686
        %2322 = vmatprep.subr.bf16.mxu0 %v1691
        %2323 = vmatpush1.bf16.msra.mxu0 %v1690
        %2324 = vmatprep.subr.bf16.mxu0 %v1695
        %2325 = vmatpush1.bf16.msra.mxu0 %v1694
        %2326 = vmatprep.subr.bf16.mxu0 %v1699
        %2327 = vmatpush1.bf16.msra.mxu0 %v1698
        %2328 = vmatprep.subr.bf16.mxu0 %v1703
        %2329 = vmatpush1.bf16.msra.mxu0 %v1702
        %2330 = vmatprep.subr.bf16.mxu0 %v1707
        %2331 = vmatpush1.bf16.msra.mxu0 %v1706
        %2332 = vmatprep.subr.bf16.mxu0 %v1711
        %2333 = vmatpush1.bf16.msra.mxu0 %v1710
        %2334 = vmatprep.subr.bf16.mxu0 %v1715
        %2335 = vmatpush1.bf16.msra.mxu0 %v1714
        %2336 = vmatprep.subr.bf16.mxu0 %v1719
        %2337 = vmatpush1.bf16.msra.mxu0 %v1718
        %2338 = vmatprep.subr.bf16.mxu0 %v1723
        %2339 = vmatpush1.bf16.msra.mxu0 %v1722
        %2340 = vmatprep.subr.bf16.mxu0 %v1727
        %2341 = vmatpush1.bf16.msra.mxu0 %v1726
        %2342 = vmatprep.subr.bf16.mxu0 %v1731
        %2343 = vmatpush1.bf16.msra.mxu0 %v1730
        %2344 = vmatprep.subr.bf16.mxu0 %v1735
        %2345 = vmatpush1.bf16.msra.mxu0 %v1734
        %2346 = vmatprep.mubr.bf16.mxu0 %v765
        %2347 = vmatmul.mubr.bf16.gmra.mrb[0].mxu0 %v764
        %v2348 = vpop.f32.mrb[0].mxu0
        %v2349 = vadd.f32 %v2306, %v2348
        %v2350 = vpop.f32.mrb[0].mxu0
        %v2351 = vadd.f32 %v2308, %v2350
        %v2352 = vpop.f32.mrb[0].mxu0
        %v2353 = vadd.f32 %v2310, %v2352
        %v2354 = vpop.f32.mrb[0].mxu0
        %v2355 = vadd.f32 %v2312, %v2354
        %2356 = vdwg.mxu0
        %2357 = vmatprep.subr.bf16.mxu0 %v1739
        %2358 = vmatpush1.bf16.msra.mxu0 %v1738
        %2359 = vmatprep.subr.bf16.mxu0 %v1743
        %2360 = vmatpush1.bf16.msra.mxu0 %v1742
        %2361 = vmatprep.subr.bf16.mxu0 %v1747
        %2362 = vmatpush1.bf16.msra.mxu0 %v1746
        %2363 = vmatprep.subr.bf16.mxu0 %v1751
        %2364 = vmatpush1.bf16.msra.mxu0 %v1750
        %2365 = vmatprep.subr.bf16.mxu0 %v1755
        %2366 = vmatpush1.bf16.msra.mxu0 %v1754
        %2367 = vmatprep.subr.bf16.mxu0 %v1759
        %2368 = vmatpush1.bf16.msra.mxu0 %v1758
        %2369 = vmatprep.subr.bf16.mxu0 %v1763
        %2370 = vmatpush1.bf16.msra.mxu0 %v1762
        %2371 = vmatprep.subr.bf16.mxu0 %v1767
        %2372 = vmatpush1.bf16.msra.mxu0 %v1766
        %2373 = vmatprep.subr.bf16.mxu0 %v1771
        %2374 = vmatpush1.bf16.msra.mxu0 %v1770
        %2375 = vmatprep.subr.bf16.mxu0 %v1775
        %2376 = vmatpush1.bf16.msra.mxu0 %v1774
        %2377 = vmatprep.subr.bf16.mxu0 %v1779
        %2378 = vmatpush1.bf16.msra.mxu0 %v1778
        %2379 = vmatprep.subr.bf16.mxu0 %v1783
        %2380 = vmatpush1.bf16.msra.mxu0 %v1782
        %2381 = vmatprep.subr.bf16.mxu0 %v1787
        %2382 = vmatpush1.bf16.msra.mxu0 %v1786
        %2383 = vmatprep.subr.bf16.mxu0 %v1791
        %2384 = vmatpush1.bf16.msra.mxu0 %v1790
        %2385 = vmatprep.subr.bf16.mxu0 %v1795
        %2386 = vmatpush1.bf16.msra.mxu0 %v1794
        %2387 = vmatprep.subr.bf16.mxu0 %v1799
        %2388 = vmatpush1.bf16.msra.mxu0 %v1798
        %2389 = vmatprep.mubr.bf16.mxu0 %v767
        %2390 = vmatmul.mubr.bf16.gmra.mrb[0].mxu0 %v766
        %v2391 = vpop.f32.mrb[0].mxu0
        %v2392 = vadd.f32 %v2349, %v2391
        %v2393 = vpop.f32.mrb[0].mxu0
        %v2394 = vadd.f32 %v2351, %v2393
        %v2395 = vpop.f32.mrb[0].mxu0
        %v2396 = vadd.f32 %v2353, %v2395
        %v2397 = vpop.f32.mrb[0].mxu0
        %v2398 = vadd.f32 %v2355, %v2397
        %2399 = vdwg.mxu0
        %v2400 = vadd.f32 %v464, %v2220
        %v2401 = vadd.f32 %v465, %v2222
        %v2402 = vadd.f32 %v466, %v2392
        %v2403 = vadd.f32 %v467, %v2394
        %v2404 = vadd.f32 %v468, %v2224
        %v2405 = vadd.f32 %v469, %v2226
        %v2406 = vadd.f32 %v470, %v2396
        %v2407 = vadd.f32 %v471, %v2398
        %2408 = vst [vmem:[#allocation2] sm:$0xff] %v2400
        %2409 = vst [vmem:[#allocation2 + $0x8] sm:$0xff] %v2401
        %2410 = vst [vmem:[#allocation2 + $0x10] sm:$0xff] %v2402
        %2411 = vst [vmem:[#allocation2 + $0x18] sm:$0xff] %v2403
        %2412 = vst [vmem:[#allocation2 + $0x20] sm:$0xff] %v2404
        %2413 = vst [vmem:[#allocation2 + $0x28] sm:$0xff] %v2405
        %2414 = vst [vmem:[#allocation2 + $0x30] sm:$0xff] %v2406
        %2415 = vst [vmem:[#allocation2 + $0x38] sm:$0xff] %v2407
        %v2416 = vld [vmem:[#allocation3] sm:$0xff]
        %v2417 = vld [vmem:[#allocation3 + $0x8] sm:$0xff]
        %v2418 = vld [vmem:[#allocation3 + $0x10] sm:$0xff]
        %v2419 = vld [vmem:[#allocation3 + $0x18] sm:$0xff]
        %v2420 = vld [vmem:[#allocation3 + $0x20] sm:$0xff]
        %v2421 = vld [vmem:[#allocation3 + $0x28] sm:$0xff]
        %v2422 = vld [vmem:[#allocation3 + $0x30] sm:$0xff]
        %v2423 = vld [vmem:[#allocation3 + $0x38] sm:$0xff]
        %v2424 = vld [vmem:[%s387] sm:$0xff]
        %v2425 = vld [vmem:[%s387 + $0x8] sm:$0xff]
        %v2426 = vld [vmem:[%s387 + $0x10] sm:$0xff]
        %v2427 = vld [vmem:[%s387 + $0x18] sm:$0xff]
        %v2428 = vld [vmem:[%s387 + $0x20] sm:$0xff]
        %v2429 = vld [vmem:[%s387 + $0x28] sm:$0xff]
        %v2430 = vld [vmem:[%s387 + $0x30] sm:$0xff]
        %v2431 = vld [vmem:[%s387 + $0x38] sm:$0xff]
        %v2432 = vld [vmem:[#allocation10] sm:$0xff]
        %v2433 = vld [vmem:[#allocation10 + $0x8] sm:$0xff]
        %v2434 = vld [vmem:[#allocation10 + $0x10] sm:$0xff]
        %v2435 = vld [vmem:[#allocation10 + $0x18] sm:$0xff]
        %v2436 = vld [vmem:[#allocation10 + $0x20] sm:$0xff]
        %v2437 = vld [vmem:[#allocation10 + $0x28] sm:$0xff]
        %v2438 = vld [vmem:[#allocation10 + $0x30] sm:$0xff]
        %v2439 = vld [vmem:[#allocation10 + $0x38] sm:$0xff]
        %v2440 = vld [vmem:[#allocation10 + $0x40] sm:$0xff]
        %v2441 = vld [vmem:[#allocation10 + $0x48] sm:$0xff]
        %v2442 = vld [vmem:[#allocation10 + $0x50] sm:$0xff]
        %v2443 = vld [vmem:[#allocation10 + $0x58] sm:$0xff]
        %v2444 = vld [vmem:[#allocation10 + $0x60] sm:$0xff]
        %v2445 = vld [vmem:[#allocation10 + $0x68] sm:$0xff]
        %v2446 = vld [vmem:[#allocation10 + $0x70] sm:$0xff]
        %v2447 = vld [vmem:[#allocation10 + $0x78] sm:$0xff]
        %v2448 = vld [vmem:[#allocation10 + $0x80] sm:$0xff]
        %v2449 = vld [vmem:[#allocation10 + $0x88] sm:$0xff]
        %v2450 = vld [vmem:[#allocation10 + $0x90] sm:$0xff]
        %v2451 = vld [vmem:[#allocation10 + $0x98] sm:$0xff]
        %v2452 = vld [vmem:[#allocation10 + $0xa0] sm:$0xff]
        %v2453 = vld [vmem:[#allocation10 + $0xa8] sm:$0xff]
        %v2454 = vld [vmem:[#allocation10 + $0xb0] sm:$0xff]
        %v2455 = vld [vmem:[#allocation10 + $0xb8] sm:$0xff]
        %v2456 = vld [vmem:[#allocation10 + $0xc0] sm:$0xff]
        %v2457 = vld [vmem:[#allocation10 + $0xc8] sm:$0xff]
        %v2458 = vld [vmem:[#allocation10 + $0xd0] sm:$0xff]
        %v2459 = vld [vmem:[#allocation10 + $0xd8] sm:$0xff]
        %v2460 = vld [vmem:[#allocation10 + $0xe0] sm:$0xff]
        %v2461 = vld [vmem:[#allocation10 + $0xe8] sm:$0xff]
        %v2462 = vld [vmem:[#allocation10 + $0xf0] sm:$0xff]
        %v2463 = vld [vmem:[#allocation10 + $0xf8] sm:$0xff]
        %v2464 = vld [vmem:[#allocation10 + $0x100] sm:$0xff]
        %v2465 = vld [vmem:[#allocation10 + $0x108] sm:$0xff]
        %v2466 = vld [vmem:[#allocation10 + $0x110] sm:$0xff]
        %v2467 = vld [vmem:[#allocation10 + $0x118] sm:$0xff]
        %v2468 = vld [vmem:[#allocation10 + $0x120] sm:$0xff]
        %v2469 = vld [vmem:[#allocation10 + $0x128] sm:$0xff]
        %v2470 = vld [vmem:[#allocation10 + $0x130] sm:$0xff]
        %v2471 = vld [vmem:[#allocation10 + $0x138] sm:$0xff]
        %v2472 = vld [vmem:[#allocation10 + $0x140] sm:$0xff]
        %v2473 = vld [vmem:[#allocation10 + $0x148] sm:$0xff]
        %v2474 = vld [vmem:[#allocation10 + $0x150] sm:$0xff]
        %v2475 = vld [vmem:[#allocation10 + $0x158] sm:$0xff]
        %v2476 = vld [vmem:[#allocation10 + $0x160] sm:$0xff]
        %v2477 = vld [vmem:[#allocation10 + $0x168] sm:$0xff]
        %v2478 = vld [vmem:[#allocation10 + $0x170] sm:$0xff]
        %v2479 = vld [vmem:[#allocation10 + $0x178] sm:$0xff]
        %v2480 = vld [vmem:[#allocation10 + $0x180] sm:$0xff]
        %v2481 = vld [vmem:[#allocation10 + $0x188] sm:$0xff]
        %v2482 = vld [vmem:[#allocation10 + $0x190] sm:$0xff]
        %v2483 = vld [vmem:[#allocation10 + $0x198] sm:$0xff]
        %v2484 = vld [vmem:[#allocation10 + $0x1a0] sm:$0xff]
        %v2485 = vld [vmem:[#allocation10 + $0x1a8] sm:$0xff]
        %v2486 = vld [vmem:[#allocation10 + $0x1b0] sm:$0xff]
        %v2487 = vld [vmem:[#allocation10 + $0x1b8] sm:$0xff]
        %v2488 = vld [vmem:[#allocation10 + $0x1c0] sm:$0xff]
        %v2489 = vld [vmem:[#allocation10 + $0x1c8] sm:$0xff]
        %v2490 = vld [vmem:[#allocation10 + $0x1d0] sm:$0xff]
        %v2491 = vld [vmem:[#allocation10 + $0x1d8] sm:$0xff]
        %v2492 = vld [vmem:[#allocation10 + $0x1e0] sm:$0xff]
        %v2493 = vld [vmem:[#allocation10 + $0x1e8] sm:$0xff]
        %v2494 = vld [vmem:[#allocation10 + $0x1f0] sm:$0xff]
        %v2495 = vld [vmem:[#allocation10 + $0x1f8] sm:$0xff]
        %v2496 = vld [vmem:[#allocation10 + $0x200] sm:$0xff]
        %v2497 = vld [vmem:[#allocation10 + $0x208] sm:$0xff]
        %v2498 = vld [vmem:[#allocation10 + $0x210] sm:$0xff]
        %v2499 = vld [vmem:[#allocation10 + $0x218] sm:$0xff]
        %v2500 = vld [vmem:[#allocation10 + $0x220] sm:$0xff]
        %v2501 = vld [vmem:[#allocation10 + $0x228] sm:$0xff]
        %v2502 = vld [vmem:[#allocation10 + $0x230] sm:$0xff]
        %v2503 = vld [vmem:[#allocation10 + $0x238] sm:$0xff]
        %v2504 = vld [vmem:[#allocation10 + $0x240] sm:$0xff]
        %v2505 = vld [vmem:[#allocation10 + $0x248] sm:$0xff]
        %v2506 = vld [vmem:[#allocation10 + $0x250] sm:$0xff]
        %v2507 = vld [vmem:[#allocation10 + $0x258] sm:$0xff]
        %v2508 = vld [vmem:[#allocation10 + $0x260] sm:$0xff]
        %v2509 = vld [vmem:[#allocation10 + $0x268] sm:$0xff]
        %v2510 = vld [vmem:[#allocation10 + $0x270] sm:$0xff]
        %v2511 = vld [vmem:[#allocation10 + $0x278] sm:$0xff]
        %v2512 = vld [vmem:[#allocation10 + $0x280] sm:$0xff]
        %v2513 = vld [vmem:[#allocation10 + $0x288] sm:$0xff]
        %v2514 = vld [vmem:[#allocation10 + $0x290] sm:$0xff]
        %v2515 = vld [vmem:[#allocation10 + $0x298] sm:$0xff]
        %v2516 = vld [vmem:[#allocation10 + $0x2a0] sm:$0xff]
        %v2517 = vld [vmem:[#allocation10 + $0x2a8] sm:$0xff]
        %v2518 = vld [vmem:[#allocation10 + $0x2b0] sm:$0xff]
        %v2519 = vld [vmem:[#allocation10 + $0x2b8] sm:$0xff]
        %v2520 = vld [vmem:[#allocation10 + $0x2c0] sm:$0xff]
        %v2521 = vld [vmem:[#allocation10 + $0x2c8] sm:$0xff]
        %v2522 = vld [vmem:[#allocation10 + $0x2d0] sm:$0xff]
        %v2523 = vld [vmem:[#allocation10 + $0x2d8] sm:$0xff]
        %v2524 = vld [vmem:[#allocation10 + $0x2e0] sm:$0xff]
        %v2525 = vld [vmem:[#allocation10 + $0x2e8] sm:$0xff]
        %v2526 = vld [vmem:[#allocation10 + $0x2f0] sm:$0xff]
        %v2527 = vld [vmem:[#allocation10 + $0x2f8] sm:$0xff]
        %v2528 = vld [vmem:[#allocation10 + $0x300] sm:$0xff]
        %v2529 = vld [vmem:[#allocation10 + $0x308] sm:$0xff]
        %v2530 = vld [vmem:[#allocation10 + $0x310] sm:$0xff]
        %v2531 = vld [vmem:[#allocation10 + $0x318] sm:$0xff]
        %v2532 = vld [vmem:[#allocation10 + $0x320] sm:$0xff]
        %v2533 = vld [vmem:[#allocation10 + $0x328] sm:$0xff]
        %v2534 = vld [vmem:[#allocation10 + $0x330] sm:$0xff]
        %v2535 = vld [vmem:[#allocation10 + $0x338] sm:$0xff]
        %v2536 = vld [vmem:[#allocation10 + $0x340] sm:$0xff]
        %v2537 = vld [vmem:[#allocation10 + $0x348] sm:$0xff]
        %v2538 = vld [vmem:[#allocation10 + $0x350] sm:$0xff]
        %v2539 = vld [vmem:[#allocation10 + $0x358] sm:$0xff]
        %v2540 = vld [vmem:[#allocation10 + $0x360] sm:$0xff]
        %v2541 = vld [vmem:[#allocation10 + $0x368] sm:$0xff]
        %v2542 = vld [vmem:[#allocation10 + $0x370] sm:$0xff]
        %v2543 = vld [vmem:[#allocation10 + $0x378] sm:$0xff]
        %v2544 = vld [vmem:[#allocation10 + $0x380] sm:$0xff]
        %v2545 = vld [vmem:[#allocation10 + $0x388] sm:$0xff]
        %v2546 = vld [vmem:[#allocation10 + $0x390] sm:$0xff]
        %v2547 = vld [vmem:[#allocation10 + $0x398] sm:$0xff]
        %v2548 = vld [vmem:[#allocation10 + $0x3a0] sm:$0xff]
        %v2549 = vld [vmem:[#allocation10 + $0x3a8] sm:$0xff]
        %v2550 = vld [vmem:[#allocation10 + $0x3b0] sm:$0xff]
        %v2551 = vld [vmem:[#allocation10 + $0x3b8] sm:$0xff]
        %v2552 = vld [vmem:[#allocation10 + $0x3c0] sm:$0xff]
        %v2553 = vld [vmem:[#allocation10 + $0x3c8] sm:$0xff]
        %v2554 = vld [vmem:[#allocation10 + $0x3d0] sm:$0xff]
        %v2555 = vld [vmem:[#allocation10 + $0x3d8] sm:$0xff]
        %v2556 = vld [vmem:[#allocation10 + $0x3e0] sm:$0xff]
        %v2557 = vld [vmem:[#allocation10 + $0x3e8] sm:$0xff]
        %v2558 = vld [vmem:[#allocation10 + $0x3f0] sm:$0xff]
        %v2559 = vld [vmem:[#allocation10 + $0x3f8] sm:$0xff]
        %v2560 = vld [vmem:[#allocation10 + $0x400] sm:$0xff]
        %v2561 = vld [vmem:[#allocation10 + $0x408] sm:$0xff]
        %v2562 = vld [vmem:[#allocation10 + $0x410] sm:$0xff]
        %v2563 = vld [vmem:[#allocation10 + $0x418] sm:$0xff]
        %v2564 = vld [vmem:[#allocation10 + $0x420] sm:$0xff]
        %v2565 = vld [vmem:[#allocation10 + $0x428] sm:$0xff]
        %v2566 = vld [vmem:[#allocation10 + $0x430] sm:$0xff]
        %v2567 = vld [vmem:[#allocation10 + $0x438] sm:$0xff]
        %v2568 = vld [vmem:[#allocation10 + $0x440] sm:$0xff]
        %v2569 = vld [vmem:[#allocation10 + $0x448] sm:$0xff]
        %v2570 = vld [vmem:[#allocation10 + $0x450] sm:$0xff]
        %v2571 = vld [vmem:[#allocation10 + $0x458] sm:$0xff]
        %v2572 = vld [vmem:[#allocation10 + $0x460] sm:$0xff]
        %v2573 = vld [vmem:[#allocation10 + $0x468] sm:$0xff]
        %v2574 = vld [vmem:[#allocation10 + $0x470] sm:$0xff]
        %v2575 = vld [vmem:[#allocation10 + $0x478] sm:$0xff]
        %v2576 = vld [vmem:[#allocation10 + $0x480] sm:$0xff]
        %v2577 = vld [vmem:[#allocation10 + $0x488] sm:$0xff]
        %v2578 = vld [vmem:[#allocation10 + $0x490] sm:$0xff]
        %v2579 = vld [vmem:[#allocation10 + $0x498] sm:$0xff]
        %v2580 = vld [vmem:[#allocation10 + $0x4a0] sm:$0xff]
        %v2581 = vld [vmem:[#allocation10 + $0x4a8] sm:$0xff]
        %v2582 = vld [vmem:[#allocation10 + $0x4b0] sm:$0xff]
        %v2583 = vld [vmem:[#allocation10 + $0x4b8] sm:$0xff]
        %v2584 = vld [vmem:[#allocation10 + $0x4c0] sm:$0xff]
        %v2585 = vld [vmem:[#allocation10 + $0x4c8] sm:$0xff]
        %v2586 = vld [vmem:[#allocation10 + $0x4d0] sm:$0xff]
        %v2587 = vld [vmem:[#allocation10 + $0x4d8] sm:$0xff]
        %v2588 = vld [vmem:[#allocation10 + $0x4e0] sm:$0xff]
        %v2589 = vld [vmem:[#allocation10 + $0x4e8] sm:$0xff]
        %v2590 = vld [vmem:[#allocation10 + $0x4f0] sm:$0xff]
        %v2591 = vld [vmem:[#allocation10 + $0x4f8] sm:$0xff]
        %v2592 = vld [vmem:[#allocation10 + $0x500] sm:$0xff]
        %v2593 = vld [vmem:[#allocation10 + $0x508] sm:$0xff]
        %v2594 = vld [vmem:[#allocation10 + $0x510] sm:$0xff]
        %v2595 = vld [vmem:[#allocation10 + $0x518] sm:$0xff]
        %v2596 = vld [vmem:[#allocation10 + $0x520] sm:$0xff]
        %v2597 = vld [vmem:[#allocation10 + $0x528] sm:$0xff]
        %v2598 = vld [vmem:[#allocation10 + $0x530] sm:$0xff]
        %v2599 = vld [vmem:[#allocation10 + $0x538] sm:$0xff]
        %v2600 = vld [vmem:[#allocation10 + $0x540] sm:$0xff]
        %v2601 = vld [vmem:[#allocation10 + $0x548] sm:$0xff]
        %v2602 = vld [vmem:[#allocation10 + $0x550] sm:$0xff]
        %v2603 = vld [vmem:[#allocation10 + $0x558] sm:$0xff]
        %v2604 = vld [vmem:[#allocation10 + $0x560] sm:$0xff]
        %v2605 = vld [vmem:[#allocation10 + $0x568] sm:$0xff]
        %v2606 = vld [vmem:[#allocation10 + $0x570] sm:$0xff]
        %v2607 = vld [vmem:[#allocation10 + $0x578] sm:$0xff]
        %v2608 = vld [vmem:[#allocation10 + $0x580] sm:$0xff]
        %v2609 = vld [vmem:[#allocation10 + $0x588] sm:$0xff]
        %v2610 = vld [vmem:[#allocation10 + $0x590] sm:$0xff]
        %v2611 = vld [vmem:[#allocation10 + $0x598] sm:$0xff]
        %v2612 = vld [vmem:[#allocation10 + $0x5a0] sm:$0xff]
        %v2613 = vld [vmem:[#allocation10 + $0x5a8] sm:$0xff]
        %v2614 = vld [vmem:[#allocation10 + $0x5b0] sm:$0xff]
        %v2615 = vld [vmem:[#allocation10 + $0x5b8] sm:$0xff]
        %v2616 = vld [vmem:[#allocation10 + $0x5c0] sm:$0xff]
        %v2617 = vld [vmem:[#allocation10 + $0x5c8] sm:$0xff]
        %v2618 = vld [vmem:[#allocation10 + $0x5d0] sm:$0xff]
        %v2619 = vld [vmem:[#allocation10 + $0x5d8] sm:$0xff]
        %v2620 = vld [vmem:[#allocation10 + $0x5e0] sm:$0xff]
        %v2621 = vld [vmem:[#allocation10 + $0x5e8] sm:$0xff]
        %v2622 = vld [vmem:[#allocation10 + $0x5f0] sm:$0xff]
        %v2623 = vld [vmem:[#allocation10 + $0x5f8] sm:$0xff]
        %v2624 = vld [vmem:[#allocation10 + $0x600] sm:$0xff]
        %v2625 = vld [vmem:[#allocation10 + $0x608] sm:$0xff]
        %v2626 = vld [vmem:[#allocation10 + $0x610] sm:$0xff]
        %v2627 = vld [vmem:[#allocation10 + $0x618] sm:$0xff]
        %v2628 = vld [vmem:[#allocation10 + $0x620] sm:$0xff]
        %v2629 = vld [vmem:[#allocation10 + $0x628] sm:$0xff]
        %v2630 = vld [vmem:[#allocation10 + $0x630] sm:$0xff]
        %v2631 = vld [vmem:[#allocation10 + $0x638] sm:$0xff]
        %v2632 = vld [vmem:[#allocation10 + $0x640] sm:$0xff]
        %v2633 = vld [vmem:[#allocation10 + $0x648] sm:$0xff]
        %v2634 = vld [vmem:[#allocation10 + $0x650] sm:$0xff]
        %v2635 = vld [vmem:[#allocation10 + $0x658] sm:$0xff]
        %v2636 = vld [vmem:[#allocation10 + $0x660] sm:$0xff]
        %v2637 = vld [vmem:[#allocation10 + $0x668] sm:$0xff]
        %v2638 = vld [vmem:[#allocation10 + $0x670] sm:$0xff]
        %v2639 = vld [vmem:[#allocation10 + $0x678] sm:$0xff]
        %v2640 = vld [vmem:[#allocation10 + $0x680] sm:$0xff]
        %v2641 = vld [vmem:[#allocation10 + $0x688] sm:$0xff]
        %v2642 = vld [vmem:[#allocation10 + $0x690] sm:$0xff]
        %v2643 = vld [vmem:[#allocation10 + $0x698] sm:$0xff]
        %v2644 = vld [vmem:[#allocation10 + $0x6a0] sm:$0xff]
        %v2645 = vld [vmem:[#allocation10 + $0x6a8] sm:$0xff]
        %v2646 = vld [vmem:[#allocation10 + $0x6b0] sm:$0xff]
        %v2647 = vld [vmem:[#allocation10 + $0x6b8] sm:$0xff]
        %v2648 = vld [vmem:[#allocation10 + $0x6c0] sm:$0xff]
        %v2649 = vld [vmem:[#allocation10 + $0x6c8] sm:$0xff]
        %v2650 = vld [vmem:[#allocation10 + $0x6d0] sm:$0xff]
        %v2651 = vld [vmem:[#allocation10 + $0x6d8] sm:$0xff]
        %v2652 = vld [vmem:[#allocation10 + $0x6e0] sm:$0xff]
        %v2653 = vld [vmem:[#allocation10 + $0x6e8] sm:$0xff]
        %v2654 = vld [vmem:[#allocation10 + $0x6f0] sm:$0xff]
        %v2655 = vld [vmem:[#allocation10 + $0x6f8] sm:$0xff]
        %v2656 = vld [vmem:[#allocation10 + $0x700] sm:$0xff]
        %v2657 = vld [vmem:[#allocation10 + $0x708] sm:$0xff]
        %v2658 = vld [vmem:[#allocation10 + $0x710] sm:$0xff]
        %v2659 = vld [vmem:[#allocation10 + $0x718] sm:$0xff]
        %v2660 = vld [vmem:[#allocation10 + $0x720] sm:$0xff]
        %v2661 = vld [vmem:[#allocation10 + $0x728] sm:$0xff]
        %v2662 = vld [vmem:[#allocation10 + $0x730] sm:$0xff]
        %v2663 = vld [vmem:[#allocation10 + $0x738] sm:$0xff]
        %v2664 = vld [vmem:[#allocation10 + $0x740] sm:$0xff]
        %v2665 = vld [vmem:[#allocation10 + $0x748] sm:$0xff]
        %v2666 = vld [vmem:[#allocation10 + $0x750] sm:$0xff]
        %v2667 = vld [vmem:[#allocation10 + $0x758] sm:$0xff]
        %v2668 = vld [vmem:[#allocation10 + $0x760] sm:$0xff]
        %v2669 = vld [vmem:[#allocation10 + $0x768] sm:$0xff]
        %v2670 = vld [vmem:[#allocation10 + $0x770] sm:$0xff]
        %v2671 = vld [vmem:[#allocation10 + $0x778] sm:$0xff]
        %v2672 = vld [vmem:[#allocation10 + $0x780] sm:$0xff]
        %v2673 = vld [vmem:[#allocation10 + $0x788] sm:$0xff]
        %v2674 = vld [vmem:[#allocation10 + $0x790] sm:$0xff]
        %v2675 = vld [vmem:[#allocation10 + $0x798] sm:$0xff]
        %v2676 = vld [vmem:[#allocation10 + $0x7a0] sm:$0xff]
        %v2677 = vld [vmem:[#allocation10 + $0x7a8] sm:$0xff]
        %v2678 = vld [vmem:[#allocation10 + $0x7b0] sm:$0xff]
        %v2679 = vld [vmem:[#allocation10 + $0x7b8] sm:$0xff]
        %v2680 = vld [vmem:[#allocation10 + $0x7c0] sm:$0xff]
        %v2681 = vld [vmem:[#allocation10 + $0x7c8] sm:$0xff]
        %v2682 = vld [vmem:[#allocation10 + $0x7d0] sm:$0xff]
        %v2683 = vld [vmem:[#allocation10 + $0x7d8] sm:$0xff]
        %v2684 = vld [vmem:[#allocation10 + $0x7e0] sm:$0xff]
        %v2685 = vld [vmem:[#allocation10 + $0x7e8] sm:$0xff]
        %v2686 = vld [vmem:[#allocation10 + $0x7f0] sm:$0xff]
        %v2687 = vld [vmem:[#allocation10 + $0x7f8] sm:$0xff]
        %v2696 = vunpack.c.l.b16 %v2424
        %v2697 = vunpack.c.h.b16 %v2424
        %v2698 = vunpack.c.l.b16 %v2425
        %v2699 = vunpack.c.h.b16 %v2425
        %v2700 = vunpack.c.l.b16 %v2426
        %v2701 = vunpack.c.h.b16 %v2426
        %v2702 = vunpack.c.l.b16 %v2427
        %v2703 = vunpack.c.h.b16 %v2427
        %v2704 = vunpack.c.l.b16 %v2428
        %v2705 = vunpack.c.h.b16 %v2428
        %v2706 = vunpack.c.l.b16 %v2429
        %v2707 = vunpack.c.h.b16 %v2429
        %v2708 = vunpack.c.l.b16 %v2430
        %v2709 = vunpack.c.h.b16 %v2430
        %v2710 = vunpack.c.l.b16 %v2431
        %v2711 = vunpack.c.h.b16 %v2431
        %v2712 = vpack.c.b16 %v2704, %v2696
        %v2713 = vpack.c.b16 %v2705, %v2697
        %v2714 = vpack.c.b16 %v2706, %v2698
        %v2715 = vpack.c.b16 %v2707, %v2699
        %v2716 = vpack.c.b16 %v2708, %v2700
        %v2717 = vpack.c.b16 %v2709, %v2701
        %v2718 = vpack.c.b16 %v2710, %v2702
        %v2719 = vpack.c.b16 %v2711, %v2703
        %v2984 = vunpack.c.l.b16 %v2432
        %v2985 = vunpack.c.h.b16 %v2432
        %v2986 = vunpack.c.l.b16 %v2433
        %v2987 = vunpack.c.h.b16 %v2433
        %v2988 = vunpack.c.l.b16 %v2434
        %v2989 = vunpack.c.h.b16 %v2434
        %v2990 = vunpack.c.l.b16 %v2435
        %v2991 = vunpack.c.h.b16 %v2435
        %v2992 = vunpack.c.l.b16 %v2436
        %v2993 = vunpack.c.h.b16 %v2436
        %v2994 = vunpack.c.l.b16 %v2437
        %v2995 = vunpack.c.h.b16 %v2437
        %v2996 = vunpack.c.l.b16 %v2438
        %v2997 = vunpack.c.h.b16 %v2438
        %v2998 = vunpack.c.l.b16 %v2439
        %v2999 = vunpack.c.h.b16 %v2439
        %v3000 = vunpack.c.l.b16 %v2440
        %v3001 = vunpack.c.h.b16 %v2440
        %v3002 = vunpack.c.l.b16 %v2441
        %v3003 = vunpack.c.h.b16 %v2441
        %v3004 = vunpack.c.l.b16 %v2442
        %v3005 = vunpack.c.h.b16 %v2442
        %v3006 = vunpack.c.l.b16 %v2443
        %v3007 = vunpack.c.h.b16 %v2443
        %v3008 = vunpack.c.l.b16 %v2444
        %v3009 = vunpack.c.h.b16 %v2444
        %v3010 = vunpack.c.l.b16 %v2445
        %v3011 = vunpack.c.h.b16 %v2445
        %v3012 = vunpack.c.l.b16 %v2446
        %v3013 = vunpack.c.h.b16 %v2446
        %v3014 = vunpack.c.l.b16 %v2447
        %v3015 = vunpack.c.h.b16 %v2447
        %v3016 = vunpack.c.l.b16 %v2448
        %v3017 = vunpack.c.h.b16 %v2448
        %v3018 = vunpack.c.l.b16 %v2449
        %v3019 = vunpack.c.h.b16 %v2449
        %v3020 = vunpack.c.l.b16 %v2450
        %v3021 = vunpack.c.h.b16 %v2450
        %v3022 = vunpack.c.l.b16 %v2451
        %v3023 = vunpack.c.h.b16 %v2451
        %v3024 = vunpack.c.l.b16 %v2452
        %v3025 = vunpack.c.h.b16 %v2452
        %v3026 = vunpack.c.l.b16 %v2453
        %v3027 = vunpack.c.h.b16 %v2453
        %v3028 = vunpack.c.l.b16 %v2454
        %v3029 = vunpack.c.h.b16 %v2454
        %v3030 = vunpack.c.l.b16 %v2455
        %v3031 = vunpack.c.h.b16 %v2455
        %v3032 = vunpack.c.l.b16 %v2456
        %v3033 = vunpack.c.h.b16 %v2456
        %v3034 = vunpack.c.l.b16 %v2457
        %v3035 = vunpack.c.h.b16 %v2457
        %v3036 = vunpack.c.l.b16 %v2458
        %v3037 = vunpack.c.h.b16 %v2458
        %v3038 = vunpack.c.l.b16 %v2459
        %v3039 = vunpack.c.h.b16 %v2459
        %v3040 = vunpack.c.l.b16 %v2460
        %v3041 = vunpack.c.h.b16 %v2460
        %v3042 = vunpack.c.l.b16 %v2461
        %v3043 = vunpack.c.h.b16 %v2461
        %v3044 = vunpack.c.l.b16 %v2462
        %v3045 = vunpack.c.h.b16 %v2462
        %v3046 = vunpack.c.l.b16 %v2463
        %v3047 = vunpack.c.h.b16 %v2463
        %v3048 = vunpack.c.l.b16 %v2464
        %v3049 = vunpack.c.h.b16 %v2464
        %v3050 = vunpack.c.l.b16 %v2465
        %v3051 = vunpack.c.h.b16 %v2465
        %v3052 = vunpack.c.l.b16 %v2466
        %v3053 = vunpack.c.h.b16 %v2466
        %v3054 = vunpack.c.l.b16 %v2467
        %v3055 = vunpack.c.h.b16 %v2467
        %v3056 = vunpack.c.l.b16 %v2468
        %v3057 = vunpack.c.h.b16 %v2468
        %v3058 = vunpack.c.l.b16 %v2469
        %v3059 = vunpack.c.h.b16 %v2469
        %v3060 = vunpack.c.l.b16 %v2470
        %v3061 = vunpack.c.h.b16 %v2470
        %v3062 = vunpack.c.l.b16 %v2471
        %v3063 = vunpack.c.h.b16 %v2471
        %v3064 = vunpack.c.l.b16 %v2472
        %v3065 = vunpack.c.h.b16 %v2472
        %v3066 = vunpack.c.l.b16 %v2473
        %v3067 = vunpack.c.h.b16 %v2473
        %v3068 = vunpack.c.l.b16 %v2474
        %v3069 = vunpack.c.h.b16 %v2474
        %v3070 = vunpack.c.l.b16 %v2475
        %v3071 = vunpack.c.h.b16 %v2475
        %v3072 = vunpack.c.l.b16 %v2476
        %v3073 = vunpack.c.h.b16 %v2476
        %v3074 = vunpack.c.l.b16 %v2477
        %v3075 = vunpack.c.h.b16 %v2477
        %v3076 = vunpack.c.l.b16 %v2478
        %v3077 = vunpack.c.h.b16 %v2478
        %v3078 = vunpack.c.l.b16 %v2479
        %v3079 = vunpack.c.h.b16 %v2479
        %v3080 = vunpack.c.l.b16 %v2480
        %v3081 = vunpack.c.h.b16 %v2480
        %v3082 = vunpack.c.l.b16 %v2481
        %v3083 = vunpack.c.h.b16 %v2481
        %v3084 = vunpack.c.l.b16 %v2482
        %v3085 = vunpack.c.h.b16 %v2482
        %v3086 = vunpack.c.l.b16 %v2483
        %v3087 = vunpack.c.h.b16 %v2483
        %v3088 = vunpack.c.l.b16 %v2484
        %v3089 = vunpack.c.h.b16 %v2484
        %v3090 = vunpack.c.l.b16 %v2485
        %v3091 = vunpack.c.h.b16 %v2485
        %v3092 = vunpack.c.l.b16 %v2486
        %v3093 = vunpack.c.h.b16 %v2486
        %v3094 = vunpack.c.l.b16 %v2487
        %v3095 = vunpack.c.h.b16 %v2487
        %v3096 = vunpack.c.l.b16 %v2488
        %v3097 = vunpack.c.h.b16 %v2488
        %v3098 = vunpack.c.l.b16 %v2489
        %v3099 = vunpack.c.h.b16 %v2489
        %v3100 = vunpack.c.l.b16 %v2490
        %v3101 = vunpack.c.h.b16 %v2490
        %v3102 = vunpack.c.l.b16 %v2491
        %v3103 = vunpack.c.h.b16 %v2491
        %v3104 = vunpack.c.l.b16 %v2492
        %v3105 = vunpack.c.h.b16 %v2492
        %v3106 = vunpack.c.l.b16 %v2493
        %v3107 = vunpack.c.h.b16 %v2493
        %v3108 = vunpack.c.l.b16 %v2494
        %v3109 = vunpack.c.h.b16 %v2494
        %v3110 = vunpack.c.l.b16 %v2495
        %v3111 = vunpack.c.h.b16 %v2495
        %v3112 = vunpack.c.l.b16 %v2496
        %v3113 = vunpack.c.h.b16 %v2496
        %v3114 = vunpack.c.l.b16 %v2497
        %v3115 = vunpack.c.h.b16 %v2497
        %v3116 = vunpack.c.l.b16 %v2498
        %v3117 = vunpack.c.h.b16 %v2498
        %v3118 = vunpack.c.l.b16 %v2499
        %v3119 = vunpack.c.h.b16 %v2499
        %v3120 = vunpack.c.l.b16 %v2500
        %v3121 = vunpack.c.h.b16 %v2500
        %v3122 = vunpack.c.l.b16 %v2501
        %v3123 = vunpack.c.h.b16 %v2501
        %v3124 = vunpack.c.l.b16 %v2502
        %v3125 = vunpack.c.h.b16 %v2502
        %v3126 = vunpack.c.l.b16 %v2503
        %v3127 = vunpack.c.h.b16 %v2503
        %v3128 = vunpack.c.l.b16 %v2504
        %v3129 = vunpack.c.h.b16 %v2504
        %v3130 = vunpack.c.l.b16 %v2505
        %v3131 = vunpack.c.h.b16 %v2505
        %v3132 = vunpack.c.l.b16 %v2506
        %v3133 = vunpack.c.h.b16 %v2506
        %v3134 = vunpack.c.l.b16 %v2507
        %v3135 = vunpack.c.h.b16 %v2507
        %v3136 = vunpack.c.l.b16 %v2508
        %v3137 = vunpack.c.h.b16 %v2508
        %v3138 = vunpack.c.l.b16 %v2509
        %v3139 = vunpack.c.h.b16 %v2509
        %v3140 = vunpack.c.l.b16 %v2510
        %v3141 = vunpack.c.h.b16 %v2510
        %v3142 = vunpack.c.l.b16 %v2511
        %v3143 = vunpack.c.h.b16 %v2511
        %v3144 = vunpack.c.l.b16 %v2512
        %v3145 = vunpack.c.h.b16 %v2512
        %v3146 = vunpack.c.l.b16 %v2513
        %v3147 = vunpack.c.h.b16 %v2513
        %v3148 = vunpack.c.l.b16 %v2514
        %v3149 = vunpack.c.h.b16 %v2514
        %v3150 = vunpack.c.l.b16 %v2515
        %v3151 = vunpack.c.h.b16 %v2515
        %v3152 = vunpack.c.l.b16 %v2516
        %v3153 = vunpack.c.h.b16 %v2516
        %v3154 = vunpack.c.l.b16 %v2517
        %v3155 = vunpack.c.h.b16 %v2517
        %v3156 = vunpack.c.l.b16 %v2518
        %v3157 = vunpack.c.h.b16 %v2518
        %v3158 = vunpack.c.l.b16 %v2519
        %v3159 = vunpack.c.h.b16 %v2519
        %v3160 = vunpack.c.l.b16 %v2520
        %v3161 = vunpack.c.h.b16 %v2520
        %v3162 = vunpack.c.l.b16 %v2521
        %v3163 = vunpack.c.h.b16 %v2521
        %v3164 = vunpack.c.l.b16 %v2522
        %v3165 = vunpack.c.h.b16 %v2522
        %v3166 = vunpack.c.l.b16 %v2523
        %v3167 = vunpack.c.h.b16 %v2523
        %v3168 = vunpack.c.l.b16 %v2524
        %v3169 = vunpack.c.h.b16 %v2524
        %v3170 = vunpack.c.l.b16 %v2525
        %v3171 = vunpack.c.h.b16 %v2525
        %v3172 = vunpack.c.l.b16 %v2526
        %v3173 = vunpack.c.h.b16 %v2526
        %v3174 = vunpack.c.l.b16 %v2527
        %v3175 = vunpack.c.h.b16 %v2527
        %v3176 = vunpack.c.l.b16 %v2528
        %v3177 = vunpack.c.h.b16 %v2528
        %v3178 = vunpack.c.l.b16 %v2529
        %v3179 = vunpack.c.h.b16 %v2529
        %v3180 = vunpack.c.l.b16 %v2530
        %v3181 = vunpack.c.h.b16 %v2530
        %v3182 = vunpack.c.l.b16 %v2531
        %v3183 = vunpack.c.h.b16 %v2531
        %v3184 = vunpack.c.l.b16 %v2532
        %v3185 = vunpack.c.h.b16 %v2532
        %v3186 = vunpack.c.l.b16 %v2533
        %v3187 = vunpack.c.h.b16 %v2533
        %v3188 = vunpack.c.l.b16 %v2534
        %v3189 = vunpack.c.h.b16 %v2534
        %v3190 = vunpack.c.l.b16 %v2535
        %v3191 = vunpack.c.h.b16 %v2535
        %v3192 = vunpack.c.l.b16 %v2536
        %v3193 = vunpack.c.h.b16 %v2536
        %v3194 = vunpack.c.l.b16 %v2537
        %v3195 = vunpack.c.h.b16 %v2537
        %v3196 = vunpack.c.l.b16 %v2538
        %v3197 = vunpack.c.h.b16 %v2538
        %v3198 = vunpack.c.l.b16 %v2539
        %v3199 = vunpack.c.h.b16 %v2539
        %v3200 = vunpack.c.l.b16 %v2540
        %v3201 = vunpack.c.h.b16 %v2540
        %v3202 = vunpack.c.l.b16 %v2541
        %v3203 = vunpack.c.h.b16 %v2541
        %v3204 = vunpack.c.l.b16 %v2542
        %v3205 = vunpack.c.h.b16 %v2542
        %v3206 = vunpack.c.l.b16 %v2543
        %v3207 = vunpack.c.h.b16 %v2543
        %v3208 = vunpack.c.l.b16 %v2544
        %v3209 = vunpack.c.h.b16 %v2544
        %v3210 = vunpack.c.l.b16 %v2545
        %v3211 = vunpack.c.h.b16 %v2545
        %v3212 = vunpack.c.l.b16 %v2546
        %v3213 = vunpack.c.h.b16 %v2546
        %v3214 = vunpack.c.l.b16 %v2547
        %v3215 = vunpack.c.h.b16 %v2547
        %v3216 = vunpack.c.l.b16 %v2548
        %v3217 = vunpack.c.h.b16 %v2548
        %v3218 = vunpack.c.l.b16 %v2549
        %v3219 = vunpack.c.h.b16 %v2549
        %v3220 = vunpack.c.l.b16 %v2550
        %v3221 = vunpack.c.h.b16 %v2550
        %v3222 = vunpack.c.l.b16 %v2551
        %v3223 = vunpack.c.h.b16 %v2551
        %v3224 = vunpack.c.l.b16 %v2552
        %v3225 = vunpack.c.h.b16 %v2552
        %v3226 = vunpack.c.l.b16 %v2553
        %v3227 = vunpack.c.h.b16 %v2553
        %v3228 = vunpack.c.l.b16 %v2554
        %v3229 = vunpack.c.h.b16 %v2554
        %v3230 = vunpack.c.l.b16 %v2555
        %v3231 = vunpack.c.h.b16 %v2555
        %v3232 = vunpack.c.l.b16 %v2556
        %v3233 = vunpack.c.h.b16 %v2556
        %v3234 = vunpack.c.l.b16 %v2557
        %v3235 = vunpack.c.h.b16 %v2557
        %v3236 = vunpack.c.l.b16 %v2558
        %v3237 = vunpack.c.h.b16 %v2558
        %v3238 = vunpack.c.l.b16 %v2559
        %v3239 = vunpack.c.h.b16 %v2559
        %v3240 = vunpack.c.l.b16 %v2560
        %v3241 = vunpack.c.h.b16 %v2560
        %v3242 = vunpack.c.l.b16 %v2561
        %v3243 = vunpack.c.h.b16 %v2561
        %v3244 = vunpack.c.l.b16 %v2562
        %v3245 = vunpack.c.h.b16 %v2562
        %v3246 = vunpack.c.l.b16 %v2563
        %v3247 = vunpack.c.h.b16 %v2563
        %v3248 = vunpack.c.l.b16 %v2564
        %v3249 = vunpack.c.h.b16 %v2564
        %v3250 = vunpack.c.l.b16 %v2565
        %v3251 = vunpack.c.h.b16 %v2565
        %v3252 = vunpack.c.l.b16 %v2566
        %v3253 = vunpack.c.h.b16 %v2566
        %v3254 = vunpack.c.l.b16 %v2567
        %v3255 = vunpack.c.h.b16 %v2567
        %v3256 = vunpack.c.l.b16 %v2568
        %v3257 = vunpack.c.h.b16 %v2568
        %v3258 = vunpack.c.l.b16 %v2569
        %v3259 = vunpack.c.h.b16 %v2569
        %v3260 = vunpack.c.l.b16 %v2570
        %v3261 = vunpack.c.h.b16 %v2570
        %v3262 = vunpack.c.l.b16 %v2571
        %v3263 = vunpack.c.h.b16 %v2571
        %v3264 = vunpack.c.l.b16 %v2572
        %v3265 = vunpack.c.h.b16 %v2572
        %v3266 = vunpack.c.l.b16 %v2573
        %v3267 = vunpack.c.h.b16 %v2573
        %v3268 = vunpack.c.l.b16 %v2574
        %v3269 = vunpack.c.h.b16 %v2574
        %v3270 = vunpack.c.l.b16 %v2575
        %v3271 = vunpack.c.h.b16 %v2575
        %v3272 = vunpack.c.l.b16 %v2576
        %v3273 = vunpack.c.h.b16 %v2576
        %v3274 = vunpack.c.l.b16 %v2577
        %v3275 = vunpack.c.h.b16 %v2577
        %v3276 = vunpack.c.l.b16 %v2578
        %v3277 = vunpack.c.h.b16 %v2578
        %v3278 = vunpack.c.l.b16 %v2579
        %v3279 = vunpack.c.h.b16 %v2579
        %v3280 = vunpack.c.l.b16 %v2580
        %v3281 = vunpack.c.h.b16 %v2580
        %v3282 = vunpack.c.l.b16 %v2581
        %v3283 = vunpack.c.h.b16 %v2581
        %v3284 = vunpack.c.l.b16 %v2582
        %v3285 = vunpack.c.h.b16 %v2582
        %v3286 = vunpack.c.l.b16 %v2583
        %v3287 = vunpack.c.h.b16 %v2583
        %v3288 = vunpack.c.l.b16 %v2584
        %v3289 = vunpack.c.h.b16 %v2584
        %v3290 = vunpack.c.l.b16 %v2585
        %v3291 = vunpack.c.h.b16 %v2585
        %v3292 = vunpack.c.l.b16 %v2586
        %v3293 = vunpack.c.h.b16 %v2586
        %v3294 = vunpack.c.l.b16 %v2587
        %v3295 = vunpack.c.h.b16 %v2587
        %v3296 = vunpack.c.l.b16 %v2588
        %v3297 = vunpack.c.h.b16 %v2588
        %v3298 = vunpack.c.l.b16 %v2589
        %v3299 = vunpack.c.h.b16 %v2589
        %v3300 = vunpack.c.l.b16 %v2590
        %v3301 = vunpack.c.h.b16 %v2590
        %v3302 = vunpack.c.l.b16 %v2591
        %v3303 = vunpack.c.h.b16 %v2591
        %v3304 = vunpack.c.l.b16 %v2592
        %v3305 = vunpack.c.h.b16 %v2592
        %v3306 = vunpack.c.l.b16 %v2593
        %v3307 = vunpack.c.h.b16 %v2593
        %v3308 = vunpack.c.l.b16 %v2594
        %v3309 = vunpack.c.h.b16 %v2594
        %v3310 = vunpack.c.l.b16 %v2595
        %v3311 = vunpack.c.h.b16 %v2595
        %v3312 = vunpack.c.l.b16 %v2596
        %v3313 = vunpack.c.h.b16 %v2596
        %v3314 = vunpack.c.l.b16 %v2597
        %v3315 = vunpack.c.h.b16 %v2597
        %v3316 = vunpack.c.l.b16 %v2598
        %v3317 = vunpack.c.h.b16 %v2598
        %v3318 = vunpack.c.l.b16 %v2599
        %v3319 = vunpack.c.h.b16 %v2599
        %v3320 = vunpack.c.l.b16 %v2600
        %v3321 = vunpack.c.h.b16 %v2600
        %v3322 = vunpack.c.l.b16 %v2601
        %v3323 = vunpack.c.h.b16 %v2601
        %v3324 = vunpack.c.l.b16 %v2602
        %v3325 = vunpack.c.h.b16 %v2602
        %v3326 = vunpack.c.l.b16 %v2603
        %v3327 = vunpack.c.h.b16 %v2603
        %v3328 = vunpack.c.l.b16 %v2604
        %v3329 = vunpack.c.h.b16 %v2604
        %v3330 = vunpack.c.l.b16 %v2605
        %v3331 = vunpack.c.h.b16 %v2605
        %v3332 = vunpack.c.l.b16 %v2606
        %v3333 = vunpack.c.h.b16 %v2606
        %v3334 = vunpack.c.l.b16 %v2607
        %v3335 = vunpack.c.h.b16 %v2607
        %v3336 = vunpack.c.l.b16 %v2608
        %v3337 = vunpack.c.h.b16 %v2608
        %v3338 = vunpack.c.l.b16 %v2609
        %v3339 = vunpack.c.h.b16 %v2609
        %v3340 = vunpack.c.l.b16 %v2610
        %v3341 = vunpack.c.h.b16 %v2610
        %v3342 = vunpack.c.l.b16 %v2611
        %v3343 = vunpack.c.h.b16 %v2611
        %v3344 = vunpack.c.l.b16 %v2612
        %v3345 = vunpack.c.h.b16 %v2612
        %v3346 = vunpack.c.l.b16 %v2613
        %v3347 = vunpack.c.h.b16 %v2613
        %v3348 = vunpack.c.l.b16 %v2614
        %v3349 = vunpack.c.h.b16 %v2614
        %v3350 = vunpack.c.l.b16 %v2615
        %v3351 = vunpack.c.h.b16 %v2615
        %v3352 = vunpack.c.l.b16 %v2616
        %v3353 = vunpack.c.h.b16 %v2616
        %v3354 = vunpack.c.l.b16 %v2617
        %v3355 = vunpack.c.h.b16 %v2617
        %v3356 = vunpack.c.l.b16 %v2618
        %v3357 = vunpack.c.h.b16 %v2618
        %v3358 = vunpack.c.l.b16 %v2619
        %v3359 = vunpack.c.h.b16 %v2619
        %v3360 = vunpack.c.l.b16 %v2620
        %v3361 = vunpack.c.h.b16 %v2620
        %v3362 = vunpack.c.l.b16 %v2621
        %v3363 = vunpack.c.h.b16 %v2621
        %v3364 = vunpack.c.l.b16 %v2622
        %v3365 = vunpack.c.h.b16 %v2622
        %v3366 = vunpack.c.l.b16 %v2623
        %v3367 = vunpack.c.h.b16 %v2623
        %v3368 = vunpack.c.l.b16 %v2624
        %v3369 = vunpack.c.h.b16 %v2624
        %v3370 = vunpack.c.l.b16 %v2625
        %v3371 = vunpack.c.h.b16 %v2625
        %v3372 = vunpack.c.l.b16 %v2626
        %v3373 = vunpack.c.h.b16 %v2626
        %v3374 = vunpack.c.l.b16 %v2627
        %v3375 = vunpack.c.h.b16 %v2627
        %v3376 = vunpack.c.l.b16 %v2628
        %v3377 = vunpack.c.h.b16 %v2628
        %v3378 = vunpack.c.l.b16 %v2629
        %v3379 = vunpack.c.h.b16 %v2629
        %v3380 = vunpack.c.l.b16 %v2630
        %v3381 = vunpack.c.h.b16 %v2630
        %v3382 = vunpack.c.l.b16 %v2631
        %v3383 = vunpack.c.h.b16 %v2631
        %v3384 = vunpack.c.l.b16 %v2632
        %v3385 = vunpack.c.h.b16 %v2632
        %v3386 = vunpack.c.l.b16 %v2633
        %v3387 = vunpack.c.h.b16 %v2633
        %v3388 = vunpack.c.l.b16 %v2634
        %v3389 = vunpack.c.h.b16 %v2634
        %v3390 = vunpack.c.l.b16 %v2635
        %v3391 = vunpack.c.h.b16 %v2635
        %v3392 = vunpack.c.l.b16 %v2636
        %v3393 = vunpack.c.h.b16 %v2636
        %v3394 = vunpack.c.l.b16 %v2637
        %v3395 = vunpack.c.h.b16 %v2637
        %v3396 = vunpack.c.l.b16 %v2638
        %v3397 = vunpack.c.h.b16 %v2638
        %v3398 = vunpack.c.l.b16 %v2639
        %v3399 = vunpack.c.h.b16 %v2639
        %v3400 = vunpack.c.l.b16 %v2640
        %v3401 = vunpack.c.h.b16 %v2640
        %v3402 = vunpack.c.l.b16 %v2641
        %v3403 = vunpack.c.h.b16 %v2641
        %v3404 = vunpack.c.l.b16 %v2642
        %v3405 = vunpack.c.h.b16 %v2642
        %v3406 = vunpack.c.l.b16 %v2643
        %v3407 = vunpack.c.h.b16 %v2643
        %v3408 = vunpack.c.l.b16 %v2644
        %v3409 = vunpack.c.h.b16 %v2644
        %v3410 = vunpack.c.l.b16 %v2645
        %v3411 = vunpack.c.h.b16 %v2645
        %v3412 = vunpack.c.l.b16 %v2646
        %v3413 = vunpack.c.h.b16 %v2646
        %v3414 = vunpack.c.l.b16 %v2647
        %v3415 = vunpack.c.h.b16 %v2647
        %v3416 = vunpack.c.l.b16 %v2648
        %v3417 = vunpack.c.h.b16 %v2648
        %v3418 = vunpack.c.l.b16 %v2649
        %v3419 = vunpack.c.h.b16 %v2649
        %v3420 = vunpack.c.l.b16 %v2650
        %v3421 = vunpack.c.h.b16 %v2650
        %v3422 = vunpack.c.l.b16 %v2651
        %v3423 = vunpack.c.h.b16 %v2651
        %v3424 = vunpack.c.l.b16 %v2652
        %v3425 = vunpack.c.h.b16 %v2652
        %v3426 = vunpack.c.l.b16 %v2653
        %v3427 = vunpack.c.h.b16 %v2653
        %v3428 = vunpack.c.l.b16 %v2654
        %v3429 = vunpack.c.h.b16 %v2654
        %v3430 = vunpack.c.l.b16 %v2655
        %v3431 = vunpack.c.h.b16 %v2655
        %v3432 = vunpack.c.l.b16 %v2656
        %v3433 = vunpack.c.h.b16 %v2656
        %v3434 = vunpack.c.l.b16 %v2657
        %v3435 = vunpack.c.h.b16 %v2657
        %v3436 = vunpack.c.l.b16 %v2658
        %v3437 = vunpack.c.h.b16 %v2658
        %v3438 = vunpack.c.l.b16 %v2659
        %v3439 = vunpack.c.h.b16 %v2659
        %v3440 = vunpack.c.l.b16 %v2660
        %v3441 = vunpack.c.h.b16 %v2660
        %v3442 = vunpack.c.l.b16 %v2661
        %v3443 = vunpack.c.h.b16 %v2661
        %v3444 = vunpack.c.l.b16 %v2662
        %v3445 = vunpack.c.h.b16 %v2662
        %v3446 = vunpack.c.l.b16 %v2663
        %v3447 = vunpack.c.h.b16 %v2663
        %v3448 = vunpack.c.l.b16 %v2664
        %v3449 = vunpack.c.h.b16 %v2664
        %v3450 = vunpack.c.l.b16 %v2665
        %v3451 = vunpack.c.h.b16 %v2665
        %v3452 = vunpack.c.l.b16 %v2666
        %v3453 = vunpack.c.h.b16 %v2666
        %v3454 = vunpack.c.l.b16 %v2667
        %v3455 = vunpack.c.h.b16 %v2667
        %v3456 = vunpack.c.l.b16 %v2668
        %v3457 = vunpack.c.h.b16 %v2668
        %v3458 = vunpack.c.l.b16 %v2669
        %v3459 = vunpack.c.h.b16 %v2669
        %v3460 = vunpack.c.l.b16 %v2670
        %v3461 = vunpack.c.h.b16 %v2670
        %v3462 = vunpack.c.l.b16 %v2671
        %v3463 = vunpack.c.h.b16 %v2671
        %v3464 = vunpack.c.l.b16 %v2672
        %v3465 = vunpack.c.h.b16 %v2672
        %v3466 = vunpack.c.l.b16 %v2673
        %v3467 = vunpack.c.h.b16 %v2673
        %v3468 = vunpack.c.l.b16 %v2674
        %v3469 = vunpack.c.h.b16 %v2674
        %v3470 = vunpack.c.l.b16 %v2675
        %v3471 = vunpack.c.h.b16 %v2675
        %v3472 = vunpack.c.l.b16 %v2676
        %v3473 = vunpack.c.h.b16 %v2676
        %v3474 = vunpack.c.l.b16 %v2677
        %v3475 = vunpack.c.h.b16 %v2677
        %v3476 = vunpack.c.l.b16 %v2678
        %v3477 = vunpack.c.h.b16 %v2678
        %v3478 = vunpack.c.l.b16 %v2679
        %v3479 = vunpack.c.h.b16 %v2679
        %v3480 = vunpack.c.l.b16 %v2680
        %v3481 = vunpack.c.h.b16 %v2680
        %v3482 = vunpack.c.l.b16 %v2681
        %v3483 = vunpack.c.h.b16 %v2681
        %v3484 = vunpack.c.l.b16 %v2682
        %v3485 = vunpack.c.h.b16 %v2682
        %v3486 = vunpack.c.l.b16 %v2683
        %v3487 = vunpack.c.h.b16 %v2683
        %v3488 = vunpack.c.l.b16 %v2684
        %v3489 = vunpack.c.h.b16 %v2684
        %v3490 = vunpack.c.l.b16 %v2685
        %v3491 = vunpack.c.h.b16 %v2685
        %v3492 = vunpack.c.l.b16 %v2686
        %v3493 = vunpack.c.h.b16 %v2686
        %v3494 = vunpack.c.l.b16 %v2687
        %v3495 = vunpack.c.h.b16 %v2687
        %v3496 = vpack.c.b16 %v2988, %v2984
        %v3497 = vpack.c.b16 %v2989, %v2985
        %v3498 = vpack.c.b16 %v2990, %v2986
        %v3499 = vpack.c.b16 %v2991, %v2987
        %v3500 = vpack.c.b16 %v2996, %v2992
        %v3501 = vpack.c.b16 %v2997, %v2993
        %v3502 = vpack.c.b16 %v2998, %v2994
        %v3503 = vpack.c.b16 %v2999, %v2995
        %v3504 = vpack.c.b16 %v3004, %v3000
        %v3505 = vpack.c.b16 %v3005, %v3001
        %v3506 = vpack.c.b16 %v3006, %v3002
        %v3507 = vpack.c.b16 %v3007, %v3003
        %v3508 = vpack.c.b16 %v3012, %v3008
        %v3509 = vpack.c.b16 %v3013, %v3009
        %v3510 = vpack.c.b16 %v3014, %v3010
        %v3511 = vpack.c.b16 %v3015, %v3011
        %v3512 = vpack.c.b16 %v3020, %v3016
        %v3513 = vpack.c.b16 %v3021, %v3017
        %v3514 = vpack.c.b16 %v3022, %v3018
        %v3515 = vpack.c.b16 %v3023, %v3019
        %v3516 = vpack.c.b16 %v3028, %v3024
        %v3517 = vpack.c.b16 %v3029, %v3025
        %v3518 = vpack.c.b16 %v3030, %v3026
        %v3519 = vpack.c.b16 %v3031, %v3027
        %v3520 = vpack.c.b16 %v3036, %v3032
        %v3521 = vpack.c.b16 %v3037, %v3033
        %v3522 = vpack.c.b16 %v3038, %v3034
        %v3523 = vpack.c.b16 %v3039, %v3035
        %v3524 = vpack.c.b16 %v3044, %v3040
        %v3525 = vpack.c.b16 %v3045, %v3041
        %v3526 = vpack.c.b16 %v3046, %v3042
        %v3527 = vpack.c.b16 %v3047, %v3043
        %v3528 = vpack.c.b16 %v3052, %v3048
        %v3529 = vpack.c.b16 %v3053, %v3049
        %v3530 = vpack.c.b16 %v3054, %v3050
        %v3531 = vpack.c.b16 %v3055, %v3051
        %v3532 = vpack.c.b16 %v3060, %v3056
        %v3533 = vpack.c.b16 %v3061, %v3057
        %v3534 = vpack.c.b16 %v3062, %v3058
        %v3535 = vpack.c.b16 %v3063, %v3059
        %v3536 = vpack.c.b16 %v3068, %v3064
        %v3537 = vpack.c.b16 %v3069, %v3065
        %v3538 = vpack.c.b16 %v3070, %v3066
        %v3539 = vpack.c.b16 %v3071, %v3067
        %v3540 = vpack.c.b16 %v3076, %v3072
        %v3541 = vpack.c.b16 %v3077, %v3073
        %v3542 = vpack.c.b16 %v3078, %v3074
        %v3543 = vpack.c.b16 %v3079, %v3075
        %v3544 = vpack.c.b16 %v3084, %v3080
        %v3545 = vpack.c.b16 %v3085, %v3081
        %v3546 = vpack.c.b16 %v3086, %v3082
        %v3547 = vpack.c.b16 %v3087, %v3083
        %v3548 = vpack.c.b16 %v3092, %v3088
        %v3549 = vpack.c.b16 %v3093, %v3089
        %v3550 = vpack.c.b16 %v3094, %v3090
        %v3551 = vpack.c.b16 %v3095, %v3091
        %v3552 = vpack.c.b16 %v3100, %v3096
        %v3553 = vpack.c.b16 %v3101, %v3097
        %v3554 = vpack.c.b16 %v3102, %v3098
        %v3555 = vpack.c.b16 %v3103, %v3099
        %v3556 = vpack.c.b16 %v3108, %v3104
        %v3557 = vpack.c.b16 %v3109, %v3105
        %v3558 = vpack.c.b16 %v3110, %v3106
        %v3559 = vpack.c.b16 %v3111, %v3107
        %v3560 = vpack.c.b16 %v3116, %v3112
        %v3561 = vpack.c.b16 %v3117, %v3113
        %v3562 = vpack.c.b16 %v3118, %v3114
        %v3563 = vpack.c.b16 %v3119, %v3115
        %v3564 = vpack.c.b16 %v3124, %v3120
        %v3565 = vpack.c.b16 %v3125, %v3121
        %v3566 = vpack.c.b16 %v3126, %v3122
        %v3567 = vpack.c.b16 %v3127, %v3123
        %v3568 = vpack.c.b16 %v3132, %v3128
        %v3569 = vpack.c.b16 %v3133, %v3129
        %v3570 = vpack.c.b16 %v3134, %v3130
        %v3571 = vpack.c.b16 %v3135, %v3131
        %v3572 = vpack.c.b16 %v3140, %v3136
        %v3573 = vpack.c.b16 %v3141, %v3137
        %v3574 = vpack.c.b16 %v3142, %v3138
        %v3575 = vpack.c.b16 %v3143, %v3139
        %v3576 = vpack.c.b16 %v3148, %v3144
        %v3577 = vpack.c.b16 %v3149, %v3145
        %v3578 = vpack.c.b16 %v3150, %v3146
        %v3579 = vpack.c.b16 %v3151, %v3147
        %v3580 = vpack.c.b16 %v3156, %v3152
        %v3581 = vpack.c.b16 %v3157, %v3153
        %v3582 = vpack.c.b16 %v3158, %v3154
        %v3583 = vpack.c.b16 %v3159, %v3155
        %v3584 = vpack.c.b16 %v3164, %v3160
        %v3585 = vpack.c.b16 %v3165, %v3161
        %v3586 = vpack.c.b16 %v3166, %v3162
        %v3587 = vpack.c.b16 %v3167, %v3163
        %v3588 = vpack.c.b16 %v3172, %v3168
        %v3589 = vpack.c.b16 %v3173, %v3169
        %v3590 = vpack.c.b16 %v3174, %v3170
        %v3591 = vpack.c.b16 %v3175, %v3171
        %v3592 = vpack.c.b16 %v3180, %v3176
        %v3593 = vpack.c.b16 %v3181, %v3177
        %v3594 = vpack.c.b16 %v3182, %v3178
        %v3595 = vpack.c.b16 %v3183, %v3179
        %v3596 = vpack.c.b16 %v3188, %v3184
        %v3597 = vpack.c.b16 %v3189, %v3185
        %v3598 = vpack.c.b16 %v3190, %v3186
        %v3599 = vpack.c.b16 %v3191, %v3187
        %v3600 = vpack.c.b16 %v3196, %v3192
        %v3601 = vpack.c.b16 %v3197, %v3193
        %v3602 = vpack.c.b16 %v3198, %v3194
        %v3603 = vpack.c.b16 %v3199, %v3195
        %v3604 = vpack.c.b16 %v3204, %v3200
        %v3605 = vpack.c.b16 %v3205, %v3201
        %v3606 = vpack.c.b16 %v3206, %v3202
        %v3607 = vpack.c.b16 %v3207, %v3203
        %v3608 = vpack.c.b16 %v3212, %v3208
        %v3609 = vpack.c.b16 %v3213, %v3209
        %v3610 = vpack.c.b16 %v3214, %v3210
        %v3611 = vpack.c.b16 %v3215, %v3211
        %v3612 = vpack.c.b16 %v3220, %v3216
        %v3613 = vpack.c.b16 %v3221, %v3217
        %v3614 = vpack.c.b16 %v3222, %v3218
        %v3615 = vpack.c.b16 %v3223, %v3219
        %v3616 = vpack.c.b16 %v3228, %v3224
        %v3617 = vpack.c.b16 %v3229, %v3225
        %v3618 = vpack.c.b16 %v3230, %v3226
        %v3619 = vpack.c.b16 %v3231, %v3227
        %v3620 = vpack.c.b16 %v3236, %v3232
        %v3621 = vpack.c.b16 %v3237, %v3233
        %v3622 = vpack.c.b16 %v3238, %v3234
        %v3623 = vpack.c.b16 %v3239, %v3235
        %v3624 = vpack.c.b16 %v3244, %v3240
        %v3625 = vpack.c.b16 %v3245, %v3241
        %v3626 = vpack.c.b16 %v3246, %v3242
        %v3627 = vpack.c.b16 %v3247, %v3243
        %v3628 = vpack.c.b16 %v3252, %v3248
        %v3629 = vpack.c.b16 %v3253, %v3249
        %v3630 = vpack.c.b16 %v3254, %v3250
        %v3631 = vpack.c.b16 %v3255, %v3251
        %v3632 = vpack.c.b16 %v3260, %v3256
        %v3633 = vpack.c.b16 %v3261, %v3257
        %v3634 = vpack.c.b16 %v3262, %v3258
        %v3635 = vpack.c.b16 %v3263, %v3259
        %v3636 = vpack.c.b16 %v3268, %v3264
        %v3637 = vpack.c.b16 %v3269, %v3265
        %v3638 = vpack.c.b16 %v3270, %v3266
        %v3639 = vpack.c.b16 %v3271, %v3267
        %v3640 = vpack.c.b16 %v3276, %v3272
        %v3641 = vpack.c.b16 %v3277, %v3273
        %v3642 = vpack.c.b16 %v3278, %v3274
        %v3643 = vpack.c.b16 %v3279, %v3275
        %v3644 = vpack.c.b16 %v3284, %v3280
        %v3645 = vpack.c.b16 %v3285, %v3281
        %v3646 = vpack.c.b16 %v3286, %v3282
        %v3647 = vpack.c.b16 %v3287, %v3283
        %v3648 = vpack.c.b16 %v3292, %v3288
        %v3649 = vpack.c.b16 %v3293, %v3289
        %v3650 = vpack.c.b16 %v3294, %v3290
        %v3651 = vpack.c.b16 %v3295, %v3291
        %v3652 = vpack.c.b16 %v3300, %v3296
        %v3653 = vpack.c.b16 %v3301, %v3297
        %v3654 = vpack.c.b16 %v3302, %v3298
        %v3655 = vpack.c.b16 %v3303, %v3299
        %v3656 = vpack.c.b16 %v3308, %v3304
        %v3657 = vpack.c.b16 %v3309, %v3305
        %v3658 = vpack.c.b16 %v3310, %v3306
        %v3659 = vpack.c.b16 %v3311, %v3307
        %v3660 = vpack.c.b16 %v3316, %v3312
        %v3661 = vpack.c.b16 %v3317, %v3313
        %v3662 = vpack.c.b16 %v3318, %v3314
        %v3663 = vpack.c.b16 %v3319, %v3315
        %v3664 = vpack.c.b16 %v3324, %v3320
        %v3665 = vpack.c.b16 %v3325, %v3321
        %v3666 = vpack.c.b16 %v3326, %v3322
        %v3667 = vpack.c.b16 %v3327, %v3323
        %v3668 = vpack.c.b16 %v3332, %v3328
        %v3669 = vpack.c.b16 %v3333, %v3329
        %v3670 = vpack.c.b16 %v3334, %v3330
        %v3671 = vpack.c.b16 %v3335, %v3331
        %v3672 = vpack.c.b16 %v3340, %v3336
        %v3673 = vpack.c.b16 %v3341, %v3337
        %v3674 = vpack.c.b16 %v3342, %v3338
        %v3675 = vpack.c.b16 %v3343, %v3339
        %v3676 = vpack.c.b16 %v3348, %v3344
        %v3677 = vpack.c.b16 %v3349, %v3345
        %v3678 = vpack.c.b16 %v3350, %v3346
        %v3679 = vpack.c.b16 %v3351, %v3347
        %v3680 = vpack.c.b16 %v3356, %v3352
        %v3681 = vpack.c.b16 %v3357, %v3353
        %v3682 = vpack.c.b16 %v3358, %v3354
        %v3683 = vpack.c.b16 %v3359, %v3355
        %v3684 = vpack.c.b16 %v3364, %v3360
        %v3685 = vpack.c.b16 %v3365, %v3361
        %v3686 = vpack.c.b16 %v3366, %v3362
        %v3687 = vpack.c.b16 %v3367, %v3363
        %v3688 = vpack.c.b16 %v3372, %v3368
        %v3689 = vpack.c.b16 %v3373, %v3369
        %v3690 = vpack.c.b16 %v3374, %v3370
        %v3691 = vpack.c.b16 %v3375, %v3371
        %v3692 = vpack.c.b16 %v3380, %v3376
        %v3693 = vpack.c.b16 %v3381, %v3377
        %v3694 = vpack.c.b16 %v3382, %v3378
        %v3695 = vpack.c.b16 %v3383, %v3379
        %v3696 = vpack.c.b16 %v3388, %v3384
        %v3697 = vpack.c.b16 %v3389, %v3385
        %v3698 = vpack.c.b16 %v3390, %v3386
        %v3699 = vpack.c.b16 %v3391, %v3387
        %v3700 = vpack.c.b16 %v3396, %v3392
        %v3701 = vpack.c.b16 %v3397, %v3393
        %v3702 = vpack.c.b16 %v3398, %v3394
        %v3703 = vpack.c.b16 %v3399, %v3395
        %v3704 = vpack.c.b16 %v3404, %v3400
        %v3705 = vpack.c.b16 %v3405, %v3401
        %v3706 = vpack.c.b16 %v3406, %v3402
        %v3707 = vpack.c.b16 %v3407, %v3403
        %v3708 = vpack.c.b16 %v3412, %v3408
        %v3709 = vpack.c.b16 %v3413, %v3409
        %v3710 = vpack.c.b16 %v3414, %v3410
        %v3711 = vpack.c.b16 %v3415, %v3411
        %v3712 = vpack.c.b16 %v3420, %v3416
        %v3713 = vpack.c.b16 %v3421, %v3417
        %v3714 = vpack.c.b16 %v3422, %v3418
        %v3715 = vpack.c.b16 %v3423, %v3419
        %v3716 = vpack.c.b16 %v3428, %v3424
        %v3717 = vpack.c.b16 %v3429, %v3425
        %v3718 = vpack.c.b16 %v3430, %v3426
        %v3719 = vpack.c.b16 %v3431, %v3427
        %v3720 = vpack.c.b16 %v3436, %v3432
        %v3721 = vpack.c.b16 %v3437, %v3433
        %v3722 = vpack.c.b16 %v3438, %v3434
        %v3723 = vpack.c.b16 %v3439, %v3435
        %v3724 = vpack.c.b16 %v3444, %v3440
        %v3725 = vpack.c.b16 %v3445, %v3441
        %v3726 = vpack.c.b16 %v3446, %v3442
        %v3727 = vpack.c.b16 %v3447, %v3443
        %v3728 = vpack.c.b16 %v3452, %v3448
        %v3729 = vpack.c.b16 %v3453, %v3449
        %v3730 = vpack.c.b16 %v3454, %v3450
        %v3731 = vpack.c.b16 %v3455, %v3451
        %v3732 = vpack.c.b16 %v3460, %v3456
        %v3733 = vpack.c.b16 %v3461, %v3457
        %v3734 = vpack.c.b16 %v3462, %v3458
        %v3735 = vpack.c.b16 %v3463, %v3459
        %v3736 = vpack.c.b16 %v3468, %v3464
        %v3737 = vpack.c.b16 %v3469, %v3465
        %v3738 = vpack.c.b16 %v3470, %v3466
        %v3739 = vpack.c.b16 %v3471, %v3467
        %v3740 = vpack.c.b16 %v3476, %v3472
        %v3741 = vpack.c.b16 %v3477, %v3473
        %v3742 = vpack.c.b16 %v3478, %v3474
        %v3743 = vpack.c.b16 %v3479, %v3475
        %v3744 = vpack.c.b16 %v3484, %v3480
        %v3745 = vpack.c.b16 %v3485, %v3481
        %v3746 = vpack.c.b16 %v3486, %v3482
        %v3747 = vpack.c.b16 %v3487, %v3483
        %v3748 = vpack.c.b16 %v3492, %v3488
        %v3749 = vpack.c.b16 %v3493, %v3489
        %v3750 = vpack.c.b16 %v3494, %v3490
        %v3751 = vpack.c.b16 %v3495, %v3491
        %4008 = vmatprep.subr.bf16.mxu0 %v3497
        %4009 = vmatpush1.bf16.msra.mxu0 %v3496
        %4010 = vmatprep.subr.bf16.mxu0 %v3501
        %4011 = vmatpush1.bf16.msra.mxu0 %v3500
        %4012 = vmatprep.subr.bf16.mxu0 %v3505
        %4013 = vmatpush1.bf16.msra.mxu0 %v3504
        %4014 = vmatprep.subr.bf16.mxu0 %v3509
        %4015 = vmatpush1.bf16.msra.mxu0 %v3508
        %4016 = vmatprep.subr.bf16.mxu0 %v3513
        %4017 = vmatpush1.bf16.msra.mxu0 %v3512
        %4018 = vmatprep.subr.bf16.mxu0 %v3517
        %4019 = vmatpush1.bf16.msra.mxu0 %v3516
        %4020 = vmatprep.subr.bf16.mxu0 %v3521
        %4021 = vmatpush1.bf16.msra.mxu0 %v3520
        %4022 = vmatprep.subr.bf16.mxu0 %v3525
        %4023 = vmatpush1.bf16.msra.mxu0 %v3524
        %4024 = vmatprep.subr.bf16.mxu0 %v3529
        %4025 = vmatpush1.bf16.msra.mxu0 %v3528
        %4026 = vmatprep.subr.bf16.mxu0 %v3533
        %4027 = vmatpush1.bf16.msra.mxu0 %v3532
        %4028 = vmatprep.subr.bf16.mxu0 %v3537
        %4029 = vmatpush1.bf16.msra.mxu0 %v3536
        %4030 = vmatprep.subr.bf16.mxu0 %v3541
        %4031 = vmatpush1.bf16.msra.mxu0 %v3540
        %4032 = vmatprep.subr.bf16.mxu0 %v3545
        %4033 = vmatpush1.bf16.msra.mxu0 %v3544
        %4034 = vmatprep.subr.bf16.mxu0 %v3549
        %4035 = vmatpush1.bf16.msra.mxu0 %v3548
        %4036 = vmatprep.subr.bf16.mxu0 %v3553
        %4037 = vmatpush1.bf16.msra.mxu0 %v3552
        %4038 = vmatprep.subr.bf16.mxu0 %v3557
        %4039 = vmatpush1.bf16.msra.mxu0 %v3556
        %4040 = vmatprep.mubr.bf16.mxu0 %v2713
        %4041 = vmatmul.mubr.bf16.gmra.mrb[0].mxu0 %v2712
        %v4042 = vpop.f32.mrb[0].mxu0
        %v4043 = vadd.f32 0.0, %v4042
        %v4044 = vpop.f32.mrb[0].mxu0
        %v4045 = vadd.f32 0.0, %v4044
        %v4046 = vpop.f32.mrb[0].mxu0
        %v4047 = vadd.f32 0.0, %v4046
        %v4048 = vpop.f32.mrb[0].mxu0
        %v4049 = vadd.f32 0.0, %v4048
        %4050 = vdwg.mxu0
        %4051 = vmatprep.subr.bf16.mxu0 %v3561
        %4052 = vmatpush1.bf16.msra.mxu0 %v3560
        %4053 = vmatprep.subr.bf16.mxu0 %v3565
        %4054 = vmatpush1.bf16.msra.mxu0 %v3564
        %4055 = vmatprep.subr.bf16.mxu0 %v3569
        %4056 = vmatpush1.bf16.msra.mxu0 %v3568
        %4057 = vmatprep.subr.bf16.mxu0 %v3573
        %4058 = vmatpush1.bf16.msra.mxu0 %v3572
        %4059 = vmatprep.subr.bf16.mxu0 %v3577
        %4060 = vmatpush1.bf16.msra.mxu0 %v3576
        %4061 = vmatprep.subr.bf16.mxu0 %v3581
        %4062 = vmatpush1.bf16.msra.mxu0 %v3580
        %4063 = vmatprep.subr.bf16.mxu0 %v3585
        %4064 = vmatpush1.bf16.msra.mxu0 %v3584
        %4065 = vmatprep.subr.bf16.mxu0 %v3589
        %4066 = vmatpush1.bf16.msra.mxu0 %v3588
        %4067 = vmatprep.subr.bf16.mxu0 %v3593
        %4068 = vmatpush1.bf16.msra.mxu0 %v3592
        %4069 = vmatprep.subr.bf16.mxu0 %v3597
        %4070 = vmatpush1.bf16.msra.mxu0 %v3596
        %4071 = vmatprep.subr.bf16.mxu0 %v3601
        %4072 = vmatpush1.bf16.msra.mxu0 %v3600
        %4073 = vmatprep.subr.bf16.mxu0 %v3605
        %4074 = vmatpush1.bf16.msra.mxu0 %v3604
        %4075 = vmatprep.subr.bf16.mxu0 %v3609
        %4076 = vmatpush1.bf16.msra.mxu0 %v3608
        %4077 = vmatprep.subr.bf16.mxu0 %v3613
        %4078 = vmatpush1.bf16.msra.mxu0 %v3612
        %4079 = vmatprep.subr.bf16.mxu0 %v3617
        %4080 = vmatpush1.bf16.msra.mxu0 %v3616
        %4081 = vmatprep.subr.bf16.mxu0 %v3621
        %4082 = vmatpush1.bf16.msra.mxu0 %v3620
        %4083 = vmatprep.mubr.bf16.mxu0 %v2715
        %4084 = vmatmul.mubr.bf16.gmra.mrb[0].mxu0 %v2714
        %v4085 = vpop.f32.mrb[0].mxu0
        %v4086 = vadd.f32 %v4043, %v4085
        %v4087 = vpop.f32.mrb[0].mxu0
        %v4088 = vadd.f32 %v4045, %v4087
        %v4089 = vpop.f32.mrb[0].mxu0
        %v4090 = vadd.f32 %v4047, %v4089
        %v4091 = vpop.f32.mrb[0].mxu0
        %v4092 = vadd.f32 %v4049, %v4091
        %4093 = vdwg.mxu0
        %4094 = vmatprep.subr.bf16.mxu0 %v3625
        %4095 = vmatpush1.bf16.msra.mxu0 %v3624
        %4096 = vmatprep.subr.bf16.mxu0 %v3629
        %4097 = vmatpush1.bf16.msra.mxu0 %v3628
        %4098 = vmatprep.subr.bf16.mxu0 %v3633
        %4099 = vmatpush1.bf16.msra.mxu0 %v3632
        %4100 = vmatprep.subr.bf16.mxu0 %v3637
        %4101 = vmatpush1.bf16.msra.mxu0 %v3636
        %4102 = vmatprep.subr.bf16.mxu0 %v3641
        %4103 = vmatpush1.bf16.msra.mxu0 %v3640
        %4104 = vmatprep.subr.bf16.mxu0 %v3645
        %4105 = vmatpush1.bf16.msra.mxu0 %v3644
        %4106 = vmatprep.subr.bf16.mxu0 %v3649
        %4107 = vmatpush1.bf16.msra.mxu0 %v3648
        %4108 = vmatprep.subr.bf16.mxu0 %v3653
        %4109 = vmatpush1.bf16.msra.mxu0 %v3652
        %4110 = vmatprep.subr.bf16.mxu0 %v3657
        %4111 = vmatpush1.bf16.msra.mxu0 %v3656
        %4112 = vmatprep.subr.bf16.mxu0 %v3661
        %4113 = vmatpush1.bf16.msra.mxu0 %v3660
        %4114 = vmatprep.subr.bf16.mxu0 %v3665
        %4115 = vmatpush1.bf16.msra.mxu0 %v3664
        %4116 = vmatprep.subr.bf16.mxu0 %v3669
        %4117 = vmatpush1.bf16.msra.mxu0 %v3668
        %4118 = vmatprep.subr.bf16.mxu0 %v3673
        %4119 = vmatpush1.bf16.msra.mxu0 %v3672
        %4120 = vmatprep.subr.bf16.mxu0 %v3677
        %4121 = vmatpush1.bf16.msra.mxu0 %v3676
        %4122 = vmatprep.subr.bf16.mxu0 %v3681
        %4123 = vmatpush1.bf16.msra.mxu0 %v3680
        %4124 = vmatprep.subr.bf16.mxu0 %v3685
        %4125 = vmatpush1.bf16.msra.mxu0 %v3684
        %4126 = vmatprep.mubr.bf16.mxu0 %v2717
        %4127 = vmatmul.mubr.bf16.gmra.mrb[0].mxu0 %v2716
        %v4128 = vpop.f32.mrb[0].mxu0
        %v4129 = vadd.f32 %v4086, %v4128
        %v4130 = vpop.f32.mrb[0].mxu0
        %v4131 = vadd.f32 %v4088, %v4130
        %v4132 = vpop.f32.mrb[0].mxu0
        %v4133 = vadd.f32 %v4090, %v4132
        %v4134 = vpop.f32.mrb[0].mxu0
        %v4135 = vadd.f32 %v4092, %v4134
        %4136 = vdwg.mxu0
        %4137 = vmatprep.subr.bf16.mxu0 %v3689
        %4138 = vmatpush1.bf16.msra.mxu0 %v3688
        %4139 = vmatprep.subr.bf16.mxu0 %v3693
        %4140 = vmatpush1.bf16.msra.mxu0 %v3692
        %4141 = vmatprep.subr.bf16.mxu0 %v3697
        %4142 = vmatpush1.bf16.msra.mxu0 %v3696
        %4143 = vmatprep.subr.bf16.mxu0 %v3701
        %4144 = vmatpush1.bf16.msra.mxu0 %v3700
        %4145 = vmatprep.subr.bf16.mxu0 %v3705
        %4146 = vmatpush1.bf16.msra.mxu0 %v3704
        %4147 = vmatprep.subr.bf16.mxu0 %v3709
        %4148 = vmatpush1.bf16.msra.mxu0 %v3708
        %4149 = vmatprep.subr.bf16.mxu0 %v3713
        %4150 = vmatpush1.bf16.msra.mxu0 %v3712
        %4151 = vmatprep.subr.bf16.mxu0 %v3717
        %4152 = vmatpush1.bf16.msra.mxu0 %v3716
        %4153 = vmatprep.subr.bf16.mxu0 %v3721
        %4154 = vmatpush1.bf16.msra.mxu0 %v3720
        %4155 = vmatprep.subr.bf16.mxu0 %v3725
        %4156 = vmatpush1.bf16.msra.mxu0 %v3724
        %4157 = vmatprep.subr.bf16.mxu0 %v3729
        %4158 = vmatpush1.bf16.msra.mxu0 %v3728
        %4159 = vmatprep.subr.bf16.mxu0 %v3733
        %4160 = vmatpush1.bf16.msra.mxu0 %v3732
        %4161 = vmatprep.subr.bf16.mxu0 %v3737
        %4162 = vmatpush1.bf16.msra.mxu0 %v3736
        %4163 = vmatprep.subr.bf16.mxu0 %v3741
        %4164 = vmatpush1.bf16.msra.mxu0 %v3740
        %4165 = vmatprep.subr.bf16.mxu0 %v3745
        %4166 = vmatpush1.bf16.msra.mxu0 %v3744
        %4167 = vmatprep.subr.bf16.mxu0 %v3749
        %4168 = vmatpush1.bf16.msra.mxu0 %v3748
        %4169 = vmatprep.mubr.bf16.mxu0 %v2719
        %4170 = vmatmul.mubr.bf16.gmra.mrb[0].mxu0 %v2718
        %v4171 = vpop.f32.mrb[0].mxu0
        %v4172 = vadd.f32 %v4129, %v4171
        %v4173 = vpop.f32.mrb[0].mxu0
        %v4174 = vadd.f32 %v4131, %v4173
        %v4175 = vpop.f32.mrb[0].mxu0
        %v4176 = vadd.f32 %v4133, %v4175
        %v4177 = vpop.f32.mrb[0].mxu0
        %v4178 = vadd.f32 %v4135, %v4177
        %4179 = vdwg.mxu0
        %4180 = vmatprep.subr.bf16.mxu0 %v3499
        %4181 = vmatpush1.bf16.msra.mxu0 %v3498
        %4182 = vmatprep.subr.bf16.mxu0 %v3503
        %4183 = vmatpush1.bf16.msra.mxu0 %v3502
        %4184 = vmatprep.subr.bf16.mxu0 %v3507
        %4185 = vmatpush1.bf16.msra.mxu0 %v3506
        %4186 = vmatprep.subr.bf16.mxu0 %v3511
        %4187 = vmatpush1.bf16.msra.mxu0 %v3510
        %4188 = vmatprep.subr.bf16.mxu0 %v3515
        %4189 = vmatpush1.bf16.msra.mxu0 %v3514
        %4190 = vmatprep.subr.bf16.mxu0 %v3519
        %4191 = vmatpush1.bf16.msra.mxu0 %v3518
        %4192 = vmatprep.subr.bf16.mxu0 %v3523
        %4193 = vmatpush1.bf16.msra.mxu0 %v3522
        %4194 = vmatprep.subr.bf16.mxu0 %v3527
        %4195 = vmatpush1.bf16.msra.mxu0 %v3526
        %4196 = vmatprep.subr.bf16.mxu0 %v3531
        %4197 = vmatpush1.bf16.msra.mxu0 %v3530
        %4198 = vmatprep.subr.bf16.mxu0 %v3535
        %4199 = vmatpush1.bf16.msra.mxu0 %v3534
        %4200 = vmatprep.subr.bf16.mxu0 %v3539
        %4201 = vmatpush1.bf16.msra.mxu0 %v3538
        %4202 = vmatprep.subr.bf16.mxu0 %v3543
        %4203 = vmatpush1.bf16.msra.mxu0 %v3542
        %4204 = vmatprep.subr.bf16.mxu0 %v3547
        %4205 = vmatpush1.bf16.msra.mxu0 %v3546
        %4206 = vmatprep.subr.bf16.mxu0 %v3551
        %4207 = vmatpush1.bf16.msra.mxu0 %v3550
        %4208 = vmatprep.subr.bf16.mxu0 %v3555
        %4209 = vmatpush1.bf16.msra.mxu0 %v3554
        %4210 = vmatprep.subr.bf16.mxu0 %v3559
        %4211 = vmatpush1.bf16.msra.mxu0 %v3558
        %4212 = vmatprep.mubr.bf16.mxu0 %v2713
        %4213 = vmatmul.mubr.bf16.gmra.mrb[0].mxu0 %v2712
        %v4214 = vpop.f32.mrb[0].mxu0
        %v4215 = vadd.f32 0.0, %v4214
        %v4216 = vpop.f32.mrb[0].mxu0
        %v4217 = vadd.f32 0.0, %v4216
        %v4218 = vpop.f32.mrb[0].mxu0
        %v4219 = vadd.f32 0.0, %v4218
        %v4220 = vpop.f32.mrb[0].mxu0
        %v4221 = vadd.f32 0.0, %v4220
        %4222 = vdwg.mxu0
        %4223 = vmatprep.subr.bf16.mxu0 %v3563
        %4224 = vmatpush1.bf16.msra.mxu0 %v3562
        %4225 = vmatprep.subr.bf16.mxu0 %v3567
        %4226 = vmatpush1.bf16.msra.mxu0 %v3566
        %4227 = vmatprep.subr.bf16.mxu0 %v3571
        %4228 = vmatpush1.bf16.msra.mxu0 %v3570
        %4229 = vmatprep.subr.bf16.mxu0 %v3575
        %4230 = vmatpush1.bf16.msra.mxu0 %v3574
        %4231 = vmatprep.subr.bf16.mxu0 %v3579
        %4232 = vmatpush1.bf16.msra.mxu0 %v3578
        %4233 = vmatprep.subr.bf16.mxu0 %v3583
        %4234 = vmatpush1.bf16.msra.mxu0 %v3582
        %4235 = vmatprep.subr.bf16.mxu0 %v3587
        %4236 = vmatpush1.bf16.msra.mxu0 %v3586
        %4237 = vmatprep.subr.bf16.mxu0 %v3591
        %4238 = vmatpush1.bf16.msra.mxu0 %v3590
        %4239 = vmatprep.subr.bf16.mxu0 %v3595
        %4240 = vmatpush1.bf16.msra.mxu0 %v3594
        %4241 = vmatprep.subr.bf16.mxu0 %v3599
        %4242 = vmatpush1.bf16.msra.mxu0 %v3598
        %4243 = vmatprep.subr.bf16.mxu0 %v3603
        %4244 = vmatpush1.bf16.msra.mxu0 %v3602
        %4245 = vmatprep.subr.bf16.mxu0 %v3607
        %4246 = vmatpush1.bf16.msra.mxu0 %v3606
        %4247 = vmatprep.subr.bf16.mxu0 %v3611
        %4248 = vmatpush1.bf16.msra.mxu0 %v3610
        %4249 = vmatprep.subr.bf16.mxu0 %v3615
        %4250 = vmatpush1.bf16.msra.mxu0 %v3614
        %4251 = vmatprep.subr.bf16.mxu0 %v3619
        %4252 = vmatpush1.bf16.msra.mxu0 %v3618
        %4253 = vmatprep.subr.bf16.mxu0 %v3623
        %4254 = vmatpush1.bf16.msra.mxu0 %v3622
        %4255 = vmatprep.mubr.bf16.mxu0 %v2715
        %4256 = vmatmul.mubr.bf16.gmra.mrb[0].mxu0 %v2714
        %v4257 = vpop.f32.mrb[0].mxu0
        %v4258 = vadd.f32 %v4215, %v4257
        %v4259 = vpop.f32.mrb[0].mxu0
        %v4260 = vadd.f32 %v4217, %v4259
        %v4261 = vpop.f32.mrb[0].mxu0
        %v4262 = vadd.f32 %v4219, %v4261
        %v4263 = vpop.f32.mrb[0].mxu0
        %v4264 = vadd.f32 %v4221, %v4263
        %4265 = vdwg.mxu0
        %4266 = vmatprep.subr.bf16.mxu0 %v3627
        %4267 = vmatpush1.bf16.msra.mxu0 %v3626
        %4268 = vmatprep.subr.bf16.mxu0 %v3631
        %4269 = vmatpush1.bf16.msra.mxu0 %v3630
        %4270 = vmatprep.subr.bf16.mxu0 %v3635
        %4271 = vmatpush1.bf16.msra.mxu0 %v3634
        %4272 = vmatprep.subr.bf16.mxu0 %v3639
        %4273 = vmatpush1.bf16.msra.mxu0 %v3638
        %4274 = vmatprep.subr.bf16.mxu0 %v3643
        %4275 = vmatpush1.bf16.msra.mxu0 %v3642
        %4276 = vmatprep.subr.bf16.mxu0 %v3647
        %4277 = vmatpush1.bf16.msra.mxu0 %v3646
        %4278 = vmatprep.subr.bf16.mxu0 %v3651
        %4279 = vmatpush1.bf16.msra.mxu0 %v3650
        %4280 = vmatprep.subr.bf16.mxu0 %v3655
        %4281 = vmatpush1.bf16.msra.mxu0 %v3654
        %4282 = vmatprep.subr.bf16.mxu0 %v3659
        %4283 = vmatpush1.bf16.msra.mxu0 %v3658
        %4284 = vmatprep.subr.bf16.mxu0 %v3663
        %4285 = vmatpush1.bf16.msra.mxu0 %v3662
        %4286 = vmatprep.subr.bf16.mxu0 %v3667
        %4287 = vmatpush1.bf16.msra.mxu0 %v3666
        %4288 = vmatprep.subr.bf16.mxu0 %v3671
        %4289 = vmatpush1.bf16.msra.mxu0 %v3670
        %4290 = vmatprep.subr.bf16.mxu0 %v3675
        %4291 = vmatpush1.bf16.msra.mxu0 %v3674
        %4292 = vmatprep.subr.bf16.mxu0 %v3679
        %4293 = vmatpush1.bf16.msra.mxu0 %v3678
        %4294 = vmatprep.subr.bf16.mxu0 %v3683
        %4295 = vmatpush1.bf16.msra.mxu0 %v3682
        %4296 = vmatprep.subr.bf16.mxu0 %v3687
        %4297 = vmatpush1.bf16.msra.mxu0 %v3686
        %4298 = vmatprep.mubr.bf16.mxu0 %v2717
        %4299 = vmatmul.mubr.bf16.gmra.mrb[0].mxu0 %v2716
        %v4300 = vpop.f32.mrb[0].mxu0
        %v4301 = vadd.f32 %v4258, %v4300
        %v4302 = vpop.f32.mrb[0].mxu0
        %v4303 = vadd.f32 %v4260, %v4302
        %v4304 = vpop.f32.mrb[0].mxu0
        %v4305 = vadd.f32 %v4262, %v4304
        %v4306 = vpop.f32.mrb[0].mxu0
        %v4307 = vadd.f32 %v4264, %v4306
        %4308 = vdwg.mxu0
        %4309 = vmatprep.subr.bf16.mxu0 %v3691
        %4310 = vmatpush1.bf16.msra.mxu0 %v3690
        %4311 = vmatprep.subr.bf16.mxu0 %v3695
        %4312 = vmatpush1.bf16.msra.mxu0 %v3694
        %4313 = vmatprep.subr.bf16.mxu0 %v3699
        %4314 = vmatpush1.bf16.msra.mxu0 %v3698
        %4315 = vmatprep.subr.bf16.mxu0 %v3703
        %4316 = vmatpush1.bf16.msra.mxu0 %v3702
        %4317 = vmatprep.subr.bf16.mxu0 %v3707
        %4318 = vmatpush1.bf16.msra.mxu0 %v3706
        %4319 = vmatprep.subr.bf16.mxu0 %v3711
        %4320 = vmatpush1.bf16.msra.mxu0 %v3710
        %4321 = vmatprep.subr.bf16.mxu0 %v3715
        %4322 = vmatpush1.bf16.msra.mxu0 %v3714
        %4323 = vmatprep.subr.bf16.mxu0 %v3719
        %4324 = vmatpush1.bf16.msra.mxu0 %v3718
        %4325 = vmatprep.subr.bf16.mxu0 %v3723
        %4326 = vmatpush1.bf16.msra.mxu0 %v3722
        %4327 = vmatprep.subr.bf16.mxu0 %v3727
        %4328 = vmatpush1.bf16.msra.mxu0 %v3726
        %4329 = vmatprep.subr.bf16.mxu0 %v3731
        %4330 = vmatpush1.bf16.msra.mxu0 %v3730
        %4331 = vmatprep.subr.bf16.mxu0 %v3735
        %4332 = vmatpush1.bf16.msra.mxu0 %v3734
        %4333 = vmatprep.subr.bf16.mxu0 %v3739
        %4334 = vmatpush1.bf16.msra.mxu0 %v3738
        %4335 = vmatprep.subr.bf16.mxu0 %v3743
        %4336 = vmatpush1.bf16.msra.mxu0 %v3742
        %4337 = vmatprep.subr.bf16.mxu0 %v3747
        %4338 = vmatpush1.bf16.msra.mxu0 %v3746
        %4339 = vmatprep.subr.bf16.mxu0 %v3751
        %4340 = vmatpush1.bf16.msra.mxu0 %v3750
        %4341 = vmatprep.mubr.bf16.mxu0 %v2719
        %4342 = vmatmul.mubr.bf16.gmra.mrb[0].mxu0 %v2718
        %v4343 = vpop.f32.mrb[0].mxu0
        %v4344 = vadd.f32 %v4301, %v4343
        %v4345 = vpop.f32.mrb[0].mxu0
        %v4346 = vadd.f32 %v4303, %v4345
        %v4347 = vpop.f32.mrb[0].mxu0
        %v4348 = vadd.f32 %v4305, %v4347
        %v4349 = vpop.f32.mrb[0].mxu0
        %v4350 = vadd.f32 %v4307, %v4349
        %4351 = vdwg.mxu0
        %v4352 = vadd.f32 %v2416, %v4172
        %v4353 = vadd.f32 %v2417, %v4174
        %v4354 = vadd.f32 %v2418, %v4344
        %v4355 = vadd.f32 %v2419, %v4346
        %v4356 = vadd.f32 %v2420, %v4176
        %v4357 = vadd.f32 %v2421, %v4178
        %v4358 = vadd.f32 %v2422, %v4348
        %v4359 = vadd.f32 %v2423, %v4350
        %4360 = vst [vmem:[#allocation3] sm:$0xff] %v4352
        %4361 = vst [vmem:[#allocation3 + $0x8] sm:$0xff] %v4353
        %4362 = vst [vmem:[#allocation3 + $0x10] sm:$0xff] %v4354
        %4363 = vst [vmem:[#allocation3 + $0x18] sm:$0xff] %v4355
        %4364 = vst [vmem:[#allocation3 + $0x20] sm:$0xff] %v4356
        %4365 = vst [vmem:[#allocation3 + $0x28] sm:$0xff] %v4357
        %4366 = vst [vmem:[#allocation3 + $0x30] sm:$0xff] %v4358
        %4367 = vst [vmem:[#allocation3 + $0x38] sm:$0xff] %v4359
        // Predicated region
        $region65: #{tpu_custom_call.1} parent=43 // pred_check
          %p4368 = pneg %p444
        $region66: #{tpu_custom_call.1} parent=43 // pred_check_branch
          %4370 = sbr.rel (%p4368) target = $region68
        $region67: #{tpu_custom_call.1} parent=43 // pred_region
          %v4371 = vld [vmem:[#allocation2] sm:$0xff]
          %v4372 = vld [vmem:[#allocation2 + $0x8] sm:$0xff]
          %v4373 = vld [vmem:[#allocation2 + $0x10] sm:$0xff]
          %v4374 = vld [vmem:[#allocation2 + $0x18] sm:$0xff]
          %v4375 = vld [vmem:[#allocation2 + $0x20] sm:$0xff]
          %v4376 = vld [vmem:[#allocation2 + $0x28] sm:$0xff]
          %v4377 = vld [vmem:[#allocation2 + $0x30] sm:$0xff]
          %v4378 = vld [vmem:[#allocation2 + $0x38] sm:$0xff]
          %v4379 = vld [vmem:[%s4] sm:$0xf]
          %v4381 = vlaneseq
          %v4382 = vshrl.u32 %v4381, 7
          %v4383 = vsub.s32 0, %v4382
          %v4384 = vrot.slane %v4379, %v4383
          %v4385 = vlaneseq
          %v4386 = vshrl.u32 %v4385, 7
          %v4387 = vsub.s32 1, %v4386
          %v4388 = vrot.slane %v4379, %v4387
          %v4389 = vlaneseq
          %v4390 = vshrl.u32 %v4389, 7
          %v4391 = vsub.s32 2, %v4390
          %v4392 = vrot.slane %v4379, %v4391
          %v4393 = vlaneseq
          %v4394 = vshrl.u32 %v4393, 7
          %v4395 = vsub.s32 3, %v4394
          %v4396 = vrot.slane %v4379, %v4395
          %v4401 = vadd.f32 %v4371, %v4384
          %v4402 = vadd.f32 %v4372, %v4388
          %v4403 = vadd.f32 %v4373, %v4392
          %v4404 = vadd.f32 %v4374, %v4396
          %v4405 = vadd.f32 %v4375, %v4384
          %v4406 = vadd.f32 %v4376, %v4388
          %v4407 = vadd.f32 %v4377, %v4392
          %v4408 = vadd.f32 %v4378, %v4396
          %4409 = vst [vmem:[%s428] sm:$0xff] %v4401
          %4410 = vst [vmem:[%s428 + $0x8] sm:$0xff] %v4402
          %4411 = vst [vmem:[%s428 + $0x10] sm:$0xff] %v4403
          %4412 = vst [vmem:[%s428 + $0x18] sm:$0xff] %v4404
          %4413 = vst [vmem:[%s428 + $0x20] sm:$0xff] %v4405
          %4414 = vst [vmem:[%s428 + $0x28] sm:$0xff] %v4406
          %4415 = vst [vmem:[%s428 + $0x30] sm:$0xff] %v4407
          %4416 = vst [vmem:[%s428 + $0x38] sm:$0xff] %v4408
          %v4417 = vld [vmem:[#allocation3] sm:$0xff]
          %v4418 = vld [vmem:[#allocation3 + $0x8] sm:$0xff]
          %v4419 = vld [vmem:[#allocation3 + $0x10] sm:$0xff]
          %v4420 = vld [vmem:[#allocation3 + $0x18] sm:$0xff]
          %v4421 = vld [vmem:[#allocation3 + $0x20] sm:$0xff]
          %v4422 = vld [vmem:[#allocation3 + $0x28] sm:$0xff]
          %v4423 = vld [vmem:[#allocation3 + $0x30] sm:$0xff]
          %v4424 = vld [vmem:[#allocation3 + $0x38] sm:$0xff]
          %v4425 = vld [vmem:[%s5] sm:$0xf]
          %v4427 = vlaneseq
          %v4428 = vshrl.u32 %v4427, 7
          %v4429 = vsub.s32 0, %v4428
          %v4430 = vrot.slane %v4425, %v4429
          %v4431 = vlaneseq
          %v4432 = vshrl.u32 %v4431, 7
          %v4433 = vsub.s32 1, %v4432
          %v4434 = vrot.slane %v4425, %v4433
          %v4435 = vlaneseq
          %v4436 = vshrl.u32 %v4435, 7
          %v4437 = vsub.s32 2, %v4436
          %v4438 = vrot.slane %v4425, %v4437
          %v4439 = vlaneseq
          %v4440 = vshrl.u32 %v4439, 7
          %v4441 = vsub.s32 3, %v4440
          %v4442 = vrot.slane %v4425, %v4441
          %v4447 = vadd.f32 %v4417, %v4430
          %v4448 = vadd.f32 %v4418, %v4434
          %v4449 = vadd.f32 %v4419, %v4438
          %v4450 = vadd.f32 %v4420, %v4442
          %v4451 = vadd.f32 %v4421, %v4430
          %v4452 = vadd.f32 %v4422, %v4434
          %v4453 = vadd.f32 %v4423, %v4438
          %v4454 = vadd.f32 %v4424, %v4442
          %4455 = vst [vmem:[%s435] sm:$0xff] %v4447
          %4456 = vst [vmem:[%s435 + $0x8] sm:$0xff] %v4448
          %4457 = vst [vmem:[%s435 + $0x10] sm:$0xff] %v4449
          %4458 = vst [vmem:[%s435 + $0x18] sm:$0xff] %v4450
          %4459 = vst [vmem:[%s435 + $0x20] sm:$0xff] %v4451
          %4460 = vst [vmem:[%s435 + $0x28] sm:$0xff] %v4452
          %4461 = vst [vmem:[%s435 + $0x30] sm:$0xff] %v4453
          %4462 = vst [vmem:[%s435 + $0x38] sm:$0xff] %v4454
        $region68: #{tpu_custom_call.1} parent=43 // pred_fallthru
          _
        %s4463 = sand.u32 %s215, 1
        %s4464 = scalar_lea.sflag [#allocation6], %s4463
        %s4465 = sand.u32 %s215, 1
        %s4466 = smul.addr %s4465, 64
        %s4467 = scalar_lea.vmem [#allocation12], %s4466
        %s4468 = sand.u32 %s243, 1
        %s4469 = scalar_lea.sflag [#allocation14], %s4468
        %s4470 = sand.u32 %s243, 1
        %s4471 = smul.addr %s4470, 64
        %s4472 = scalar_lea.vmem [#allocation13], %s4471
        // Predicated region
        $region69: #{tpu_custom_call.1} parent=43 // pred_check
          %p4473 = pneg %p225
        $region70: #{tpu_custom_call.1} parent=43 // pred_check_branch
          %4475 = sbr.rel (%p4473) target = $region72
        $region71: #{tpu_custom_call.1} parent=43 // pred_region
          %s4476 = smul.u32 2, %s38
          %s4478 = ssub.s32 1024, 1024
          %4479 = vsyncadd %s4464, %s4478
          %s4480 = smul.addr %s4476, 4
          %s4481 = smul.addr %s37, 8
          %s4482 = sadd.s32 %s4480, %s4481
          %s4483 = smul.addr %s4482, 128
          %s4484 = scalar_lea.hbm %s6, %s4483
          %s4485 = sshll.u32 %s4467, 4
          %s4486 = int_to_ptr.vmem [resolvable:$true] %s4485
          %4491 = dma.vmem_to_hbm [thread:$0]  %s4486, 1024, %s4484, %s4464, 512, 512, 32
        $region72: #{tpu_custom_call.1} parent=43 // pred_fallthru
          _
        // Predicated region
        $region73: #{tpu_custom_call.1} parent=43 // pred_check
          %p4492 = pneg %p253
        $region74: #{tpu_custom_call.1} parent=43 // pred_check_branch
          %4494 = sbr.rel (%p4492) target = $region76
        $region75: #{tpu_custom_call.1} parent=43 // pred_region
          %s4495 = smul.u32 2, %s38
          %s4497 = ssub.s32 1024, 1024
          %4498 = vsyncadd %s4469, %s4497
          %s4499 = smul.addr %s4495, 4
          %s4500 = smul.addr %s37, 8
          %s4501 = sadd.s32 %s4499, %s4500
          %s4502 = smul.addr %s4501, 128
          %s4503 = scalar_lea.hbm %s7, %s4502
          %s4504 = sshll.u32 %s4472, 4
          %s4505 = int_to_ptr.vmem [resolvable:$true] %s4504
          %4510 = dma.vmem_to_hbm [thread:$0]  %s4505, 1024, %s4503, %s4469, 512, 512, 32
        $region76: #{tpu_custom_call.1} parent=43 // pred_fallthru
          _
      $region44: #{tpu_custom_call.1} parent=5 // pred_fallthru
        _
      %p4511 = scmp.le.s32.totalorder 2, %s27
      // Predicated region
      $region77: #{tpu_custom_call.1} parent=5 // pred_check
        %p4512 = pneg %p4511
      $region78: #{tpu_custom_call.1} parent=5 // pred_check_branch
        %4514 = sbr.rel (%p4512) target = $region80
      $region79: #{tpu_custom_call.1} parent=5 // pred_region
        %s4515 = ssub.s32 %s27, 2
        // Predicated region
        $region81: #{tpu_custom_call.1} parent=79 // pred_check
          %p4516 = pneg %p231
        $region82: #{tpu_custom_call.1} parent=79 // pred_check_branch
          %4518 = sbr.rel (%p4516) target = $region84
        $region83: #{tpu_custom_call.1} parent=79 // pred_region
          %s4519 = sand.u32 %s216, 1
          %s4520 = scalar_lea.sflag [#allocation6], %s4519
          %s4521 = sand.u32 %s216, 1
          %s4522 = smul.addr %s4521, 64
          %s4523 = scalar_lea.vmem [#allocation12], %s4522
          %4524 = dma.done %s4520, 1024
        $region84: #{tpu_custom_call.1} parent=79 // pred_fallthru
          _
        // Predicated region
        $region85: #{tpu_custom_call.1} parent=79 // pred_check
          %p4525 = pneg %p259
        $region86: #{tpu_custom_call.1} parent=79 // pred_check_branch
          %4527 = sbr.rel (%p4525) target = $region88
        $region87: #{tpu_custom_call.1} parent=79 // pred_region
          %s4528 = sand.u32 %s244, 1
          %s4529 = scalar_lea.sflag [#allocation14], %s4528
          %s4530 = sand.u32 %s244, 1
          %s4531 = smul.addr %s4530, 64
          %s4532 = scalar_lea.vmem [#allocation13], %s4531
          %4533 = dma.done %s4529, 1024
        $region88: #{tpu_custom_call.1} parent=79 // pred_fallthru
          _
      $region80: #{tpu_custom_call.1} parent=5 // pred_fallthru
        _
    $region6: #{tpu_custom_call.1} parent=1 // loop_footer
      %s31 = sadd.s32 1, %s27
    $region7: #{tpu_custom_call.1} parent=1 // loop_footer_branch
      %26 = sbr.rel target = $region3
    $region8: #{tpu_custom_call.1} parent=1 // loop_exit
      _
    %4534 = vsyncpa [#allocation5], 1
    %s4535 = scalar_lea.sflag [#allocation5], 1
    %4536 = vsyncpa %s4535, 1
    %4537 = vsyncpa [#allocation8], 1
    %s4538 = scalar_lea.sflag [#allocation8], 1
    %4539 = vsyncpa %s4538, 1
    %4540 = vsyncpa [#allocation11], 1
    %4541 = vsyncpa [#allocation6], 1
    %s4542 = scalar_lea.sflag [#allocation6], 1
    %4543 = vsyncpa %s4542, 1
    %4544 = vsyncpa [#allocation14], 1
    %s4545 = scalar_lea.sflag [#allocation14], 1
    %4546 = vsyncpa %s4545, 1

</llo_original>
